<compile_context>
chip_gen: v5e
topology: v5e:2x2
jax: 0.10.0
libtpu: 0.0.40
codegen_flags: <defaults>
</compile_context>

<pallas_src>
import functools

import jax
import jax.numpy as jnp
import numpy as np
from jax.experimental import pallas as pl
from jax.experimental.pallas import tpu as pltpu

EPS = 1e-5
LANE = 128

# Older jax releases call this TPUCompilerParams.
_CompilerParams = getattr(pltpu, "CompilerParams",
                          getattr(pltpu, "TPUCompilerParams", None))


def _round_up(x, m):
    return (x + m - 1) // m * m


def _cdiv(a, b):
    return (a + b - 1) // b


def _vmem_limit_bytes():
    """~3/4 of physical VMEM, capped at 96 MiB (128 MiB v5e/v6e, 64 MiB v7x)."""
    try:
        cap = pltpu.get_tpu_info().vmem_capacity_bytes
        return int(min(cap * 3 // 4, 96 * 1024 * 1024))
    except Exception:
        return 48 * 1024 * 1024


# ----------------------------------------------------------------------------
# Kernel A: conv1_1 (1x1) as matmul + folded-BN bias + ReLU
# ----------------------------------------------------------------------------
def _mm_bias_relu_kernel(x_ref, w_ref, b_ref, o_ref):
    acc = jnp.dot(x_ref[...], w_ref[...], preferred_element_type=jnp.float32)
    o_ref[...] = jnp.maximum(acc + b_ref[...], 0.0).astype(o_ref.dtype)


def matmul_bias_relu(x, w, b, *, block_m=512, out_dtype=jnp.bfloat16,
                     vmem_limit=48 * 1024 * 1024):
    """y = relu(x @ w + b); x:(M,K) bf16, w:(K,N) bf16, b:(1,N) f32."""
    M, K = x.shape
    Kw, N = w.shape
    assert K == Kw

    # Large row tiles, but target >= 4 grid steps (pipelining + both v7x TCs),
    # and keep the tile a multiple of 16 (bf16 sublane packing).
    tm = block_m
    while tm > 128 and _cdiv(M, tm) < 4:
        tm //= 2
    tm = min(tm, _round_up(M, 16))
    tm = max(16, _round_up(tm, 16))
    m_pad = _round_up(M, tm)
    if m_pad != M:
        x = jnp.pad(x, ((0, m_pad - M), (0, 0)))

    out = pl.pallas_call(
        _mm_bias_relu_kernel,
        out_shape=jax.ShapeDtypeStruct((m_pad, N), out_dtype),
        grid=(m_pad // tm,),
        in_specs=[
            pl.BlockSpec((tm, K), lambda i: (i, 0)),   # activation row tile
            pl.BlockSpec((K, N), lambda i: (0, 0)),    # BN-folded weight
            pl.BlockSpec((1, N), lambda i: (0, 0)),    # folded bias
        ],
        out_specs=pl.BlockSpec((tm, N), lambda i: (i, 0)),
        compiler_params=_CompilerParams(
            dimension_semantics=("parallel",),
            vmem_limit_bytes=vmem_limit),
    )(x, w, b)
    return out[:M]


# ----------------------------------------------------------------------------
# Kernel B: fused [conv3_1(3x3,s2)+BN+ReLU] -> [conv1_2(1x1)+BN]
#                + shortcut [conv3_2(3x3,s2)+BN] + add + ReLU
#
# Each 3x3/stride-2 conv is 9 accumulated dense matmuls over pre-built "tap
# planes" (see _make_tap_planes).  Grid = (image, output-row chunk); the tap
# planes for one image are VMEM-resident (block index constant across chunks)
# and each chunk reads contiguous flat row ranges -> no in-kernel relayouts.
# ----------------------------------------------------------------------------
def _fused_tail_kernel(x1p_ref, xp_ref, w2_ref, b2_ref, w3_ref, b3_ref,
                       w4_ref, b4_ref, o_ref, acc_mid_ref, acc_out_ref,
                       *, tile_rows, wo):
    row0 = pl.multiple_of(pl.program_id(1) * tile_rows, tile_rows)

    # ---- main path: conv3_1 (3x3, stride 2) = 9 dense accumulated matmuls ----
    for kh in range(3):
        khp, dh = kh % 2, kh // 2
        for kw in range(3):
            t = kh * 3 + kw
            plane = x1p_ref.at[0, khp * 3 + kw]                 # (HhW, cm) view
            lhs = plane[pl.ds(row0 + dh * wo, tile_rows), :]    # contiguous rows
            contrib = jnp.dot(lhs, w2_ref[t], preferred_element_type=jnp.float32)
            if t == 0:
                acc_mid_ref[...] = contrib
            else:
                acc_mid_ref[...] += contrib

    # conv3_1 epilogue (folded-BN bias + ReLU), then conv1_2 (1x1) on the MXU.
    x2 = jnp.maximum(acc_mid_ref[...] + b2_ref[...], 0.0).astype(jnp.bfloat16)
    acc_out_ref[...] = (
        jnp.dot(x2, w3_ref[...], preferred_element_type=jnp.float32)
        + b3_ref[...] + b4_ref[...])

    # ---- shortcut path: conv3_2 (3x3, stride 2), accumulated into the output ----
    for kh in range(3):
        khp, dh = kh % 2, kh // 2
        for kw in range(3):
            t = kh * 3 + kw
            plane = xp_ref.at[0, khp * 3 + kw]                  # (HhW, ci) view
            lhs = plane[pl.ds(row0 + dh * wo, tile_rows), :]
            acc_out_ref[...] += jnp.dot(lhs, w4_ref[t],
                                        preferred_element_type=jnp.float32)

    o_ref[0] = jnp.maximum(acc_out_ref[...], 0.0).astype(o_ref.dtype)


def fused_bottleneck_tail(x1_planes, x_planes, w2, b2, w3, b3, w4, b4,
                          *, ho_pad, wo, tile_ho, vmem_limit):
    n, _, hhw, cm = x1_planes.shape
    ci = x_planes.shape[-1]
    co = w3.shape[1]
    tile_rows = tile_ho * wo
    num_chunks = ho_pad // tile_ho
    kernel = functools.partial(_fused_tail_kernel, tile_rows=tile_rows, wo=wo)

    return pl.pallas_call(
        kernel,
        out_shape=jax.ShapeDtypeStruct((n, ho_pad * wo, co), jnp.bfloat16),
        grid=(n, num_chunks),
        in_specs=[
            pl.BlockSpec((1, 6, hhw, cm), lambda i, j: (i, 0, 0, 0)),  # x1 planes
            pl.BlockSpec((1, 6, hhw, ci), lambda i, j: (i, 0, 0, 0)),  # x  planes
            pl.BlockSpec((9, cm, cm), lambda i, j: (0, 0, 0)),         # w2 (3x3)
            pl.BlockSpec((1, cm), lambda i, j: (0, 0)),                # b2
            pl.BlockSpec((cm, co), lambda i, j: (0, 0)),               # w3 (1x1)
            pl.BlockSpec((1, co), lambda i, j: (0, 0)),                # b3
            pl.BlockSpec((9, ci, co), lambda i, j: (0, 0, 0)),         # w4 (3x3)
            pl.BlockSpec((1, co), lambda i, j: (0, 0)),                # b4
        ],
        out_specs=pl.BlockSpec((1, tile_rows, co), lambda i, j: (i, j, 0)),
        scratch_shapes=[
            pltpu.VMEM((tile_rows, cm), jnp.float32),   # conv3_1 accumulator
            pltpu.VMEM((tile_rows, co), jnp.float32),   # output accumulator
        ],
        compiler_params=_CompilerParams(
            dimension_semantics=("parallel", "parallel"),
            vmem_limit_bytes=vmem_limit),
    )(x1_planes, x_planes, w2, b2, w3, b3, w4, b4)


# ----------------------------------------------------------------------------
# Tap-plane construction (wrapper / XLA side).
#
# plane[(kh%2)*3 + kw][r, c, :] == x_pad[2*r + kh%2, 2*c + kw, :], so the lhs
# of tap (kh, kw) for output rows [r0, r0+tile) is the contiguous flat row
# range [(r0 + kh//2)*wo, (r0 + kh//2 + tile)*wo) of that plane.
# ----------------------------------------------------------------------------
def _make_tap_planes(x_nhwc, ho_pad, wo):
    n, h, w, c = x_nhwc.shape
    hh = ho_pad + 1                       # phase-plane rows incl. the +1 halo row
    ht, wt = 2 * hh, 2 * wo + 1
    xp = jnp.pad(x_nhwc, ((0, 0), (1, ht - 1 - h), (1, wt - 1 - w), (0, 0)))
    planes = [xp[:, khp::2, kw::2, :][:, :hh, :wo, :]
              for khp in (0, 1) for kw in (0, 1, 2)]
    planes = jnp.stack(planes, axis=1)                # (n, 6, hh, wo, c)
    return planes.reshape(n, 6, hh * wo, c)


# ----------------------------------------------------------------------------
# Parameter construction (deterministic) and BN folding into weights
# ----------------------------------------------------------------------------
def init_params(key, in_ch, out_ch, dtype=jnp.float32):
    c_mid = out_ch // 4
    ks = jax.random.split(key, 12)

    def conv_w(k, cout, cin, kh, kw):
        return 0.1 * jax.random.normal(k, (cout, cin, kh, kw), dtype)

    def bn(k, c):
        k1, k2, k3, k4 = jax.random.split(k, 4)
        return (1.0 + 0.1 * jax.random.normal(k1, (c,), dtype),
                0.1 * jax.random.normal(k2, (c,), dtype),
                0.1 * jax.random.normal(k3, (c,), dtype),
                1.0 + 0.1 * jax.random.uniform(k4, (c,), dtype))

    raw = {
        "w1": conv_w(ks[0], c_mid, in_ch, 1, 1),
        "b1": 0.1 * jax.random.normal(ks[1], (c_mid,), dtype),
        "bn1": bn(ks[2], c_mid),
        "w2": conv_w(ks[3], c_mid, c_mid, 3, 3),
        "b2": 0.1 * jax.random.normal(ks[4], (c_mid,), dtype),
        "bn2": bn(ks[5], c_mid),
        "w3": conv_w(ks[6], out_ch, c_mid, 1, 1),
        "b3": 0.1 * jax.random.normal(ks[7], (out_ch,), dtype),
        "bn3": bn(ks[8], out_ch),
        "w4": conv_w(ks[9], out_ch, in_ch, 3, 3),
        "b4": 0.1 * jax.random.normal(ks[10], (out_ch,), dtype),
        "bn4": bn(ks[11], out_ch),
    }
    return raw, c_mid


def fold_params(raw, in_ch, c_mid, out_ch):
    """Fold BN scale into matmul-form weights, pad channels to 128, cast bf16."""
    ci_p, cm_p, co_p = (_round_up(c, LANE) for c in (in_ch, c_mid, out_ch))

    def scale_bias(conv_b, gamma, beta, mean, var):
        s = gamma / jnp.sqrt(var + EPS)
        return s, (conv_b - mean) * s + beta

    def fold_1x1(w, conv_b, bn, kin_p, cout_p):
        s, bias = scale_bias(conv_b, *bn)
        cout, cin = w.shape[:2]
        wm = w.reshape(cout, cin).T * s[None, :]
        wm = jnp.pad(wm, ((0, kin_p - cin), (0, cout_p - cout))).astype(jnp.bfloat16)
        b = jnp.pad(bias, (0, cout_p - cout)).reshape(1, cout_p).astype(jnp.float32)
        return wm, b

    def fold_3x3(w, conv_b, bn, kin_p, cout_p):
        s, bias = scale_bias(conv_b, *bn)
        cout, cin = w.shape[:2]
        wm = w.transpose(2, 3, 1, 0).reshape(9, cin, cout) * s[None, None, :]
        wm = jnp.pad(wm, ((0, 0), (0, kin_p - cin), (0, cout_p - cout))).astype(jnp.bfloat16)
        b = jnp.pad(bias, (0, cout_p - cout)).reshape(1, cout_p).astype(jnp.float32)
        return wm, b

    folded = {}
    folded["w1"], folded["b1"] = fold_1x1(raw["w1"], raw["b1"], raw["bn1"], ci_p, cm_p)
    folded["w2"], folded["b2"] = fold_3x3(raw["w2"], raw["b2"], raw["bn2"], cm_p, cm_p)
    folded["w3"], folded["b3"] = fold_1x1(raw["w3"], raw["b3"], raw["bn3"], cm_p, co_p)
    folded["w4"], folded["b4"] = fold_3x3(raw["w4"], raw["b4"], raw["bn4"], ci_p, co_p)
    return folded, (ci_p, cm_p, co_p)


# ----------------------------------------------------------------------------
# Bottleneck forward (Pallas path)
# ----------------------------------------------------------------------------
def bottleneck_forward(x_nchw, folded, channels, padded):
    in_ch, c_mid, out_ch = channels
    ci_p, cm_p, co_p = padded
    vmem_limit = _vmem_limit_bytes()

    x = jnp.transpose(x_nchw, (0, 2, 3, 1)).astype(jnp.bfloat16)  # NCHW->NHWC bf16
    n, h, w, _ = x.shape
    ho = (h - 1) // 2 + 1   # 3x3, stride 2, pad 1
    wo = (w - 1) // 2 + 1

    # Row-chunk size for the tail kernel: ~512 flattened rows per chunk,
    # >= 2 chunks when possible, output blocks kept sublane-dense.
    tile_ho = min(ho, max(1, 512 // max(wo, 1)))
    while tile_ho > 1 and _cdiv(ho, tile_ho) < 2:
        tile_ho = (tile_ho + 1) // 2
    if wo % 8 == 0:
        num_chunks = _cdiv(ho, tile_ho)
        tile_ho = _cdiv(ho, num_chunks)            # balance chunk sizes
    elif (tile_ho * wo) % 8 != 0:
        t8 = _round_up(tile_ho, 8)
        tile_ho = t8 if _cdiv(ho, t8) >= 2 else ho  # else single full-extent block
    num_chunks = _cdiv(ho, tile_ho)
    ho_pad = tile_ho * num_chunks

    # Lane-pad input channels once.
    x_p = jnp.pad(x, ((0, 0), (0, 0), (0, 0), (0, ci_p - in_ch)))

    # conv1_1 (1x1) + BN + ReLU
    x1 = matmul_bias_relu(x_p.reshape(n * h * w, ci_p), folded["w1"], folded["b1"],
                          vmem_limit=vmem_limit)
    x1 = x1.reshape(n, h, w, cm_p)
    # TODO(synk): fuse conv1_1 into the tail kernel so x1 never hits HBM.

    # Dense, flattened stride-2 tap planes (all slicing done once in XLA).
    x1_planes = _make_tap_planes(x1, ho_pad, wo)
    x_planes = _make_tap_planes(x_p, ho_pad, wo)

    out = fused_bottleneck_tail(x1_planes, x_planes,
                                folded["w2"], folded["b2"],
                                folded["w3"], folded["b3"],
                                folded["w4"], folded["b4"],
                                ho_pad=ho_pad, wo=wo, tile_ho=tile_ho,
                                vmem_limit=vmem_limit)

    # Single fused XLA reshape/slice/transpose back to NCHW f32.
    out = out.reshape(n, ho_pad, wo, co_p)[:, :ho, :, :out_ch]
    return jnp.transpose(out, (0, 3, 1, 2)).astype(jnp.float32)


# ----------------------------------------------------------------------------
# Pure-JAX f32 reference (XLA convs) for validation
# ----------------------------------------------------------------------------
def reference_forward(x_nchw, raw, out_ch):
    x = jnp.transpose(x_nchw, (0, 2, 3, 1))
    dn = ("NHWC", "HWIO", "NHWC")

    def conv_bn(inp, w, b, bn, stride, pad, relu):
        wf = jnp.transpose(w, (2, 3, 1, 0))  # OIHW -> HWIO
        y = jax.lax.conv_general_dilated(inp, wf, (stride, stride),
                                         ((pad, pad), (pad, pad)),
                                         dimension_numbers=dn)
        y = y + b[None, None, None, :]
        gamma, beta, mean, var = bn
        y = gamma * (y - mean) / jnp.sqrt(var + EPS) + beta
        return jnp.maximum(y, 0.0) if relu else y

    a = conv_bn(x, raw["w1"], raw["b1"], raw["bn1"], 1, 0, True)
    a = conv_bn(a, raw["w2"], raw["b2"], raw["bn2"], 2, 1, True)
    a = conv_bn(a, raw["w3"], raw["b3"], raw["bn3"], 1, 0, False)
    r = conv_bn(x, raw["w4"], raw["b4"], raw["bn4"], 2, 1, False)
    out = jnp.maximum(a + r, 0.0)
    return jnp.transpose(out, (0, 3, 1, 2))


if __name__ == "__main__":
    key = jax.random.PRNGKey(0)
    k_x, k_p = jax.random.split(key)

    N, in_ch, H, W = 2, 4, 16, 16
    out_ch = 16  # expansion = 4 -> bottleneck width = 4

    x = jax.random.normal(k_x, (N, in_ch, H, W), jnp.float32)
    raw, c_mid = init_params(k_p, in_ch, out_ch)
    folded, padded = fold_params(raw, in_ch, c_mid, out_ch)

    fwd = jax.jit(lambda xx: bottleneck_forward(xx, folded,
                                                (in_ch, c_mid, out_ch), padded))
    out = jax.block_until_ready(fwd(x))

    ref = jax.block_until_ready(reference_forward(x, raw, out_ch))
    # bf16 activations/weights with f32 accumulation vs. an f32 reference:
    # the loose tolerance below is intentional.
    np.testing.assert_allclose(np.asarray(out), np.asarray(ref),
                               rtol=5e-2, atol=5e-2)

    print("KERNEL_OK")
</pallas_src>

<mosaic_0001>
module attributes {stable_mosaic.version = 11 : i64} {
  func.func @_mm_bias_relu_kernel(%arg0: i32, %arg1: memref<128x128xbf16, #tpu.memory_space<vmem>>, %arg2: memref<128x128xbf16, #tpu.memory_space<vmem>>, %arg3: memref<1x128xf32, #tpu.memory_space<vmem>>, %arg4: memref<128x128xbf16, #tpu.memory_space<vmem>>) attributes {dimension_semantics = [#tpu.dimension_semantics<parallel>], iteration_bounds = array<i64: 4>, scalar_prefetch = 0 : i64, scratch_operands = 0 : i64, tpu.core_type = #tpu.core_type<tc>, window_params = [{transform_indices = @transform_0, window_bounds = array<i64: 128, 128>}, {pipeline_mode = #tpu.pipeline_mode<synchronous>, transform_indices = @transform_1, window_bounds = array<i64: 128, 128>}, {pipeline_mode = #tpu.pipeline_mode<synchronous>, transform_indices = @transform_2, window_bounds = array<i64: 1, 128>}, {transform_indices = @transform_3, window_bounds = array<i64: 128, 128>}]} {
    %c0 = arith.constant 0 : index
    %c0_0 = arith.constant 0 : index
    %0 = vector.load %arg1[%c0, %c0_0] : memref<128x128xbf16, #tpu.memory_space<vmem>>, vector<128x128xbf16>
    %c0_1 = arith.constant 0 : index
    %c0_2 = arith.constant 0 : index
    %1 = vector.load %arg2[%c0_1, %c0_2] : memref<128x128xbf16, #tpu.memory_space<vmem>>, vector<128x128xbf16>
    %cst = arith.constant dense<0.000000e+00> : vector<128x128xf32>
    %2 = tpu.matmul %0, %1, %cst {dimension_numbers = #tpu.dot_dimension_numbers<[1], [0], [0], [1], [0, 0, 1, 1], [], []>} : vector<128x128xbf16>, vector<128x128xbf16>, vector<128x128xf32> -> vector<128x128xf32>
    %c0_3 = arith.constant 0 : index
    %c0_4 = arith.constant 0 : index
    %3 = vector.load %arg3[%c0_3, %c0_4] : memref<1x128xf32, #tpu.memory_space<vmem>>, vector<1x128xf32>
    %4 = vector.broadcast %3 : vector<1x128xf32> to vector<128x128xf32>
    %5 = arith.addf %2, %4 : vector<128x128xf32>
    %cst_5 = arith.constant 0.000000e+00 : f32
    %6 = vector.broadcast %cst_5 : f32 to vector<128x128xf32>
    %7 = arith.maximumf %5, %6 : vector<128x128xf32>
    %8 = arith.truncf %7 : vector<128x128xf32> to vector<128x128xbf16>
    %c0_6 = arith.constant 0 : index
    %c0_7 = arith.constant 0 : index
    %9 = vector.load %arg4[%c0_6, %c0_7] : memref<128x128xbf16, #tpu.memory_space<vmem>>, vector<128x128xbf16>
    tpu.vector_store %arg4[%c0_6, %c0_7], %8 {strides = array<i32>} : memref<128x128xbf16, #tpu.memory_space<vmem>>, vector<128x128xbf16>,
    return
  }
  func.func @transform_0(%arg0: i32) -> (i32, i32) {
    %c0_i32 = arith.constant 0 : i32
    %c0_i32_0 = arith.constant 0 : i32
    return %arg0, %c0_i32 : i32, i32
  }
  func.func @transform_1(%arg0: i32) -> (i32, i32) {
    %c0_i32 = arith.constant 0 : i32
    %c0_i32_0 = arith.constant 0 : i32
    %c0_i32_1 = arith.constant 0 : i32
    return %c0_i32, %c0_i32_0 : i32, i32
  }
  func.func @transform_2(%arg0: i32) -> (i32, i32) {
    %c0_i32 = arith.constant 0 : i32
    %c0_i32_0 = arith.constant 0 : i32
    %c0_i32_1 = arith.constant 0 : i32
    return %c0_i32, %c0_i32_0 : i32, i32
  }
  func.func @transform_3(%arg0: i32) -> (i32, i32) {
    %c0_i32 = arith.constant 0 : i32
    %c0_i32_0 = arith.constant 0 : i32
    return %arg0, %c0_i32 : i32, i32
  }
}

module attributes {stable_mosaic.version = 11 : i64} {
  func.func @_fused_tail_kernel(%arg0: i32, %arg1: i32, %arg2: memref<1x6x72x128xbf16, #tpu.memory_space<vmem>>, %arg3: memref<1x6x72x128xbf16, #tpu.memory_space<vmem>>, %arg4: memref<9x128x128xbf16, #tpu.memory_space<vmem>>, %arg5: memref<1x128xf32, #tpu.memory_space<vmem>>, %arg6: memref<128x128xbf16, #tpu.memory_space<vmem>>, %arg7: memref<1x128xf32, #tpu.memory_space<vmem>>, %arg8: memref<9x128x128xbf16, #tpu.memory_space<vmem>>, %arg9: memref<1x128xf32, #tpu.memory_space<vmem>>, %arg10: memref<1x32x128xbf16, #tpu.memory_space<vmem>>, %arg11: memref<32x128xf32, #tpu.memory_space<vmem>>, %arg12: memref<32x128xf32, #tpu.memory_space<vmem>>) attributes {dimension_semantics = [#tpu.dimension_semantics<parallel>, #tpu.dimension_semantics<parallel>], iteration_bounds = array<i64: 2, 2>, scalar_prefetch = 0 : i64, scratch_operands = 2 : i64, tpu.core_type = #tpu.core_type<tc>, window_params = [{transform_indices = @transform_0, window_bounds = array<i64: 1, 6, 72, 128>}, {transform_indices = @transform_1, window_bounds = array<i64: 1, 6, 72, 128>}, {pipeline_mode = #tpu.pipeline_mode<synchronous>, transform_indices = @transform_2, window_bounds = array<i64: 9, 128, 128>}, {pipeline_mode = #tpu.pipeline_mode<synchronous>, transform_indices = @transform_3, window_bounds = array<i64: 1, 128>}, {pipeline_mode = #tpu.pipeline_mode<synchronous>, transform_indices = @transform_4, window_bounds = array<i64: 128, 128>}, {pipeline_mode = #tpu.pipeline_mode<synchronous>, transform_indices = @transform_5, window_bounds = array<i64: 1, 128>}, {pipeline_mode = #tpu.pipeline_mode<synchronous>, transform_indices = @transform_6, window_bounds = array<i64: 9, 128, 128>}, {pipeline_mode = #tpu.pipeline_mode<synchronous>, transform_indices = @transform_7, window_bounds = array<i64: 1, 128>}, {transform_indices = @transform_8, window_bounds = array<i64: 1, 32, 128>}]} {
    %c32_i32 = arith.constant 32 : i32
    %0 = arith.muli %arg1, %c32_i32 : i32
    %1 = tpu.assume_multiple %0, 32 : i32
    %c0_i32 = arith.constant 0 : i32
    %2 = arith.addi %1, %c0_i32 : i32
    %c0_i32_0 = arith.constant 0 : i32
    %c0_i32_1 = arith.constant 0 : i32
    %c0_i32_2 = arith.constant 0 : i32
    %c0_i32_3 = arith.constant 0 : i32
    %3 = tpu.memref_slice %arg2[%c0_i32_0, %c0_i32_1, %c0_i32_2, %c0_i32_3] : memref<1x6x72x128xbf16, #tpu.memory_space<vmem>> -> memref<1x1x72x128xbf16, #tpu.memory_space<vmem>>
    %4 = tpu.memref_squeeze %3 : memref<1x1x72x128xbf16, #tpu.memory_space<vmem>> -> memref<72x128xbf16, #tpu.memory_space<vmem>>
    %5 = arith.index_cast %2 : i32 to index
    %c0 = arith.constant 0 : index
    %6 = vector.load %4[%5, %c0] : memref<72x128xbf16, #tpu.memory_space<vmem>>, vector<32x128xbf16>
    %c0_4 = arith.constant 0 : index
    %c0_5 = arith.constant 0 : index
    %c0_6 = arith.constant 0 : index
    %7 = vector.load %arg4[%c0_4, %c0_5, %c0_6] : memref<9x128x128xbf16, #tpu.memory_space<vmem>>, vector<1x128x128xbf16>
    %8 = vector.shape_cast %7 : vector<1x128x128xbf16> to vector<128x128xbf16>
    %cst = arith.constant dense<0.000000e+00> : vector<32x128xf32>
    %9 = tpu.matmul %6, %8, %cst {dimension_numbers = #tpu.dot_dimension_numbers<[1], [0], [0], [1], [0, 0, 1, 1], [], []>} : vector<32x128xbf16>, vector<128x128xbf16>, vector<32x128xf32> -> vector<32x128xf32>
    %c0_7 = arith.constant 0 : index
    %c0_8 = arith.constant 0 : index
    %10 = vector.load %arg11[%c0_7, %c0_8] : memref<32x128xf32, #tpu.memory_space<vmem>>, vector<32x128xf32>
    tpu.vector_store %arg11[%c0_7, %c0_8], %9 {strides = array<i32>} : memref<32x128xf32, #tpu.memory_space<vmem>>, vector<32x128xf32>,
    %c0_i32_9 = arith.constant 0 : i32
    %11 = arith.addi %1, %c0_i32_9 : i32
    %c0_i32_10 = arith.constant 0 : i32
    %c1_i32 = arith.constant 1 : i32
    %c0_i32_11 = arith.constant 0 : i32
    %c0_i32_12 = arith.constant 0 : i32
    %12 = tpu.memref_slice %arg2[%c0_i32_10, %c1_i32, %c0_i32_11, %c0_i32_12] : memref<1x6x72x128xbf16, #tpu.memory_space<vmem>> -> memref<1x1x72x128xbf16, #tpu.memory_space<vmem>>
    %13 = tpu.memref_squeeze %12 : memref<1x1x72x128xbf16, #tpu.memory_space<vmem>> -> memref<72x128xbf16, #tpu.memory_space<vmem>>
    %14 = arith.index_cast %11 : i32 to index
    %c0_13 = arith.constant 0 : index
    %15 = vector.load %13[%14, %c0_13] : memref<72x128xbf16, #tpu.memory_space<vmem>>, vector<32x128xbf16>
    %c1 = arith.constant 1 : index
    %c0_14 = arith.constant 0 : index
    %c0_15 = arith.constant 0 : index
    %16 = vector.load %arg4[%c1, %c0_14, %c0_15] : memref<9x128x128xbf16, #tpu.memory_space<vmem>>, vector<1x128x128xbf16>
    %17 = vector.shape_cast %16 : vector<1x128x128xbf16> to vector<128x128xbf16>
    %cst_16 = arith.constant dense<0.000000e+00> : vector<32x128xf32>
    %18 = tpu.matmul %15, %17, %cst_16 {dimension_numbers = #tpu.dot_dimension_numbers<[1], [0], [0], [1], [0, 0, 1, 1], [], []>} : vector<32x128xbf16>, vector<128x128xbf16>, vector<32x128xf32> -> vector<32x128xf32>
    %c0_17 = arith.constant 0 : index
    %c0_18 = arith.constant 0 : index
    %19 = vector.load %arg11[%c0_17, %c0_18] : memref<32x128xf32, #tpu.memory_space<vmem>>, vector<32x128xf32>
    %20 = arith.addf %19, %18 : vector<32x128xf32>
    %c0_19 = arith.constant 0 : index
    %c0_20 = arith.constant 0 : index
    %21 = vector.load %arg11[%c0_19, %c0_20] : memref<32x128xf32, #tpu.memory_space<vmem>>, vector<32x128xf32>
    tpu.vector_store %arg11[%c0_19, %c0_20], %20 {strides = array<i32>} : memref<32x128xf32, #tpu.memory_space<vmem>>, vector<32x128xf32>,
    %c0_i32_21 = arith.constant 0 : i32
    %22 = arith.addi %1, %c0_i32_21 : i32
    %c0_i32_22 = arith.constant 0 : i32
    %c2_i32 = arith.constant 2 : i32
    %c0_i32_23 = arith.constant 0 : i32
    %c0_i32_24 = arith.constant 0 : i32
    %23 = tpu.memref_slice %arg2[%c0_i32_22, %c2_i32, %c0_i32_23, %c0_i32_24] : memref<1x6x72x128xbf16, #tpu.memory_space<vmem>> -> memref<1x1x72x128xbf16, #tpu.memory_space<vmem>>
    %24 = tpu.memref_squeeze %23 : memref<1x1x72x128xbf16, #tpu.memory_space<vmem>> -> memref<72x128xbf16, #tpu.memory_space<vmem>>
    %25 = arith.index_cast %22 : i32 to index
    %c0_25 = arith.constant 0 : index
    %26 = vector.load %24[%25, %c0_25] : memref<72x128xbf16, #tpu.memory_space<vmem>>, vector<32x128xbf16>
    %c2 = arith.constant 2 : index
    %c0_26 = arith.constant 0 : index
    %c0_27 = arith.constant 0 : index
    %27 = vector.load %arg4[%c2, %c0_26, %c0_27] : memref<9x128x128xbf16, #tpu.memory_space<vmem>>, vector<1x128x128xbf16>
    %28 = vector.shape_cast %27 : vector<1x128x128xbf16> to vector<128x128xbf16>
    %cst_28 = arith.constant dense<0.000000e+00> : vector<32x128xf32>
    %29 = tpu.matmul %26, %28, %cst_28 {dimension_numbers = #tpu.dot_dimension_numbers<[1], [0], [0], [1], [0, 0, 1, 1], [], []>} : vector<32x128xbf16>, vector<128x128xbf16>, vector<32x128xf32> -> vector<32x128xf32>
    %c0_29 = arith.constant 0 : index
    %c0_30 = arith.constant 0 : index
    %30 = vector.load %arg11[%c0_29, %c0_30] : memref<32x128xf32, #tpu.memory_space<vmem>>, vector<32x128xf32>
    %31 = arith.addf %30, %29 : vector<32x128xf32>
    %c0_31 = arith.constant 0 : index
    %c0_32 = arith.constant 0 : index
    %32 = vector.load %arg11[%c0_31, %c0_32] : memref<32x128xf32, #tpu.memory_space<vmem>>, vector<32x128xf32>
    tpu.vector_store %arg11[%c0_31, %c0_32], %31 {strides = array<i32>} : memref<32x128xf32, #tpu.memory_space<vmem>>, vector<32x128xf32>,
    %c0_i32_33 = arith.constant 0 : i32
    %33 = arith.addi %1, %c0_i32_33 : i32
    %c0_i32_34 = arith.constant 0 : i32
    %c3_i32 = arith.constant 3 : i32
    %c0_i32_35 = arith.constant 0 : i32
    %c0_i32_36 = arith.constant 0 : i32
    %34 = tpu.memref_slice %arg2[%c0_i32_34, %c3_i32, %c0_i32_35, %c0_i32_36] : memref<1x6x72x128xbf16, #tpu.memory_space<vmem>> -> memref<1x1x72x128xbf16, #tpu.memory_space<vmem>>
    %35 = tpu.memref_squeeze %34 : memref<1x1x72x128xbf16, #tpu.memory_space<vmem>> -> memref<72x128xbf16, #tpu.memory_space<vmem>>
    %36 = arith.index_cast %33 : i32 to index
    %c0_37 = arith.constant 0 : index
    %37 = vector.load %35[%36, %c0_37] : memref<72x128xbf16, #tpu.memory_space<vmem>>, vector<32x128xbf16>
    %c3 = arith.constant 3 : index
    %c0_38 = arith.constant 0 : index
    %c0_39 = arith.constant 0 : index
    %38 = vector.load %arg4[%c3, %c0_38, %c0_39] : memref<9x128x128xbf16, #tpu.memory_space<vmem>>, vector<1x128x128xbf16>
    %39 = vector.shape_cast %38 : vector<1x128x128xbf16> to vector<128x128xbf16>
    %cst_40 = arith.constant dense<0.000000e+00> : vector<32x128xf32>
    %40 = tpu.matmul %37, %39, %cst_40 {dimension_numbers = #tpu.dot_dimension_numbers<[1], [0], [0], [1], [0, 0, 1, 1], [], []>} : vector<32x128xbf16>, vector<128x128xbf16>, vector<32x128xf32> -> vector<32x128xf32>
    %c0_41 = arith.constant 0 : index
    %c0_42 = arith.constant 0 : index
    %41 = vector.load %arg11[%c0_41, %c0_42] : memref<32x128xf32, #tpu.memory_space<vmem>>, vector<32x128xf32>
    %42 = arith.addf %41, %40 : vector<32x128xf32>
    %c0_43 = arith.constant 0 : index
    %c0_44 = arith.constant 0 : index
    %43 = vector.load %arg11[%c0_43, %c0_44] : memref<32x128xf32, #tpu.memory_space<vmem>>, vector<32x128xf32>
    tpu.vector_store %arg11[%c0_43, %c0_44], %42 {strides = array<i32>} : memref<32x128xf32, #tpu.memory_space<vmem>>, vector<32x128xf32>,
    %c0_i32_45 = arith.constant 0 : i32
    %44 = arith.addi %1, %c0_i32_45 : i32
    %c0_i32_46 = arith.constant 0 : i32
    %c4_i32 = arith.constant 4 : i32
    %c0_i32_47 = arith.constant 0 : i32
    %c0_i32_48 = arith.constant 0 : i32
    %45 = tpu.memref_slice %arg2[%c0_i32_46, %c4_i32, %c0_i32_47, %c0_i32_48] : memref<1x6x72x128xbf16, #tpu.memory_space<vmem>> -> memref<1x1x72x128xbf16, #tpu.memory_space<vmem>>
    %46 = tpu.memref_squeeze %45 : memref<1x1x72x128xbf16, #tpu.memory_space<vmem>> -> memref<72x128xbf16, #tpu.memory_space<vmem>>
    %47 = arith.index_cast %44 : i32 to index
    %c0_49 = arith.constant 0 : index
    %48 = vector.load %46[%47, %c0_49] : memref<72x128xbf16, #tpu.memory_space<vmem>>, vector<32x128xbf16>
    %c4 = arith.constant 4 : index
    %c0_50 = arith.constant 0 : index
    %c0_51 = arith.constant 0 : index
    %49 = vector.load %arg4[%c4, %c0_50, %c0_51] : memref<9x128x128xbf16, #tpu.memory_space<vmem>>, vector<1x128x128xbf16>
    %50 = vector.shape_cast %49 : vector<1x128x128xbf16> to vector<128x128xbf16>
    %cst_52 = arith.constant dense<0.000000e+00> : vector<32x128xf32>
    %51 = tpu.matmul %48, %50, %cst_52 {dimension_numbers = #tpu.dot_dimension_numbers<[1], [0], [0], [1], [0, 0, 1, 1], [], []>} : vector<32x128xbf16>, vector<128x128xbf16>, vector<32x128xf32> -> vector<32x128xf32>
    %c0_53 = arith.constant 0 : index
    %c0_54 = arith.constant 0 : index
    %52 = vector.load %arg11[%c0_53, %c0_54] : memref<32x128xf32, #tpu.memory_space<vmem>>, vector<32x128xf32>
    %53 = arith.addf %52, %51 : vector<32x128xf32>
    %c0_55 = arith.constant 0 : index
    %c0_56 = arith.constant 0 : index
    %54 = vector.load %arg11[%c0_55, %c0_56] : memref<32x128xf32, #tpu.memory_space<vmem>>, vector<32x128xf32>
    tpu.vector_store %arg11[%c0_55, %c0_56], %53 {strides = array<i32>} : memref<32x128xf32, #tpu.memory_space<vmem>>, vector<32x128xf32>,
    %c0_i32_57 = arith.constant 0 : i32
    %55 = arith.addi %1, %c0_i32_57 : i32
    %c0_i32_58 = arith.constant 0 : i32
    %c5_i32 = arith.constant 5 : i32
    %c0_i32_59 = arith.constant 0 : i32
    %c0_i32_60 = arith.constant 0 : i32
    %56 = tpu.memref_slice %arg2[%c0_i32_58, %c5_i32, %c0_i32_59, %c0_i32_60] : memref<1x6x72x128xbf16, #tpu.memory_space<vmem>> -> memref<1x1x72x128xbf16, #tpu.memory_space<vmem>>
    %57 = tpu.memref_squeeze %56 : memref<1x1x72x128xbf16, #tpu.memory_space<vmem>> -> memref<72x128xbf16, #tpu.memory_space<vmem>>
    %58 = arith.index_cast %55 : i32 to index
    %c0_61 = arith.constant 0 : index
    %59 = vector.load %57[%58, %c0_61] : memref<72x128xbf16, #tpu.memory_space<vmem>>, vector<32x128xbf16>
    %c5 = arith.constant 5 : index
    %c0_62 = arith.constant 0 : index
    %c0_63 = arith.constant 0 : index
    %60 = vector.load %arg4[%c5, %c0_62, %c0_63] : memref<9x128x128xbf16, #tpu.memory_space<vmem>>, vector<1x128x128xbf16>
    %61 = vector.shape_cast %60 : vector<1x128x128xbf16> to vector<128x128xbf16>
    %cst_64 = arith.constant dense<0.000000e+00> : vector<32x128xf32>
    %62 = tpu.matmul %59, %61, %cst_64 {dimension_numbers = #tpu.dot_dimension_numbers<[1], [0], [0], [1], [0, 0, 1, 1], [], []>} : vector<32x128xbf16>, vector<128x128xbf16>, vector<32x128xf32> -> vector<32x128xf32>
    %c0_65 = arith.constant 0 : index
    %c0_66 = arith.constant 0 : index
    %63 = vector.load %arg11[%c0_65, %c0_66] : memref<32x128xf32, #tpu.memory_space<vmem>>, vector<32x128xf32>
    %64 = arith.addf %63, %62 : vector<32x128xf32>
    %c0_67 = arith.constant 0 : index
    %c0_68 = arith.constant 0 : index
    %65 = vector.load %arg11[%c0_67, %c0_68] : memref<32x128xf32, #tpu.memory_space<vmem>>, vector<32x128xf32>
    tpu.vector_store %arg11[%c0_67, %c0_68], %64 {strides = array<i32>} : memref<32x128xf32, #tpu.memory_space<vmem>>, vector<32x128xf32>,
    %c8_i32 = arith.constant 8 : i32
    %66 = arith.addi %1, %c8_i32 : i32
    %c0_i32_69 = arith.constant 0 : i32
    %c0_i32_70 = arith.constant 0 : i32
    %c0_i32_71 = arith.constant 0 : i32
    %c0_i32_72 = arith.constant 0 : i32
    %67 = tpu.memref_slice %arg2[%c0_i32_69, %c0_i32_70, %c0_i32_71, %c0_i32_72] : memref<1x6x72x128xbf16, #tpu.memory_space<vmem>> -> memref<1x1x72x128xbf16, #tpu.memory_space<vmem>>
    %68 = tpu.memref_squeeze %67 : memref<1x1x72x128xbf16, #tpu.memory_space<vmem>> -> memref<72x128xbf16, #tpu.memory_space<vmem>>
    %69 = arith.index_cast %66 : i32 to index
    %c0_73 = arith.constant 0 : index
    %70 = vector.load %68[%69, %c0_73] : memref<72x128xbf16, #tpu.memory_space<vmem>>, vector<32x128xbf16>
    %c6 = arith.constant 6 : index
    %c0_74 = arith.constant 0 : index
    %c0_75 = arith.constant 0 : index
    %71 = vector.load %arg4[%c6, %c0_74, %c0_75] : memref<9x128x128xbf16, #tpu.memory_space<vmem>>, vector<1x128x128xbf16>
    %72 = vector.shape_cast %71 : vector<1x128x128xbf16> to vector<128x128xbf16>
    %cst_76 = arith.constant dense<0.000000e+00> : vector<32x128xf32>
    %73 = tpu.matmul %70, %72, %cst_76 {dimension_numbers = #tpu.dot_dimension_numbers<[1], [0], [0], [1], [0, 0, 1, 1], [], []>} : vector<32x128xbf16>, vector<128x128xbf16>, vector<32x128xf32> -> vector<32x128xf32>
    %c0_77 = arith.constant 0 : index
    %c0_78 = arith.constant 0 : index
    %74 = vector.load %arg11[%c0_77, %c0_78] : memref<32x128xf32, #tpu.memory_space<vmem>>, vector<32x128xf32>
    %75 = arith.addf %74, %73 : vector<32x128xf32>
    %c0_79 = arith.constant 0 : index
    %c0_80 = arith.constant 0 : index
    %76 = vector.load %arg11[%c0_79, %c0_80] : memref<32x128xf32, #tpu.memory_space<vmem>>, vector<32x128xf32>
    tpu.vector_store %arg11[%c0_79, %c0_80], %75 {strides = array<i32>} : memref<32x128xf32, #tpu.memory_space<vmem>>, vector<32x128xf32>,
    %c8_i32_81 = arith.constant 8 : i32
    %77 = arith.addi %1, %c8_i32_81 : i32
    %c0_i32_82 = arith.constant 0 : i32
    %c1_i32_83 = arith.constant 1 : i32
    %c0_i32_84 = arith.constant 0 : i32
    %c0_i32_85 = arith.constant 0 : i32
    %78 = tpu.memref_slice %arg2[%c0_i32_82, %c1_i32_83, %c0_i32_84, %c0_i32_85] : memref<1x6x72x128xbf16, #tpu.memory_space<vmem>> -> memref<1x1x72x128xbf16, #tpu.memory_space<vmem>>
    %79 = tpu.memref_squeeze %78 : memref<1x1x72x128xbf16, #tpu.memory_space<vmem>> -> memref<72x128xbf16, #tpu.memory_space<vmem>>
    %80 = arith.index_cast %77 : i32 to index
    %c0_86 = arith.constant 0 : index
    %81 = vector.load %79[%80, %c0_86] : memref<72x128xbf16, #tpu.memory_space<vmem>>, vector<32x128xbf16>
    %c7 = arith.constant 7 : index
    %c0_87 = arith.constant 0 : index
    %c0_88 = arith.constant 0 : index
    %82 = vector.load %arg4[%c7, %c0_87, %c0_88] : memref<9x128x128xbf16, #tpu.memory_space<vmem>>, vector<1x128x128xbf16>
    %83 = vector.shape_cast %82 : vector<1x128x128xbf16> to vector<128x128xbf16>
    %cst_89 = arith.constant dense<0.000000e+00> : vector<32x128xf32>
    %84 = tpu.matmul %81, %83, %cst_89 {dimension_numbers = #tpu.dot_dimension_numbers<[1], [0], [0], [1], [0, 0, 1, 1], [], []>} : vector<32x128xbf16>, vector<128x128xbf16>, vector<32x128xf32> -> vector<32x128xf32>
    %c0_90 = arith.constant 0 : index
    %c0_91 = arith.constant 0 : index
    %85 = vector.load %arg11[%c0_90, %c0_91] : memref<32x128xf32, #tpu.memory_space<vmem>>, vector<32x128xf32>
    %86 = arith.addf %85, %84 : vector<32x128xf32>
    %c0_92 = arith.constant 0 : index
    %c0_93 = arith.constant 0 : index
    %87 = vector.load %arg11[%c0_92, %c0_93] : memref<32x128xf32, #tpu.memory_space<vmem>>, vector<32x128xf32>
    tpu.vector_store %arg11[%c0_92, %c0_93], %86 {strides = array<i32>} : memref<32x128xf32, #tpu.memory_space<vmem>>, vector<32x128xf32>,
    %c8_i32_94 = arith.constant 8 : i32
    %88 = arith.addi %1, %c8_i32_94 : i32
    %c0_i32_95 = arith.constant 0 : i32
    %c2_i32_96 = arith.constant 2 : i32
    %c0_i32_97 = arith.constant 0 : i32
    %c0_i32_98 = arith.constant 0 : i32
    %89 = tpu.memref_slice %arg2[%c0_i32_95, %c2_i32_96, %c0_i32_97, %c0_i32_98] : memref<1x6x72x128xbf16, #tpu.memory_space<vmem>> -> memref<1x1x72x128xbf16, #tpu.memory_space<vmem>>
    %90 = tpu.memref_squeeze %89 : memref<1x1x72x128xbf16, #tpu.memory_space<vmem>> -> memref<72x128xbf16, #tpu.memory_space<vmem>>
    %91 = arith.index_cast %88 : i32 to index
    %c0_99 = arith.constant 0 : index
    %92 = vector.load %90[%91, %c0_99] : memref<72x128xbf16, #tpu.memory_space<vmem>>, vector<32x128xbf16>
    %c8 = arith.constant 8 : index
    %c0_100 = arith.constant 0 : index
    %c0_101 = arith.constant 0 : index
    %93 = vector.load %arg4[%c8, %c0_100, %c0_101] : memref<9x128x128xbf16, #tpu.memory_space<vmem>>, vector<1x128x128xbf16>
    %94 = vector.shape_cast %93 : vector<1x128x128xbf16> to vector<128x128xbf16>
    %cst_102 = arith.constant dense<0.000000e+00> : vector<32x128xf32>
    %95 = tpu.matmul %92, %94, %cst_102 {dimension_numbers = #tpu.dot_dimension_numbers<[1], [0], [0], [1], [0, 0, 1, 1], [], []>} : vector<32x128xbf16>, vector<128x128xbf16>, vector<32x128xf32> -> vector<32x128xf32>
    %c0_103 = arith.constant 0 : index
    %c0_104 = arith.constant 0 : index
    %96 = vector.load %arg11[%c0_103, %c0_104] : memref<32x128xf32, #tpu.memory_space<vmem>>, vector<32x128xf32>
    %97 = arith.addf %96, %95 : vector<32x128xf32>
    %c0_105 = arith.constant 0 : index
    %c0_106 = arith.constant 0 : index
    %98 = vector.load %arg11[%c0_105, %c0_106] : memref<32x128xf32, #tpu.memory_space<vmem>>, vector<32x128xf32>
    tpu.vector_store %arg11[%c0_105, %c0_106], %97 {strides = array<i32>} : memref<32x128xf32, #tpu.memory_space<vmem>>, vector<32x128xf32>,
    %c0_107 = arith.constant 0 : index
    %c0_108 = arith.constant 0 : index
    %99 = vector.load %arg11[%c0_107, %c0_108] : memref<32x128xf32, #tpu.memory_space<vmem>>, vector<32x128xf32>
    %c0_109 = arith.constant 0 : index
    %c0_110 = arith.constant 0 : index
    %100 = vector.load %arg5[%c0_109, %c0_110] : memref<1x128xf32, #tpu.memory_space<vmem>>, vector<1x128xf32>
    %101 = vector.broadcast %100 : vector<1x128xf32> to vector<32x128xf32>
    %102 = arith.addf %99, %101 : vector<32x128xf32>
    %cst_111 = arith.constant 0.000000e+00 : f32
    %103 = vector.broadcast %cst_111 : f32 to vector<32x128xf32>
    %104 = arith.maximumf %102, %103 : vector<32x128xf32>
    %105 = arith.truncf %104 : vector<32x128xf32> to vector<32x128xbf16>
    %c0_112 = arith.constant 0 : index
    %c0_113 = arith.constant 0 : index
    %106 = vector.load %arg6[%c0_112, %c0_113] : memref<128x128xbf16, #tpu.memory_space<vmem>>, vector<128x128xbf16>
    %cst_114 = arith.constant dense<0.000000e+00> : vector<32x128xf32>
    %107 = tpu.matmul %105, %106, %cst_114 {dimension_numbers = #tpu.dot_dimension_numbers<[1], [0], [0], [1], [0, 0, 1, 1], [], []>} : vector<32x128xbf16>, vector<128x128xbf16>, vector<32x128xf32> -> vector<32x128xf32>
    %c0_115 = arith.constant 0 : index
    %c0_116 = arith.constant 0 : index
    %108 = vector.load %arg7[%c0_115, %c0_116] : memref<1x128xf32, #tpu.memory_space<vmem>>, vector<1x128xf32>
    %109 = vector.broadcast %108 : vector<1x128xf32> to vector<32x128xf32>
    %110 = arith.addf %107, %109 : vector<32x128xf32>
    %c0_117 = arith.constant 0 : index
    %c0_118 = arith.constant 0 : index
    %111 = vector.load %arg9[%c0_117, %c0_118] : memref<1x128xf32, #tpu.memory_space<vmem>>, vector<1x128xf32>
    %112 = vector.broadcast %111 : vector<1x128xf32> to vector<32x128xf32>
    %113 = arith.addf %110, %112 : vector<32x128xf32>
    %c0_119 = arith.constant 0 : index
    %c0_120 = arith.constant 0 : index
    %114 = vector.load %arg12[%c0_119, %c0_120] : memref<32x128xf32, #tpu.memory_space<vmem>>, vector<32x128xf32>
    tpu.vector_store %arg12[%c0_119, %c0_120], %113 {strides = array<i32>} : memref<32x128xf32, #tpu.memory_space<vmem>>, vector<32x128xf32>,
    %c0_i32_121 = arith.constant 0 : i32
    %115 = arith.addi %1, %c0_i32_121 : i32
    %c0_i32_122 = arith.constant 0 : i32
    %c0_i32_123 = arith.constant 0 : i32
    %c0_i32_124 = arith.constant 0 : i32
    %c0_i32_125 = arith.constant 0 : i32
    %116 = tpu.memref_slice %arg3[%c0_i32_122, %c0_i32_123, %c0_i32_124, %c0_i32_125] : memref<1x6x72x128xbf16, #tpu.memory_space<vmem>> -> memref<1x1x72x128xbf16, #tpu.memory_space<vmem>>
    %117 = tpu.memref_squeeze %116 : memref<1x1x72x128xbf16, #tpu.memory_space<vmem>> -> memref<72x128xbf16, #tpu.memory_space<vmem>>
    %118 = arith.index_cast %115 : i32 to index
    %c0_126 = arith.constant 0 : index
    %119 = vector.load %117[%118, %c0_126] : memref<72x128xbf16, #tpu.memory_space<vmem>>, vector<32x128xbf16>
    %c0_127 = arith.constant 0 : index
    %c0_128 = arith.constant 0 : index
    %120 = vector.load %arg12[%c0_127, %c0_128] : memref<32x128xf32, #tpu.memory_space<vmem>>, vector<32x128xf32>
    %c0_129 = arith.constant 0 : index
    %c0_130 = arith.constant 0 : index
    %c0_131 = arith.constant 0 : index
    %121 = vector.load %arg8[%c0_129, %c0_130, %c0_131] : memref<9x128x128xbf16, #tpu.memory_space<vmem>>, vector<1x128x128xbf16>
    %122 = vector.shape_cast %121 : vector<1x128x128xbf16> to vector<128x128xbf16>
    %cst_132 = arith.constant dense<0.000000e+00> : vector<32x128xf32>
    %123 = tpu.matmul %119, %122, %cst_132 {dimension_numbers = #tpu.dot_dimension_numbers<[1], [0], [0], [1], [0, 0, 1, 1], [], []>} : vector<32x128xbf16>, vector<128x128xbf16>, vector<32x128xf32> -> vector<32x128xf32>
    %124 = arith.addf %120, %123 : vector<32x128xf32>
    %c0_133 = arith.constant 0 : index
    %c0_134 = arith.constant 0 : index
    %125 = vector.load %arg12[%c0_133, %c0_134] : memref<32x128xf32, #tpu.memory_space<vmem>>, vector<32x128xf32>
    tpu.vector_store %arg12[%c0_133, %c0_134], %124 {strides = array<i32>} : memref<32x128xf32, #tpu.memory_space<vmem>>, vector<32x128xf32>,
    %c0_i32_135 = arith.constant 0 : i32
    %126 = arith.addi %1, %c0_i32_135 : i32
    %c0_i32_136 = arith.constant 0 : i32
    %c1_i32_137 = arith.constant 1 : i32
    %c0_i32_138 = arith.constant 0 : i32
    %c0_i32_139 = arith.constant 0 : i32
    %127 = tpu.memref_slice %arg3[%c0_i32_136, %c1_i32_137, %c0_i32_138, %c0_i32_139] : memref<1x6x72x128xbf16, #tpu.memory_space<vmem>> -> memref<1x1x72x128xbf16, #tpu.memory_space<vmem>>
    %128 = tpu.memref_squeeze %127 : memref<1x1x72x128xbf16, #tpu.memory_space<vmem>> -> memref<72x128xbf16, #tpu.memory_space<vmem>>
    %129 = arith.index_cast %126 : i32 to index
    %c0_140 = arith.constant 0 : index
    %130 = vector.load %128[%129, %c0_140] : memref<72x128xbf16, #tpu.memory_space<vmem>>, vector<32x128xbf16>
    %c0_141 = arith.constant 0 : index
    %c0_142 = arith.constant 0 : index
    %131 = vector.load %arg12[%c0_141, %c0_142] : memref<32x128xf32, #tpu.memory_space<vmem>>, vector<32x128xf32>
    %c1_143 = arith.constant 1 : index
    %c0_144 = arith.constant 0 : index
    %c0_145 = arith.constant 0 : index
    %132 = vector.load %arg8[%c1_143, %c0_144, %c0_145] : memref<9x128x128xbf16, #tpu.memory_space<vmem>>, vector<1x128x128xbf16>
    %133 = vector.shape_cast %132 : vector<1x128x128xbf16> to vector<128x128xbf16>
    %cst_146 = arith.constant dense<0.000000e+00> : vector<32x128xf32>
    %134 = tpu.matmul %130, %133, %cst_146 {dimension_numbers = #tpu.dot_dimension_numbers<[1], [0], [0], [1], [0, 0, 1, 1], [], []>} : vector<32x128xbf16>, vector<128x128xbf16>, vector<32x128xf32> -> vector<32x128xf32>
    %135 = arith.addf %131, %134 : vector<32x128xf32>
    %c0_147 = arith.constant 0 : index
    %c0_148 = arith.constant 0 : index
    %136 = vector.load %arg12[%c0_147, %c0_148] : memref<32x128xf32, #tpu.memory_space<vmem>>, vector<32x128xf32>
    tpu.vector_store %arg12[%c0_147, %c0_148], %135 {strides = array<i32>} : memref<32x128xf32, #tpu.memory_space<vmem>>, vector<32x128xf32>,
    %c0_i32_149 = arith.constant 0 : i32
    %137 = arith.addi %1, %c0_i32_149 : i32
    %c0_i32_150 = arith.constant 0 : i32
    %c2_i32_151 = arith.constant 2 : i32
    %c0_i32_152 = arith.constant 0 : i32
    %c0_i32_153 = arith.constant 0 : i32
    %138 = tpu.memref_slice %arg3[%c0_i32_150, %c2_i32_151, %c0_i32_152, %c0_i32_153] : memref<1x6x72x128xbf16, #tpu.memory_space<vmem>> -> memref<1x1x72x128xbf16, #tpu.memory_space<vmem>>
    %139 = tpu.memref_squeeze %138 : memref<1x1x72x128xbf16, #tpu.memory_space<vmem>> -> memref<72x128xbf16, #tpu.memory_space<vmem>>
    %140 = arith.index_cast %137 : i32 to index
    %c0_154 = arith.constant 0 : index
    %141 = vector.load %139[%140, %c0_154] : memref<72x128xbf16, #tpu.memory_space<vmem>>, vector<32x128xbf16>
    %c0_155 = arith.constant 0 : index
    %c0_156 = arith.constant 0 : index
    %142 = vector.load %arg12[%c0_155, %c0_156] : memref<32x128xf32, #tpu.memory_space<vmem>>, vector<32x128xf32>
    %c2_157 = arith.constant 2 : index
    %c0_158 = arith.constant 0 : index
    %c0_159 = arith.constant 0 : index
    %143 = vector.load %arg8[%c2_157, %c0_158, %c0_159] : memref<9x128x128xbf16, #tpu.memory_space<vmem>>, vector<1x128x128xbf16>
    %144 = vector.shape_cast %143 : vector<1x128x128xbf16> to vector<128x128xbf16>
    %cst_160 = arith.constant dense<0.000000e+00> : vector<32x128xf32>
    %145 = tpu.matmul %141, %144, %cst_160 {dimension_numbers = #tpu.dot_dimension_numbers<[1], [0], [0], [1], [0, 0, 1, 1], [], []>} : vector<32x128xbf16>, vector<128x128xbf16>, vector<32x128xf32> -> vector<32x128xf32>
    %146 = arith.addf %142, %145 : vector<32x128xf32>
    %c0_161 = arith.constant 0 : index
    %c0_162 = arith.constant 0 : index
    %147 = vector.load %arg12[%c0_161, %c0_162] : memref<32x128xf32, #tpu.memory_space<vmem>>, vector<32x128xf32>
    tpu.vector_store %arg12[%c0_161, %c0_162], %146 {strides = array<i32>} : memref<32x128xf32, #tpu.memory_space<vmem>>, vector<32x128xf32>,
    %c0_i32_163 = arith.constant 0 : i32
    %148 = arith.addi %1, %c0_i32_163 : i32
    %c0_i32_164 = arith.constant 0 : i32
    %c3_i32_165 = arith.constant 3 : i32
    %c0_i32_166 = arith.constant 0 : i32
    %c0_i32_167 = arith.constant 0 : i32
    %149 = tpu.memref_slice %arg3[%c0_i32_164, %c3_i32_165, %c0_i32_166, %c0_i32_167] : memref<1x6x72x128xbf16, #tpu.memory_space<vmem>> -> memref<1x1x72x128xbf16, #tpu.memory_space<vmem>>
    %150 = tpu.memref_squeeze %149 : memref<1x1x72x128xbf16, #tpu.memory_space<vmem>> -> memref<72x128xbf16, #tpu.memory_space<vmem>>
    %151 = arith.index_cast %148 : i32 to index
    %c0_168 = arith.constant 0 : index
    %152 = vector.load %150[%151, %c0_168] : memref<72x128xbf16, #tpu.memory_space<vmem>>, vector<32x128xbf16>
    %c0_169 = arith.constant 0 : index
    %c0_170 = arith.constant 0 : index
    %153 = vector.load %arg12[%c0_169, %c0_170] : memref<32x128xf32, #tpu.memory_space<vmem>>, vector<32x128xf32>
    %c3_171 = arith.constant 3 : index
    %c0_172 = arith.constant 0 : index
    %c0_173 = arith.constant 0 : index
    %154 = vector.load %arg8[%c3_171, %c0_172, %c0_173] : memref<9x128x128xbf16, #tpu.memory_space<vmem>>, vector<1x128x128xbf16>
    %155 = vector.shape_cast %154 : vector<1x128x128xbf16> to vector<128x128xbf16>
    %cst_174 = arith.constant dense<0.000000e+00> : vector<32x128xf32>
    %156 = tpu.matmul %152, %155, %cst_174 {dimension_numbers = #tpu.dot_dimension_numbers<[1], [0], [0], [1], [0, 0, 1, 1], [], []>} : vector<32x128xbf16>, vector<128x128xbf16>, vector<32x128xf32> -> vector<32x128xf32>
    %157 = arith.addf %153, %156 : vector<32x128xf32>
    %c0_175 = arith.constant 0 : index
    %c0_176 = arith.constant 0 : index
    %158 = vector.load %arg12[%c0_175, %c0_176] : memref<32x128xf32, #tpu.memory_space<vmem>>, vector<32x128xf32>
    tpu.vector_store %arg12[%c0_175, %c0_176], %157 {strides = array<i32>} : memref<32x128xf32, #tpu.memory_space<vmem>>, vector<32x128xf32>,
    %c0_i32_177 = arith.constant 0 : i32
    %159 = arith.addi %1, %c0_i32_177 : i32
    %c0_i32_178 = arith.constant 0 : i32
    %c4_i32_179 = arith.constant 4 : i32
    %c0_i32_180 = arith.constant 0 : i32
    %c0_i32_181 = arith.constant 0 : i32
    %160 = tpu.memref_slice %arg3[%c0_i32_178, %c4_i32_179, %c0_i32_180, %c0_i32_181] : memref<1x6x72x128xbf16, #tpu.memory_space<vmem>> -> memref<1x1x72x128xbf16, #tpu.memory_space<vmem>>
    %161 = tpu.memref_squeeze %160 : memref<1x1x72x128xbf16, #tpu.memory_space<vmem>> -> memref<72x128xbf16, #tpu.memory_space<vmem>>
    %162 = arith.index_cast %159 : i32 to index
    %c0_182 = arith.constant 0 : index
    %163 = vector.load %161[%162, %c0_182] : memref<72x128xbf16, #tpu.memory_space<vmem>>, vector<32x128xbf16>
    %c0_183 = arith.constant 0 : index
    %c0_184 = arith.constant 0 : index
    %164 = vector.load %arg12[%c0_183, %c0_184] : memref<32x128xf32, #tpu.memory_space<vmem>>, vector<32x128xf32>
    %c4_185 = arith.constant 4 : index
    %c0_186 = arith.constant 0 : index
    %c0_187 = arith.constant 0 : index
    %165 = vector.load %arg8[%c4_185, %c0_186, %c0_187] : memref<9x128x128xbf16, #tpu.memory_space<vmem>>, vector<1x128x128xbf16>
    %166 = vector.shape_cast %165 : vector<1x128x128xbf16> to vector<128x128xbf16>
    %cst_188 = arith.constant dense<0.000000e+00> : vector<32x128xf32>
    %167 = tpu.matmul %163, %166, %cst_188 {dimension_numbers = #tpu.dot_dimension_numbers<[1], [0], [0], [1], [0, 0, 1, 1], [], []>} : vector<32x128xbf16>, vector<128x128xbf16>, vector<32x128xf32> -> vector<32x128xf32>
    %168 = arith.addf %164, %167 : vector<32x128xf32>
    %c0_189 = arith.constant 0 : index
    %c0_190 = arith.constant 0 : index
    %169 = vector.load %arg12[%c0_189, %c0_190] : memref<32x128xf32, #tpu.memory_space<vmem>>, vector<32x128xf32>
    tpu.vector_store %arg12[%c0_189, %c0_190], %168 {strides = array<i32>} : memref<32x128xf32, #tpu.memory_space<vmem>>, vector<32x128xf32>,
    %c0_i32_191 = arith.constant 0 : i32
    %170 = arith.addi %1, %c0_i32_191 : i32
    %c0_i32_192 = arith.constant 0 : i32
    %c5_i32_193 = arith.constant 5 : i32
    %c0_i32_194 = arith.constant 0 : i32
    %c0_i32_195 = arith.constant 0 : i32
    %171 = tpu.memref_slice %arg3[%c0_i32_192, %c5_i32_193, %c0_i32_194, %c0_i32_195] : memref<1x6x72x128xbf16, #tpu.memory_space<vmem>> -> memref<1x1x72x128xbf16, #tpu.memory_space<vmem>>
    %172 = tpu.memref_squeeze %171 : memref<1x1x72x128xbf16, #tpu.memory_space<vmem>> -> memref<72x128xbf16, #tpu.memory_space<vmem>>
    %173 = arith.index_cast %170 : i32 to index
    %c0_196 = arith.constant 0 : index
    %174 = vector.load %172[%173, %c0_196] : memref<72x128xbf16, #tpu.memory_space<vmem>>, vector<32x128xbf16>
    %c0_197 = arith.constant 0 : index
    %c0_198 = arith.constant 0 : index
    %175 = vector.load %arg12[%c0_197, %c0_198] : memref<32x128xf32, #tpu.memory_space<vmem>>, vector<32x128xf32>
    %c5_199 = arith.constant 5 : index
    %c0_200 = arith.constant 0 : index
    %c0_201 = arith.constant 0 : index
    %176 = vector.load %arg8[%c5_199, %c0_200, %c0_201] : memref<9x128x128xbf16, #tpu.memory_space<vmem>>, vector<1x128x128xbf16>
    %177 = vector.shape_cast %176 : vector<1x128x128xbf16> to vector<128x128xbf16>
    %cst_202 = arith.constant dense<0.000000e+00> : vector<32x128xf32>
    %178 = tpu.matmul %174, %177, %cst_202 {dimension_numbers = #tpu.dot_dimension_numbers<[1], [0], [0], [1], [0, 0, 1, 1], [], []>} : vector<32x128xbf16>, vector<128x128xbf16>, vector<32x128xf32> -> vector<32x128xf32>
    %179 = arith.addf %175, %178 : vector<32x128xf32>
    %c0_203 = arith.constant 0 : index
    %c0_204 = arith.constant 0 : index
    %180 = vector.load %arg12[%c0_203, %c0_204] : memref<32x128xf32, #tpu.memory_space<vmem>>, vector<32x128xf32>
    tpu.vector_store %arg12[%c0_203, %c0_204], %179 {strides = array<i32>} : memref<32x128xf32, #tpu.memory_space<vmem>>, vector<32x128xf32>,
    %c8_i32_205 = arith.constant 8 : i32
    %181 = arith.addi %1, %c8_i32_205 : i32
    %c0_i32_206 = arith.constant 0 : i32
    %c0_i32_207 = arith.constant 0 : i32
    %c0_i32_208 = arith.constant 0 : i32
    %c0_i32_209 = arith.constant 0 : i32
    %182 = tpu.memref_slice %arg3[%c0_i32_206, %c0_i32_207, %c0_i32_208, %c0_i32_209] : memref<1x6x72x128xbf16, #tpu.memory_space<vmem>> -> memref<1x1x72x128xbf16, #tpu.memory_space<vmem>>
    %183 = tpu.memref_squeeze %182 : memref<1x1x72x128xbf16, #tpu.memory_space<vmem>> -> memref<72x128xbf16, #tpu.memory_space<vmem>>
    %184 = arith.index_cast %181 : i32 to index
    %c0_210 = arith.constant 0 : index
    %185 = vector.load %183[%184, %c0_210] : memref<72x128xbf16, #tpu.memory_space<vmem>>, vector<32x128xbf16>
    %c0_211 = arith.constant 0 : index
    %c0_212 = arith.constant 0 : index
    %186 = vector.load %arg12[%c0_211, %c0_212] : memref<32x128xf32, #tpu.memory_space<vmem>>, vector<32x128xf32>
    %c6_213 = arith.constant 6 : index
    %c0_214 = arith.constant 0 : index
    %c0_215 = arith.constant 0 : index
    %187 = vector.load %arg8[%c6_213, %c0_214, %c0_215] : memref<9x128x128xbf16, #tpu.memory_space<vmem>>, vector<1x128x128xbf16>
    %188 = vector.shape_cast %187 : vector<1x128x128xbf16> to vector<128x128xbf16>
    %cst_216 = arith.constant dense<0.000000e+00> : vector<32x128xf32>
    %189 = tpu.matmul %185, %188, %cst_216 {dimension_numbers = #tpu.dot_dimension_numbers<[1], [0], [0], [1], [0, 0, 1, 1], [], []>} : vector<32x128xbf16>, vector<128x128xbf16>, vector<32x128xf32> -> vector<32x128xf32>
    %190 = arith.addf %186, %189 : vector<32x128xf32>
    %c0_217 = arith.constant 0 : index
    %c0_218 = arith.constant 0 : index
    %191 = vector.load %arg12[%c0_217, %c0_218] : memref<32x128xf32, #tpu.memory_space<vmem>>, vector<32x128xf32>
    tpu.vector_store %arg12[%c0_217, %c0_218], %190 {strides = array<i32>} : memref<32x128xf32, #tpu.memory_space<vmem>>, vector<32x128xf32>,
    %c8_i32_219 = arith.constant 8 : i32
    %192 = arith.addi %1, %c8_i32_219 : i32
    %c0_i32_220 = arith.constant 0 : i32
    %c1_i32_221 = arith.constant 1 : i32
    %c0_i32_222 = arith.constant 0 : i32
    %c0_i32_223 = arith.constant 0 : i32
    %193 = tpu.memref_slice %arg3[%c0_i32_220, %c1_i32_221, %c0_i32_222, %c0_i32_223] : memref<1x6x72x128xbf16, #tpu.memory_space<vmem>> -> memref<1x1x72x128xbf16, #tpu.memory_space<vmem>>
    %194 = tpu.memref_squeeze %193 : memref<1x1x72x128xbf16, #tpu.memory_space<vmem>> -> memref<72x128xbf16, #tpu.memory_space<vmem>>
    %195 = arith.index_cast %192 : i32 to index
    %c0_224 = arith.constant 0 : index
    %196 = vector.load %194[%195, %c0_224] : memref<72x128xbf16, #tpu.memory_space<vmem>>, vector<32x128xbf16>
    %c0_225 = arith.constant 0 : index
    %c0_226 = arith.constant 0 : index
    %197 = vector.load %arg12[%c0_225, %c0_226] : memref<32x128xf32, #tpu.memory_space<vmem>>, vector<32x128xf32>
    %c7_227 = arith.constant 7 : index
    %c0_228 = arith.constant 0 : index
    %c0_229 = arith.constant 0 : index
    %198 = vector.load %arg8[%c7_227, %c0_228, %c0_229] : memref<9x128x128xbf16, #tpu.memory_space<vmem>>, vector<1x128x128xbf16>
    %199 = vector.shape_cast %198 : vector<1x128x128xbf16> to vector<128x128xbf16>
    %cst_230 = arith.constant dense<0.000000e+00> : vector<32x128xf32>
    %200 = tpu.matmul %196, %199, %cst_230 {dimension_numbers = #tpu.dot_dimension_numbers<[1], [0], [0], [1], [0, 0, 1, 1], [], []>} : vector<32x128xbf16>, vector<128x128xbf16>, vector<32x128xf32> -> vector<32x128xf32>
    %201 = arith.addf %197, %200 : vector<32x128xf32>
    %c0_231 = arith.constant 0 : index
    %c0_232 = arith.constant 0 : index
    %202 = vector.load %arg12[%c0_231, %c0_232] : memref<32x128xf32, #tpu.memory_space<vmem>>, vector<32x128xf32>
    tpu.vector_store %arg12[%c0_231, %c0_232], %201 {strides = array<i32>} : memref<32x128xf32, #tpu.memory_space<vmem>>, vector<32x128xf32>,
    %c8_i32_233 = arith.constant 8 : i32
    %203 = arith.addi %1, %c8_i32_233 : i32
    %c0_i32_234 = arith.constant 0 : i32
    %c2_i32_235 = arith.constant 2 : i32
    %c0_i32_236 = arith.constant 0 : i32
    %c0_i32_237 = arith.constant 0 : i32
    %204 = tpu.memref_slice %arg3[%c0_i32_234, %c2_i32_235, %c0_i32_236, %c0_i32_237] : memref<1x6x72x128xbf16, #tpu.memory_space<vmem>> -> memref<1x1x72x128xbf16, #tpu.memory_space<vmem>>
    %205 = tpu.memref_squeeze %204 : memref<1x1x72x128xbf16, #tpu.memory_space<vmem>> -> memref<72x128xbf16, #tpu.memory_space<vmem>>
    %206 = arith.index_cast %203 : i32 to index
    %c0_238 = arith.constant 0 : index
    %207 = vector.load %205[%206, %c0_238] : memref<72x128xbf16, #tpu.memory_space<vmem>>, vector<32x128xbf16>
    %c0_239 = arith.constant 0 : index
    %c0_240 = arith.constant 0 : index
    %208 = vector.load %arg12[%c0_239, %c0_240] : memref<32x128xf32, #tpu.memory_space<vmem>>, vector<32x128xf32>
    %c8_241 = arith.constant 8 : index
    %c0_242 = arith.constant 0 : index
    %c0_243 = arith.constant 0 : index
    %209 = vector.load %arg8[%c8_241, %c0_242, %c0_243] : memref<9x128x128xbf16, #tpu.memory_space<vmem>>, vector<1x128x128xbf16>
    %210 = vector.shape_cast %209 : vector<1x128x128xbf16> to vector<128x128xbf16>
    %cst_244 = arith.constant dense<0.000000e+00> : vector<32x128xf32>
    %211 = tpu.matmul %207, %210, %cst_244 {dimension_numbers = #tpu.dot_dimension_numbers<[1], [0], [0], [1], [0, 0, 1, 1], [], []>} : vector<32x128xbf16>, vector<128x128xbf16>, vector<32x128xf32> -> vector<32x128xf32>
    %212 = arith.addf %208, %211 : vector<32x128xf32>
    %c0_245 = arith.constant 0 : index
    %c0_246 = arith.constant 0 : index
    %213 = vector.load %arg12[%c0_245, %c0_246] : memref<32x128xf32, #tpu.memory_space<vmem>>, vector<32x128xf32>
    tpu.vector_store %arg12[%c0_245, %c0_246], %212 {strides = array<i32>} : memref<32x128xf32, #tpu.memory_space<vmem>>, vector<32x128xf32>,
    %c0_247 = arith.constant 0 : index
    %c0_248 = arith.constant 0 : index
    %214 = vector.load %arg12[%c0_247, %c0_248] : memref<32x128xf32, #tpu.memory_space<vmem>>, vector<32x128xf32>
    %cst_249 = arith.constant 0.000000e+00 : f32
    %215 = vector.broadcast %cst_249 : f32 to vector<32x128xf32>
    %216 = arith.maximumf %214, %215 : vector<32x128xf32>
    %217 = arith.truncf %216 : vector<32x128xf32> to vector<32x128xbf16>
    %c0_250 = arith.constant 0 : index
    %c0_251 = arith.constant 0 : index
    %c0_252 = arith.constant 0 : index
    %218 = vector.load %arg10[%c0_250, %c0_251, %c0_252] : memref<1x32x128xbf16, #tpu.memory_space<vmem>>, vector<1x32x128xbf16>
    %219 = vector.shape_cast %218 : vector<1x32x128xbf16> to vector<32x128xbf16>
    %220 = vector.shape_cast %217 : vector<32x128xbf16> to vector<1x32x128xbf16>
    tpu.vector_store %arg10[%c0_250, %c0_251, %c0_252], %220 {strides = array<i32>} : memref<1x32x128xbf16, #tpu.memory_space<vmem>>, vector<1x32x128xbf16>,
    return
  }
  func.func @transform_0(%arg0: i32, %arg1: i32) -> (i32, i32, i32, i32) {
    %c0_i32 = arith.constant 0 : i32
    %c0_i32_0 = arith.constant 0 : i32
    %c0_i32_1 = arith.constant 0 : i32
    %c0_i32_2 = arith.constant 0 : i32
    return %arg0, %c0_i32, %c0_i32_0, %c0_i32_1 : i32, i32, i32, i32
  }
  func.func @transform_1(%arg0: i32, %arg1: i32) -> (i32, i32, i32, i32) {
    %c0_i32 = arith.constant 0 : i32
    %c0_i32_0 = arith.constant 0 : i32
    %c0_i32_1 = arith.constant 0 : i32
    %c0_i32_2 = arith.constant 0 : i32
    return %arg0, %c0_i32, %c0_i32_0, %c0_i32_1 : i32, i32, i32, i32
  }
  func.func @transform_2(%arg0: i32, %arg1: i32) -> (i32, i32, i32) {
    %c0_i32 = arith.constant 0 : i32
    %c0_i32_0 = arith.constant 0 : i32
    %c0_i32_1 = arith.constant 0 : i32
    %c0_i32_2 = arith.constant 0 : i32
    return %c0_i32, %c0_i32_0, %c0_i32_1 : i32, i32, i32
  }
  func.func @transform_3(%arg0: i32, %arg1: i32) -> (i32, i32) {
    %c0_i32 = arith.constant 0 : i32
    %c0_i32_0 = arith.constant 0 : i32
    %c0_i32_1 = arith.constant 0 : i32
    return %c0_i32, %c0_i32_0 : i32, i32
  }
  func.func @transform_4(%arg0: i32, %arg1: i32) -> (i32, i32) {
    %c0_i32 = arith.constant 0 : i32
    %c0_i32_0 = arith.constant 0 : i32
    %c0_i32_1 = arith.constant 0 : i32
    return %c0_i32, %c0_i32_0 : i32, i32
  }
  func.func @transform_5(%arg0: i32, %arg1: i32) -> (i32, i32) {
    %c0_i32 = arith.constant 0 : i32
    %c0_i32_0 = arith.constant 0 : i32
    %c0_i32_1 = arith.constant 0 : i32
    return %c0_i32, %c0_i32_0 : i32, i32
  }
  func.func @transform_6(%arg0: i32, %arg1: i32) -> (i32, i32, i32) {
    %c0_i32 = arith.constant 0 : i32
    %c0_i32_0 = arith.constant 0 : i32
    %c0_i32_1 = arith.constant 0 : i32
    %c0_i32_2 = arith.constant 0 : i32
    return %c0_i32, %c0_i32_0, %c0_i32_1 : i32, i32, i32
  }
  func.func @transform_7(%arg0: i32, %arg1: i32) -> (i32, i32) {
    %c0_i32 = arith.constant 0 : i32
    %c0_i32_0 = arith.constant 0 : i32
    %c0_i32_1 = arith.constant 0 : i32
    return %c0_i32, %c0_i32_0 : i32, i32
  }
  func.func @transform_8(%arg0: i32, %arg1: i32) -> (i32, i32, i32) {
    %c0_i32 = arith.constant 0 : i32
    %c0_i32_0 = arith.constant 0 : i32
    return %arg0, %arg1, %c0_i32 : i32, i32, i32
  }
}

</mosaic_0001>

<llo_original>
// kernel: _lambda_.2
$region0: #{_lambda_.2}
  #allocation0 [shape = 'u32[]', space=smem, size = 0x4, offset = 0x4, fixed_abs, tag = 'smem constant byte address 0x4 - core index']
  #allocation1 [shape = 'u32[72,128]{1,0:T(1,128)}', space=vmem, size = 0x9000, scoped, tag = 'internal scratch']
  %s0 = inlined_call_operand.vmem [shape: bf16[512,128], index: 0, kind: input, shape index: {}]
  %s1 = inlined_call_operand.vmem [shape: bf16[128,128], index: 1, kind: input, shape index: {}]
  %s2 = inlined_call_operand.vmem [shape: f32[1,128], index: 2, kind: input, shape index: {}]
  %s3 = inlined_call_operand.vmem [shape: bf16[512,128], index: 3, kind: output, shape index: {}]
  %s4 = sld [smem:[#allocation0]]
  $region45: #{_lambda_.2} parent=0
    _
  %s6 = ssub.s32 1, %s4
  %s7 = scalar_select 0, %s6, %s4
  loop: start=0, step=1, limit=6
  $region2: #{_lambda_.2} parent=0 // loop_pre_header
    _
  $region3: #{_lambda_.2} parent=0 // loop_header
    %s9 = sphi 0, %s13
    %p10 = scmp.ge.s32.totalorder %s9, 6
    %s19 = sphi 0, %s21
    %s22 = sphi 0, %s19
    %s23 = sphi 0, %s22
    %s39 = sphi 0, %s23
    %s43 = sphi 0, %s43
    %s45 = sphi 0, %s43
    %s46 = sphi 0, %s45
    %s60 = sphi 0, %s46
    %s64 = sphi 0, %s64
    %s66 = sphi 0, %s64
    %s67 = sphi 0, %s66
    %s81 = sphi 0, %s67
    %s87 = sphi 0, %s89
    %s90 = sphi 0, %s87
    %s91 = sphi 0, %s90
    %s107 = sphi 0, %s91
  $region4: #{_lambda_.2} parent=0 // loop_header_branch
    %12 = sbr.rel (%p10) target = $region8
  $region5: #{_lambda_.2} parent=0 // loop_body
    %s14 = ssub.s32 %s9, 1
    %s15 = ssub.s32 %s9, 2
    %s16 = sadd.s32 %s9, 1
    %s17 = ssub.s32 %s9, %s16
    %p18 = scmp.eq.s32.totalorder %s17, 0
    %s20 = sadd.s32 %s19, 1
    %s21 = scalar_select %p18, %s19, %s20
    %p24 = pneg %p18
    %p25 = scmp.eq.s32.totalorder %s9, 3
    %p26 = por %p24, %p25
    %p27 = scmp.ne.s32.totalorder %s19, %s22
    %p28 = scmp.eq.s32.totalorder %s9, 0
    %p29 = por %p27, %p28
    %p30 = scmp.ne.s32.totalorder %s19, %s22
    %p31 = scmp.eq.s32.totalorder %s14, 3
    %p32 = por %p30, %p31
    %p33 = scmp.ne.s32.totalorder %s22, %s23
    %p34 = scmp.eq.s32.totalorder %s14, 0
    %p35 = por %p33, %p34
    %p36 = scmp.ne.s32.totalorder %s22, %s23
    %p37 = scmp.eq.s32.totalorder %s15, 3
    %p38 = por %p36, %p37
    %p40 = scmp.ne.s32.totalorder %s23, %s39
    %p41 = scmp.eq.s32.totalorder %s15, 0
    %p42 = por %p40, %p41
    %s44 = sadd.s32 %s43, 1
    %p47 = scmp.eq.s32.totalorder %s9, 3
    %p48 = scmp.ne.s32.totalorder %s43, %s45
    %p49 = scmp.eq.s32.totalorder %s9, 0
    %p50 = por %p48, %p49
    %p51 = scmp.ne.s32.totalorder %s43, %s45
    %p52 = scmp.eq.s32.totalorder %s14, 3
    %p53 = por %p51, %p52
    %p54 = scmp.ne.s32.totalorder %s45, %s46
    %p55 = scmp.eq.s32.totalorder %s14, 0
    %p56 = por %p54, %p55
    %p57 = scmp.ne.s32.totalorder %s45, %s46
    %p58 = scmp.eq.s32.totalorder %s15, 3
    %p59 = por %p57, %p58
    %p61 = scmp.ne.s32.totalorder %s46, %s60
    %p62 = scmp.eq.s32.totalorder %s15, 0
    %p63 = por %p61, %p62
    %s65 = sadd.s32 %s64, 1
    %p68 = scmp.eq.s32.totalorder %s9, 3
    %p69 = scmp.ne.s32.totalorder %s64, %s66
    %p70 = scmp.eq.s32.totalorder %s9, 0
    %p71 = por %p69, %p70
    %p72 = scmp.ne.s32.totalorder %s64, %s66
    %p73 = scmp.eq.s32.totalorder %s14, 3
    %p74 = por %p72, %p73
    %p75 = scmp.ne.s32.totalorder %s66, %s67
    %p76 = scmp.eq.s32.totalorder %s14, 0
    %p77 = por %p75, %p76
    %p78 = scmp.ne.s32.totalorder %s66, %s67
    %p79 = scmp.eq.s32.totalorder %s15, 3
    %p80 = por %p78, %p79
    %p82 = scmp.ne.s32.totalorder %s67, %s81
    %p83 = scmp.eq.s32.totalorder %s15, 0
    %p84 = por %p82, %p83
    %s85 = ssub.s32 %s9, %s16
    %p86 = scmp.eq.s32.totalorder %s85, 0
    %s88 = sadd.s32 %s87, 1
    %s89 = scalar_select %p86, %s87, %s88
    %p92 = pneg %p86
    %p93 = scmp.eq.s32.totalorder %s9, 3
    %p94 = por %p92, %p93
    %p95 = scmp.ne.s32.totalorder %s87, %s90
    %p96 = scmp.eq.s32.totalorder %s9, 0
    %p97 = por %p95, %p96
    %p98 = scmp.ne.s32.totalorder %s87, %s90
    %p99 = scmp.eq.s32.totalorder %s14, 3
    %p100 = por %p98, %p99
    %p101 = scmp.ne.s32.totalorder %s90, %s91
    %p102 = scmp.eq.s32.totalorder %s14, 0
    %p103 = por %p101, %p102
    %p104 = scmp.ne.s32.totalorder %s90, %s91
    %p105 = scmp.eq.s32.totalorder %s15, 3
    %p106 = por %p104, %p105
    %p108 = scmp.ne.s32.totalorder %s91, %s107
    %p109 = scmp.eq.s32.totalorder %s15, 0
    %p110 = por %p108, %p109
    %p111 = scmp.le.s32.totalorder 1, %s9
    %p112 = scmp.lt.s32.totalorder %s9, 5
    %p113 = pnand %p111, %p112
    %p114 = pneg %p113
    // Predicated region
    $region9: #{_lambda_.2} parent=5 // pred_check
      _
    $region10: #{_lambda_.2} parent=5 // pred_check_branch
      %116 = sbr.rel (%p113) target = $region12
    $region11: #{_lambda_.2} parent=5 // pred_region
      %s117 = ssub.s32 %s9, 1
      // Predicated region
      $region13: #{_lambda_.2} parent=11 // pred_check
        %p118 = pneg %p56
      $region14: #{_lambda_.2} parent=11 // pred_check_branch
        %120 = sbr.rel (%p118) target = $region16
      $region15: #{_lambda_.2} parent=11 // pred_region
        _
      $region16: #{_lambda_.2} parent=11 // pred_fallthru
        _
      // Predicated region
      $region17: #{_lambda_.2} parent=11 // pred_check
        %p121 = pneg %p77
      $region18: #{_lambda_.2} parent=11 // pred_check_branch
        %123 = sbr.rel (%p121) target = $region20
      $region19: #{_lambda_.2} parent=11 // pred_region
        _
      $region20: #{_lambda_.2} parent=11 // pred_fallthru
        _
    $region12: #{_lambda_.2} parent=5 // pred_fallthru
      _
    %p124 = scmp.lt.s32.totalorder %s9, 4
    // Predicated region
    $region21: #{_lambda_.2} parent=5 // pred_check
      %p125 = pneg %p124
    $region22: #{_lambda_.2} parent=5 // pred_check_branch
      %127 = sbr.rel (%p125) target = $region24
    $region23: #{_lambda_.2} parent=5 // pred_region
      // Predicated region
      $region25: #{_lambda_.2} parent=23 // pred_check
        %p128 = pneg %p29
      $region26: #{_lambda_.2} parent=23 // pred_check_branch
        %130 = sbr.rel (%p128) target = $region28
      $region27: #{_lambda_.2} parent=23 // pred_region
        %s131 = smul.u32 16, %s9
        %p132 = scmp.lt.s32.totalorder %s131, 63
        %s133 = scalar_select %p132, %s131, 63
        %s134 = smul.addr %s133, 4
        %s135 = scalar_lea.vmem %s0, %s134
        %s136 = smul.u32 16, %s9
      $region28: #{_lambda_.2} parent=23 // pred_fallthru
        _
    $region24: #{_lambda_.2} parent=5 // pred_fallthru
      _
    %p137 = scmp.le.s32.totalorder 1, %s9
    %p138 = scmp.lt.s32.totalorder %s9, 5
    %p139 = pnand %p137, %p138
    %p140 = pneg %p139
    // Predicated region
    $region29: #{_lambda_.2} parent=5 // pred_check
      _
    $region30: #{_lambda_.2} parent=5 // pred_check_branch
      %142 = sbr.rel (%p139) target = $region32
    $region31: #{_lambda_.2} parent=5 // pred_region
      %s143 = ssub.s32 %s9, 1
      %s144 = smul.u32 16, %s14
      %p145 = scmp.lt.s32.totalorder %s144, 63
      %s146 = scalar_select %p145, %s144, 63
      %s147 = smul.addr %s146, 4
      %s148 = scalar_lea.vmem %s0, %s147
      %p149 = pneg %p35
      %p150 = pneg %p32
      %p151 = pneg %p56
      %p152 = pneg %p53
      %p153 = pneg %p77
      %p154 = pneg %p74
      %p155 = pneg %p103
      %p156 = pneg %p100
      %s157 = smul.u32 16, %s14
      %p158 = scmp.lt.s32.totalorder %s157, 63
      %s159 = scalar_select %p158, %s157, 63
      %s160 = smul.addr %s159, 4
      %s161 = scalar_lea.vmem %s3, %s160
      %s162 = smul.u32 16, %s14
      %p163 = scmp.lt.s32.totalorder %s162, 63
      %s164 = scalar_select %p163, %s162, 63
      %s165 = smul.addr %s164, 4
      %s166 = scalar_lea.vmem %s0, %s165
      %s167 = smul.u32 16, %s14
      %s168 = smul.u32 16, %s14
      %p169 = scmp.lt.s32.totalorder %s168, 63
      %s170 = scalar_select %p169, %s168, 63
      %s171 = smul.addr %s170, 4
      %s172 = scalar_lea.vmem %s3, %s171
      %s173 = smul.u32 16, %s14
      %v174 = vld [vmem:[%s166] sm:$0xf]
      %v175 = vld [vmem:[%s166 + $0x4] sm:$0xf]
      %v176 = vld [vmem:[%s166 + $0x8] sm:$0xf]
      %v177 = vld [vmem:[%s166 + $0xc] sm:$0xf]
      %v178 = vld [vmem:[%s166 + $0x10] sm:$0xf]
      %v179 = vld [vmem:[%s166 + $0x14] sm:$0xf]
      %v180 = vld [vmem:[%s166 + $0x18] sm:$0xf]
      %v181 = vld [vmem:[%s166 + $0x1c] sm:$0xf]
      %v182 = vld [vmem:[%s166 + $0x20] sm:$0xf]
      %v183 = vld [vmem:[%s166 + $0x24] sm:$0xf]
      %v184 = vld [vmem:[%s166 + $0x28] sm:$0xf]
      %v185 = vld [vmem:[%s166 + $0x2c] sm:$0xf]
      %v186 = vld [vmem:[%s166 + $0x30] sm:$0xf]
      %v187 = vld [vmem:[%s166 + $0x34] sm:$0xf]
      %v188 = vld [vmem:[%s166 + $0x38] sm:$0xf]
      %v189 = vld [vmem:[%s166 + $0x3c] sm:$0xf]
      %v190 = vld [vmem:[%s1] sm:$0xf]
      %v191 = vld [vmem:[%s1 + $0x4] sm:$0xf]
      %v192 = vld [vmem:[%s1 + $0x8] sm:$0xf]
      %v193 = vld [vmem:[%s1 + $0xc] sm:$0xf]
      %v194 = vld [vmem:[%s1 + $0x10] sm:$0xf]
      %v195 = vld [vmem:[%s1 + $0x14] sm:$0xf]
      %v196 = vld [vmem:[%s1 + $0x18] sm:$0xf]
      %v197 = vld [vmem:[%s1 + $0x1c] sm:$0xf]
      %v198 = vld [vmem:[%s1 + $0x20] sm:$0xf]
      %v199 = vld [vmem:[%s1 + $0x24] sm:$0xf]
      %v200 = vld [vmem:[%s1 + $0x28] sm:$0xf]
      %v201 = vld [vmem:[%s1 + $0x2c] sm:$0xf]
      %v202 = vld [vmem:[%s1 + $0x30] sm:$0xf]
      %v203 = vld [vmem:[%s1 + $0x34] sm:$0xf]
      %v204 = vld [vmem:[%s1 + $0x38] sm:$0xf]
      %v205 = vld [vmem:[%s1 + $0x3c] sm:$0xf]
      %v206 = vld [vmem:[%s2] sm:$0x1]
      %v208 = vperm.slane %v206, 0
      %v226 = vunpack.c.l.b16 %v174
      %v227 = vunpack.c.l.b16 %v175
      %v228 = vunpack.c.l.b16 %v176
      %v229 = vunpack.c.l.b16 %v177
      %v230 = vunpack.c.l.b16 %v178
      %v231 = vunpack.c.l.b16 %v179
      %v232 = vunpack.c.l.b16 %v180
      %v233 = vunpack.c.l.b16 %v181
      %v234 = vunpack.c.l.b16 %v182
      %v235 = vunpack.c.l.b16 %v183
      %v236 = vunpack.c.l.b16 %v184
      %v237 = vunpack.c.l.b16 %v185
      %v238 = vunpack.c.l.b16 %v186
      %v239 = vunpack.c.l.b16 %v187
      %v240 = vunpack.c.l.b16 %v188
      %v241 = vunpack.c.l.b16 %v189
      %v242 = vpack.c.b16 %v227, %v226
      %v243 = vpack.c.b16 %v229, %v228
      %v244 = vpack.c.b16 %v231, %v230
      %v245 = vpack.c.b16 %v233, %v232
      %v246 = vpack.c.b16 %v235, %v234
      %v247 = vpack.c.b16 %v237, %v236
      %v248 = vpack.c.b16 %v239, %v238
      %v249 = vpack.c.b16 %v241, %v240
      %v274 = vunpack.c.l.b16 %v190
      %v275 = vunpack.c.l.b16 %v191
      %v276 = vunpack.c.l.b16 %v192
      %v277 = vunpack.c.l.b16 %v193
      %v278 = vunpack.c.l.b16 %v194
      %v279 = vunpack.c.l.b16 %v195
      %v280 = vunpack.c.l.b16 %v196
      %v281 = vunpack.c.l.b16 %v197
      %v282 = vunpack.c.l.b16 %v198
      %v283 = vunpack.c.l.b16 %v199
      %v284 = vunpack.c.l.b16 %v200
      %v285 = vunpack.c.l.b16 %v201
      %v286 = vunpack.c.l.b16 %v202
      %v287 = vunpack.c.l.b16 %v203
      %v288 = vunpack.c.l.b16 %v204
      %v289 = vunpack.c.l.b16 %v205
      %v290 = vpack.c.b16 %v275, %v274
      %v291 = vpack.c.b16 %v277, %v276
      %v292 = vpack.c.b16 %v279, %v278
      %v293 = vpack.c.b16 %v281, %v280
      %v294 = vpack.c.b16 %v283, %v282
      %v295 = vpack.c.b16 %v285, %v284
      %v296 = vpack.c.b16 %v287, %v286
      %v297 = vpack.c.b16 %v289, %v288
      %306 = vmatpush.bf16.msra.mxu0 %v297
      %307 = vmatpush.bf16.msra.mxu0 %v296
      %308 = vmatpush.bf16.msra.mxu0 %v295
      %309 = vmatpush.bf16.msra.mxu0 %v294
      %310 = vmatpush.bf16.msra.mxu0 %v293
      %311 = vmatpush.bf16.msra.mxu0 %v292
      %312 = vmatpush.bf16.msra.mxu0 %v291
      %313 = vmatpush.bf16.msra.mxu0 %v290
      %314 = vmatmul.bf16.gmra.mxu0 %v242
      %v315 = vpop.f32.mrf.mxu0
      %v316 = vadd.f32 %v208, %v315
      %v317 = vpop.f32.mrf.mxu0
      %v318 = vadd.f32 %v208, %v317
      %319 = vmatmul.bf16.gmra.mxu0 %v243
      %v320 = vpop.f32.mrf.mxu0
      %v321 = vadd.f32 %v208, %v320
      %v322 = vpop.f32.mrf.mxu0
      %v323 = vadd.f32 %v208, %v322
      %324 = vmatmul.bf16.gmra.mxu0 %v244
      %v325 = vpop.f32.mrf.mxu0
      %v326 = vadd.f32 %v208, %v325
      %v327 = vpop.f32.mrf.mxu0
      %v328 = vadd.f32 %v208, %v327
      %329 = vmatmul.bf16.gmra.mxu0 %v245
      %v330 = vpop.f32.mrf.mxu0
      %v331 = vadd.f32 %v208, %v330
      %v332 = vpop.f32.mrf.mxu0
      %v333 = vadd.f32 %v208, %v332
      %334 = vmatmul.bf16.gmra.mxu0 %v246
      %v335 = vpop.f32.mrf.mxu0
      %v336 = vadd.f32 %v208, %v335
      %v337 = vpop.f32.mrf.mxu0
      %v338 = vadd.f32 %v208, %v337
      %339 = vmatmul.bf16.gmra.mxu0 %v247
      %v340 = vpop.f32.mrf.mxu0
      %v341 = vadd.f32 %v208, %v340
      %v342 = vpop.f32.mrf.mxu0
      %v343 = vadd.f32 %v208, %v342
      %344 = vmatmul.bf16.gmra.mxu0 %v248
      %v345 = vpop.f32.mrf.mxu0
      %v346 = vadd.f32 %v208, %v345
      %v347 = vpop.f32.mrf.mxu0
      %v348 = vadd.f32 %v208, %v347
      %349 = vmatmul.bf16.gmra.mxu0 %v249
      %v350 = vpop.f32.mrf.mxu0
      %v351 = vadd.f32 %v208, %v350
      %v352 = vpop.f32.mrf.mxu0
      %v353 = vadd.f32 %v208, %v352
      %354 = vdwg.mxu0
      %v355 = vmax.f32 %v316, 0.0
      %v356 = vmax.f32 %v318, 0.0
      %v357 = vmax.f32 %v321, 0.0
      %v358 = vmax.f32 %v323, 0.0
      %v359 = vmax.f32 %v326, 0.0
      %v360 = vmax.f32 %v328, 0.0
      %v361 = vmax.f32 %v331, 0.0
      %v362 = vmax.f32 %v333, 0.0
      %v363 = vmax.f32 %v336, 0.0
      %v364 = vmax.f32 %v338, 0.0
      %v365 = vmax.f32 %v341, 0.0
      %v366 = vmax.f32 %v343, 0.0
      %v367 = vmax.f32 %v346, 0.0
      %v368 = vmax.f32 %v348, 0.0
      %v369 = vmax.f32 %v351, 0.0
      %v370 = vmax.f32 %v353, 0.0
      %v371 = vpack.c.bf16 %v355, %v355
      %v372 = vpack.c.bf16 %v356, %v356
      %v373 = vpack.c.bf16 %v357, %v357
      %v374 = vpack.c.bf16 %v358, %v358
      %v375 = vpack.c.bf16 %v359, %v359
      %v376 = vpack.c.bf16 %v360, %v360
      %v377 = vpack.c.bf16 %v361, %v361
      %v378 = vpack.c.bf16 %v362, %v362
      %v379 = vpack.c.bf16 %v363, %v363
      %v380 = vpack.c.bf16 %v364, %v364
      %v381 = vpack.c.bf16 %v365, %v365
      %v382 = vpack.c.bf16 %v366, %v366
      %v383 = vpack.c.bf16 %v367, %v367
      %v384 = vpack.c.bf16 %v368, %v368
      %v385 = vpack.c.bf16 %v369, %v369
      %v386 = vpack.c.bf16 %v370, %v370
      %387 = vst [vmem:[%s172] sm:$0xf] %v371
      %388 = vst [vmem:[%s172 + $0x4] sm:$0xf] %v372
      %389 = vst [vmem:[%s172 + $0x8] sm:$0xf] %v373
      %390 = vst [vmem:[%s172 + $0xc] sm:$0xf] %v374
      %391 = vst [vmem:[%s172 + $0x10] sm:$0xf] %v375
      %392 = vst [vmem:[%s172 + $0x14] sm:$0xf] %v376
      %393 = vst [vmem:[%s172 + $0x18] sm:$0xf] %v377
      %394 = vst [vmem:[%s172 + $0x1c] sm:$0xf] %v378
      %395 = vst [vmem:[%s172 + $0x20] sm:$0xf] %v379
      %396 = vst [vmem:[%s172 + $0x24] sm:$0xf] %v380
      %397 = vst [vmem:[%s172 + $0x28] sm:$0xf] %v381
      %398 = vst [vmem:[%s172 + $0x2c] sm:$0xf] %v382
      %399 = vst [vmem:[%s172 + $0x30] sm:$0xf] %v383
      %400 = vst [vmem:[%s172 + $0x34] sm:$0xf] %v384
      %401 = vst [vmem:[%s172 + $0x38] sm:$0xf] %v385
      %402 = vst [vmem:[%s172 + $0x3c] sm:$0xf] %v386
      %s403 = smul.u32 16, %s14
      %p404 = scmp.lt.s32.totalorder %s403, 63
      %s405 = scalar_select %p404, %s403, 63
      %s406 = smul.addr %s405, 4
      %s407 = scalar_lea.vmem %s3, %s406
      // Predicated region
      $region33: #{_lambda_.2} parent=31 // pred_check
        %p408 = pneg %p100
      $region34: #{_lambda_.2} parent=31 // pred_check_branch
        %410 = sbr.rel (%p408) target = $region36
      $region35: #{_lambda_.2} parent=31 // pred_region
        %s411 = smul.u32 16, %s14
      $region36: #{_lambda_.2} parent=31 // pred_fallthru
        _
    $region32: #{_lambda_.2} parent=5 // pred_fallthru
      _
    %p412 = scmp.le.s32.totalorder 2, %s9
    // Predicated region
    $region37: #{_lambda_.2} parent=5 // pred_check
      %p413 = pneg %p412
    $region38: #{_lambda_.2} parent=5 // pred_check_branch
      %415 = sbr.rel (%p413) target = $region40
    $region39: #{_lambda_.2} parent=5 // pred_region
      %s416 = ssub.s32 %s9, 2
      // Predicated region
      $region41: #{_lambda_.2} parent=39 // pred_check
        %p417 = pneg %p106
      $region42: #{_lambda_.2} parent=39 // pred_check_branch
        %419 = sbr.rel (%p417) target = $region44
      $region43: #{_lambda_.2} parent=39 // pred_region
        %s420 = smul.u32 16, %s15
        %p421 = scmp.lt.s32.totalorder %s420, 63
        %s422 = scalar_select %p421, %s420, 63
        %s423 = smul.addr %s422, 4
        %s424 = scalar_lea.vmem %s3, %s423
      $region44: #{_lambda_.2} parent=39 // pred_fallthru
        _
    $region40: #{_lambda_.2} parent=5 // pred_fallthru
      _
  $region6: #{_lambda_.2} parent=0 // loop_footer
    %s13 = sadd.s32 1, %s9
  $region7: #{_lambda_.2} parent=0 // loop_footer_branch
    %8 = sbr.rel target = $region3
  $region8: #{_lambda_.2} parent=0 // loop_exit
    _

// kernel: _lambda_.3
$region0: #{_lambda_.3}
  #allocation0 [shape = 'u32[]', space=smem, size = 0x4, offset = 0x4, fixed_abs, tag = 'smem constant byte address 0x4 - core index']
  #allocation1 [shape = 'u32[72,128]{1,0:T(1,128)}', space=vmem, size = 0x9000, scoped, tag = 'internal scratch']
  #allocation2 [shape = 'f32[32,128]{1,0:T(8,128)}', space=vmem, size = 0x4000, scoped, tag = 'scratch operand']
  #allocation3 [shape = 'f32[32,128]{1,0:T(8,128)}', space=vmem, size = 0x4000, scoped, tag = 'scratch operand']
  %s0 = inlined_call_operand.vmem [shape: bf16[2,6,72,128], index: 0, kind: input, shape index: {}]
  %s1 = inlined_call_operand.vmem [shape: bf16[2,6,72,128], index: 1, kind: input, shape index: {}]
  %s2 = inlined_call_operand.vmem [shape: bf16[9,128,128], index: 2, kind: input, shape index: {}]
  %s3 = inlined_call_operand.vmem [shape: f32[1,128], index: 3, kind: input, shape index: {}]
  %s4 = inlined_call_operand.vmem [shape: bf16[128,128], index: 4, kind: input, shape index: {}]
  %s5 = inlined_call_operand.vmem [shape: f32[1,128], index: 5, kind: input, shape index: {}]
  %s6 = inlined_call_operand.vmem [shape: bf16[9,128,128], index: 6, kind: input, shape index: {}]
  %s7 = inlined_call_operand.vmem [shape: f32[1,128], index: 7, kind: input, shape index: {}]
  %s8 = inlined_call_operand.vmem [shape: bf16[2,64,128], index: 8, kind: output, shape index: {}]
  %s9 = sld [smem:[#allocation0]]
  $region65: #{_lambda_.3} parent=0
    _
  %s11 = ssub.s32 1, %s9
  %s12 = scalar_select 0, %s11, %s9
  loop: start=0, step=1, limit=6
  $region2: #{_lambda_.3} parent=0 // loop_pre_header
    _
  $region3: #{_lambda_.3} parent=0 // loop_header
    %s14 = sphi 0, %s18
    %p15 = scmp.ge.s32.totalorder %s14, 6
    %s21 = sphi 0, %s33
    %s22 = sphi 0, %s29
    %s23 = sphi 0, %s21
    %s24 = sphi 0, %s22
    %s25 = sphi 0, %s23
    %s26 = sphi 0, %s24
    %s36 = sphi 0, %s38
    %s39 = sphi 0, %s36
    %s40 = sphi 0, %s39
    %s56 = sphi 0, %s40
    %s62 = sphi 0, %s64
    %s65 = sphi 0, %s62
    %s66 = sphi 0, %s65
    %s82 = sphi 0, %s66
    %s86 = sphi 0, %s86
    %s88 = sphi 0, %s86
    %s89 = sphi 0, %s88
    %s103 = sphi 0, %s89
    %s107 = sphi 0, %s107
    %s109 = sphi 0, %s107
    %s110 = sphi 0, %s109
    %s124 = sphi 0, %s110
    %s128 = sphi 0, %s128
    %s130 = sphi 0, %s128
    %s131 = sphi 0, %s130
    %s145 = sphi 0, %s131
    %s149 = sphi 0, %s149
    %s151 = sphi 0, %s149
    %s152 = sphi 0, %s151
    %s166 = sphi 0, %s152
    %s170 = sphi 0, %s170
    %s172 = sphi 0, %s170
    %s173 = sphi 0, %s172
    %s187 = sphi 0, %s173
    %s191 = sphi 0, %s191
    %s193 = sphi 0, %s191
    %s194 = sphi 0, %s193
    %s208 = sphi 0, %s194
    %s216 = sphi 0, %s218
    %s219 = sphi 0, %s216
    %s220 = sphi 0, %s219
    %s236 = sphi 0, %s220
  $region4: #{_lambda_.3} parent=0 // loop_header_branch
    %17 = sbr.rel (%p15) target = $region8
  $region5: #{_lambda_.3} parent=0 // loop_body
    %s19 = ssub.s32 %s14, 1
    %s20 = ssub.s32 %s14, 2
    %s27 = sadd.s32 1, %s22
    %p28 = scmp.ge.s32.totalorder %s27, 2
    %s29 = scalar_select %p28, 0, %s27
    %s30 = sadd.s32 1, %s21
    %s31 = scalar_select %p28, %s30, %s21
    %p32 = scmp.ge.s32.totalorder %s31, 2
    %s33 = scalar_select %p32, 0, %s31
    %s34 = ssub.s32 %s21, %s33
    %p35 = scmp.eq.s32.totalorder %s34, 0
    %s37 = sadd.s32 %s36, 1
    %s38 = scalar_select %p35, %s36, %s37
    %p41 = pneg %p35
    %p42 = scmp.eq.s32.totalorder %s14, 3
    %p43 = por %p41, %p42
    %p44 = scmp.ne.s32.totalorder %s36, %s39
    %p45 = scmp.eq.s32.totalorder %s14, 0
    %p46 = por %p44, %p45
    %p47 = scmp.ne.s32.totalorder %s36, %s39
    %p48 = scmp.eq.s32.totalorder %s19, 3
    %p49 = por %p47, %p48
    %p50 = scmp.ne.s32.totalorder %s39, %s40
    %p51 = scmp.eq.s32.totalorder %s19, 0
    %p52 = por %p50, %p51
    %p53 = scmp.ne.s32.totalorder %s39, %s40
    %p54 = scmp.eq.s32.totalorder %s20, 3
    %p55 = por %p53, %p54
    %p57 = scmp.ne.s32.totalorder %s40, %s56
    %p58 = scmp.eq.s32.totalorder %s20, 0
    %p59 = por %p57, %p58
    %s60 = ssub.s32 %s21, %s33
    %p61 = scmp.eq.s32.totalorder %s60, 0
    %s63 = sadd.s32 %s62, 1
    %s64 = scalar_select %p61, %s62, %s63
    %p67 = pneg %p61
    %p68 = scmp.eq.s32.totalorder %s14, 3
    %p69 = por %p67, %p68
    %p70 = scmp.ne.s32.totalorder %s62, %s65
    %p71 = scmp.eq.s32.totalorder %s14, 0
    %p72 = por %p70, %p71
    %p73 = scmp.ne.s32.totalorder %s62, %s65
    %p74 = scmp.eq.s32.totalorder %s19, 3
    %p75 = por %p73, %p74
    %p76 = scmp.ne.s32.totalorder %s65, %s66
    %p77 = scmp.eq.s32.totalorder %s19, 0
    %p78 = por %p76, %p77
    %p79 = scmp.ne.s32.totalorder %s65, %s66
    %p80 = scmp.eq.s32.totalorder %s20, 3
    %p81 = por %p79, %p80
    %p83 = scmp.ne.s32.totalorder %s66, %s82
    %p84 = scmp.eq.s32.totalorder %s20, 0
    %p85 = por %p83, %p84
    %s87 = sadd.s32 %s86, 1
    %p90 = scmp.eq.s32.totalorder %s14, 3
    %p91 = scmp.ne.s32.totalorder %s86, %s88
    %p92 = scmp.eq.s32.totalorder %s14, 0
    %p93 = por %p91, %p92
    %p94 = scmp.ne.s32.totalorder %s86, %s88
    %p95 = scmp.eq.s32.totalorder %s19, 3
    %p96 = por %p94, %p95
    %p97 = scmp.ne.s32.totalorder %s88, %s89
    %p98 = scmp.eq.s32.totalorder %s19, 0
    %p99 = por %p97, %p98
    %p100 = scmp.ne.s32.totalorder %s88, %s89
    %p101 = scmp.eq.s32.totalorder %s20, 3
    %p102 = por %p100, %p101
    %p104 = scmp.ne.s32.totalorder %s89, %s103
    %p105 = scmp.eq.s32.totalorder %s20, 0
    %p106 = por %p104, %p105
    %s108 = sadd.s32 %s107, 1
    %p111 = scmp.eq.s32.totalorder %s14, 3
    %p112 = scmp.ne.s32.totalorder %s107, %s109
    %p113 = scmp.eq.s32.totalorder %s14, 0
    %p114 = por %p112, %p113
    %p115 = scmp.ne.s32.totalorder %s107, %s109
    %p116 = scmp.eq.s32.totalorder %s19, 3
    %p117 = por %p115, %p116
    %p118 = scmp.ne.s32.totalorder %s109, %s110
    %p119 = scmp.eq.s32.totalorder %s19, 0
    %p120 = por %p118, %p119
    %p121 = scmp.ne.s32.totalorder %s109, %s110
    %p122 = scmp.eq.s32.totalorder %s20, 3
    %p123 = por %p121, %p122
    %p125 = scmp.ne.s32.totalorder %s110, %s124
    %p126 = scmp.eq.s32.totalorder %s20, 0
    %p127 = por %p125, %p126
    %s129 = sadd.s32 %s128, 1
    %p132 = scmp.eq.s32.totalorder %s14, 3
    %p133 = scmp.ne.s32.totalorder %s128, %s130
    %p134 = scmp.eq.s32.totalorder %s14, 0
    %p135 = por %p133, %p134
    %p136 = scmp.ne.s32.totalorder %s128, %s130
    %p137 = scmp.eq.s32.totalorder %s19, 3
    %p138 = por %p136, %p137
    %p139 = scmp.ne.s32.totalorder %s130, %s131
    %p140 = scmp.eq.s32.totalorder %s19, 0
    %p141 = por %p139, %p140
    %p142 = scmp.ne.s32.totalorder %s130, %s131
    %p143 = scmp.eq.s32.totalorder %s20, 3
    %p144 = por %p142, %p143
    %p146 = scmp.ne.s32.totalorder %s131, %s145
    %p147 = scmp.eq.s32.totalorder %s20, 0
    %p148 = por %p146, %p147
    %s150 = sadd.s32 %s149, 1
    %p153 = scmp.eq.s32.totalorder %s14, 3
    %p154 = scmp.ne.s32.totalorder %s149, %s151
    %p155 = scmp.eq.s32.totalorder %s14, 0
    %p156 = por %p154, %p155
    %p157 = scmp.ne.s32.totalorder %s149, %s151
    %p158 = scmp.eq.s32.totalorder %s19, 3
    %p159 = por %p157, %p158
    %p160 = scmp.ne.s32.totalorder %s151, %s152
    %p161 = scmp.eq.s32.totalorder %s19, 0
    %p162 = por %p160, %p161
    %p163 = scmp.ne.s32.totalorder %s151, %s152
    %p164 = scmp.eq.s32.totalorder %s20, 3
    %p165 = por %p163, %p164
    %p167 = scmp.ne.s32.totalorder %s152, %s166
    %p168 = scmp.eq.s32.totalorder %s20, 0
    %p169 = por %p167, %p168
    %s171 = sadd.s32 %s170, 1
    %p174 = scmp.eq.s32.totalorder %s14, 3
    %p175 = scmp.ne.s32.totalorder %s170, %s172
    %p176 = scmp.eq.s32.totalorder %s14, 0
    %p177 = por %p175, %p176
    %p178 = scmp.ne.s32.totalorder %s170, %s172
    %p179 = scmp.eq.s32.totalorder %s19, 3
    %p180 = por %p178, %p179
    %p181 = scmp.ne.s32.totalorder %s172, %s173
    %p182 = scmp.eq.s32.totalorder %s19, 0
    %p183 = por %p181, %p182
    %p184 = scmp.ne.s32.totalorder %s172, %s173
    %p185 = scmp.eq.s32.totalorder %s20, 3
    %p186 = por %p184, %p185
    %p188 = scmp.ne.s32.totalorder %s173, %s187
    %p189 = scmp.eq.s32.totalorder %s20, 0
    %p190 = por %p188, %p189
    %s192 = sadd.s32 %s191, 1
    %p195 = scmp.eq.s32.totalorder %s14, 3
    %p196 = scmp.ne.s32.totalorder %s191, %s193
    %p197 = scmp.eq.s32.totalorder %s14, 0
    %p198 = por %p196, %p197
    %p199 = scmp.ne.s32.totalorder %s191, %s193
    %p200 = scmp.eq.s32.totalorder %s19, 3
    %p201 = por %p199, %p200
    %p202 = scmp.ne.s32.totalorder %s193, %s194
    %p203 = scmp.eq.s32.totalorder %s19, 0
    %p204 = por %p202, %p203
    %p205 = scmp.ne.s32.totalorder %s193, %s194
    %p206 = scmp.eq.s32.totalorder %s20, 3
    %p207 = por %p205, %p206
    %p209 = scmp.ne.s32.totalorder %s194, %s208
    %p210 = scmp.eq.s32.totalorder %s20, 0
    %p211 = por %p209, %p210
    %s212 = ssub.s32 %s21, %s33
    %s213 = ssub.s32 %s22, %s29
    %s214 = sor.u32 %s212, %s213
    %p215 = scmp.eq.s32.totalorder %s214, 0
    %s217 = sadd.s32 %s216, 1
    %s218 = scalar_select %p215, %s216, %s217
    %p221 = pneg %p215
    %p222 = scmp.eq.s32.totalorder %s14, 3
    %p223 = por %p221, %p222
    %p224 = scmp.ne.s32.totalorder %s216, %s219
    %p225 = scmp.eq.s32.totalorder %s14, 0
    %p226 = por %p224, %p225
    %p227 = scmp.ne.s32.totalorder %s216, %s219
    %p228 = scmp.eq.s32.totalorder %s19, 3
    %p229 = por %p227, %p228
    %p230 = scmp.ne.s32.totalorder %s219, %s220
    %p231 = scmp.eq.s32.totalorder %s19, 0
    %p232 = por %p230, %p231
    %p233 = scmp.ne.s32.totalorder %s219, %s220
    %p234 = scmp.eq.s32.totalorder %s20, 3
    %p235 = por %p233, %p234
    %p237 = scmp.ne.s32.totalorder %s220, %s236
    %p238 = scmp.eq.s32.totalorder %s20, 0
    %p239 = por %p237, %p238
    %p240 = scmp.le.s32.totalorder 1, %s14
    %p241 = scmp.lt.s32.totalorder %s14, 5
    %p242 = pnand %p240, %p241
    %p243 = pneg %p242
    // Predicated region
    $region9: #{_lambda_.3} parent=5 // pred_check
      _
    $region10: #{_lambda_.3} parent=5 // pred_check_branch
      %245 = sbr.rel (%p242) target = $region12
    $region11: #{_lambda_.3} parent=5 // pred_region
      %s246 = ssub.s32 %s14, 1
      // Predicated region
      $region13: #{_lambda_.3} parent=11 // pred_check
        %p247 = pneg %p99
      $region14: #{_lambda_.3} parent=11 // pred_check_branch
        %249 = sbr.rel (%p247) target = $region16
      $region15: #{_lambda_.3} parent=11 // pred_region
        _
      $region16: #{_lambda_.3} parent=11 // pred_fallthru
        _
      // Predicated region
      $region17: #{_lambda_.3} parent=11 // pred_check
        %p250 = pneg %p120
      $region18: #{_lambda_.3} parent=11 // pred_check_branch
        %252 = sbr.rel (%p250) target = $region20
      $region19: #{_lambda_.3} parent=11 // pred_region
        _
      $region20: #{_lambda_.3} parent=11 // pred_fallthru
        _
      // Predicated region
      $region21: #{_lambda_.3} parent=11 // pred_check
        %p253 = pneg %p141
      $region22: #{_lambda_.3} parent=11 // pred_check_branch
        %255 = sbr.rel (%p253) target = $region24
      $region23: #{_lambda_.3} parent=11 // pred_region
        _
      $region24: #{_lambda_.3} parent=11 // pred_fallthru
        _
      // Predicated region
      $region25: #{_lambda_.3} parent=11 // pred_check
        %p256 = pneg %p162
      $region26: #{_lambda_.3} parent=11 // pred_check_branch
        %258 = sbr.rel (%p256) target = $region28
      $region27: #{_lambda_.3} parent=11 // pred_region
        _
      $region28: #{_lambda_.3} parent=11 // pred_fallthru
        _
      // Predicated region
      $region29: #{_lambda_.3} parent=11 // pred_check
        %p259 = pneg %p183
      $region30: #{_lambda_.3} parent=11 // pred_check_branch
        %261 = sbr.rel (%p259) target = $region32
      $region31: #{_lambda_.3} parent=11 // pred_region
        _
      $region32: #{_lambda_.3} parent=11 // pred_fallthru
        _
      // Predicated region
      $region33: #{_lambda_.3} parent=11 // pred_check
        %p262 = pneg %p204
      $region34: #{_lambda_.3} parent=11 // pred_check_branch
        %264 = sbr.rel (%p262) target = $region36
      $region35: #{_lambda_.3} parent=11 // pred_region
        _
      $region36: #{_lambda_.3} parent=11 // pred_fallthru
        _
    $region12: #{_lambda_.3} parent=5 // pred_fallthru
      _
    %p265 = scmp.lt.s32.totalorder %s14, 4
    // Predicated region
    $region37: #{_lambda_.3} parent=5 // pred_check
      %p266 = pneg %p265
    $region38: #{_lambda_.3} parent=5 // pred_check_branch
      %268 = sbr.rel (%p266) target = $region40
    $region39: #{_lambda_.3} parent=5 // pred_region
      // Predicated region
      $region41: #{_lambda_.3} parent=39 // pred_check
        %p269 = pneg %p46
      $region42: #{_lambda_.3} parent=39 // pred_check_branch
        %271 = sbr.rel (%p269) target = $region44
      $region43: #{_lambda_.3} parent=39 // pred_region
        %p272 = scmp.lt.s32.totalorder %s21, 1
        %s273 = scalar_select %p272, %s21, 1
        %s274 = smul.addr %s273, 54
        %s275 = smul.addr %s274, 4
        %s276 = scalar_lea.vmem %s0, %s275
      $region44: #{_lambda_.3} parent=39 // pred_fallthru
        _
      // Predicated region
      $region45: #{_lambda_.3} parent=39 // pred_check
        %p277 = pneg %p72
      $region46: #{_lambda_.3} parent=39 // pred_check_branch
        %279 = sbr.rel (%p277) target = $region48
      $region47: #{_lambda_.3} parent=39 // pred_region
        %p280 = scmp.lt.s32.totalorder %s21, 1
        %s281 = scalar_select %p280, %s21, 1
        %s282 = smul.addr %s281, 54
        %s283 = smul.addr %s282, 4
        %s284 = scalar_lea.vmem %s1, %s283
      $region48: #{_lambda_.3} parent=39 // pred_fallthru
        _
    $region40: #{_lambda_.3} parent=5 // pred_fallthru
      _
    %p285 = scmp.le.s32.totalorder 1, %s14
    %p286 = scmp.lt.s32.totalorder %s14, 5
    %p287 = pnand %p285, %p286
    %p288 = pneg %p287
    // Predicated region
    $region49: #{_lambda_.3} parent=5 // pred_check
      _
    $region50: #{_lambda_.3} parent=5 // pred_check_branch
      %290 = sbr.rel (%p287) target = $region52
    $region51: #{_lambda_.3} parent=5 // pred_region
      %s291 = ssub.s32 %s14, 1
      %p292 = scmp.lt.s32.totalorder %s23, 1
      %s293 = scalar_select %p292, %s23, 1
      %s294 = smul.addr %s293, 54
      %s295 = smul.addr %s294, 4
      %s296 = scalar_lea.vmem %s0, %s295
      %p297 = pneg %p52
      %p298 = pneg %p49
      %p299 = scmp.lt.s32.totalorder %s23, 1
      %s300 = scalar_select %p299, %s23, 1
      %s301 = smul.addr %s300, 54
      %s302 = smul.addr %s301, 4
      %s303 = scalar_lea.vmem %s1, %s302
      %p304 = pneg %p78
      %p305 = pneg %p75
      %p306 = pneg %p99
      %p307 = pneg %p96
      %p308 = pneg %p120
      %p309 = pneg %p117
      %p310 = pneg %p141
      %p311 = pneg %p138
      %p312 = pneg %p162
      %p313 = pneg %p159
      %p314 = pneg %p183
      %p315 = pneg %p180
      %p316 = pneg %p204
      %p317 = pneg %p201
      %p318 = pneg %p232
      %p319 = pneg %p229
      %s320 = smul.u32 4, %s24
      %p321 = scmp.lt.s32.totalorder %s23, 1
      %s322 = scalar_select %p321, %s23, 1
      %p323 = scmp.lt.s32.totalorder %s320, 7
      %s324 = scalar_select %p323, %s320, 7
      %s325 = smul.addr %s322, 8
      %s326 = sadd.s32 %s324, %s325
      %s327 = smul.addr %s326, 4
      %s328 = scalar_lea.vmem %s8, %s327
      %p329 = scmp.lt.s32.totalorder %s23, 1
      %s330 = scalar_select %p329, %s23, 1
      %s331 = smul.addr %s330, 54
      %s332 = smul.addr %s331, 4
      %s333 = scalar_lea.vmem %s0, %s332
      %p334 = scmp.lt.s32.totalorder %s23, 1
      %s335 = scalar_select %p334, %s23, 1
      %s336 = smul.addr %s335, 54
      %s337 = smul.addr %s336, 4
      %s338 = scalar_lea.vmem %s1, %s337
      %s339 = smul.u32 4, %s24
      %p340 = scmp.lt.s32.totalorder %s23, 1
      %s341 = scalar_select %p340, %s23, 1
      %p342 = scmp.lt.s32.totalorder %s339, 7
      %s343 = scalar_select %p342, %s339, 7
      %s344 = smul.addr %s341, 8
      %s345 = sadd.s32 %s343, %s344
      %s346 = smul.addr %s345, 4
      %s347 = scalar_lea.vmem %s8, %s346
      %s348 = smul.u32 4, %s24
      %s349 = smul.u32 %s24, 32
      %s350 = sshra.s32 %s349, 3
      %s351 = sand.u32 %s349, 7
      %s352 = smul.addr %s350, 4
      %s353 = scalar_lea.vmem %s333, %s352
      %v354 = vld [vmem:[%s353] sm:$0xf]
      %v355 = vld [vmem:[%s353 + $0x4] sm:$0xf]
      %v356 = vld [vmem:[%s353 + $0x8] sm:$0xf]
      %v357 = vld [vmem:[%s353 + $0xc] sm:$0xf]
      %v358 = vld [vmem:[%s2] sm:$0xf]
      %v359 = vld [vmem:[%s2 + $0x4] sm:$0xf]
      %v360 = vld [vmem:[%s2 + $0x8] sm:$0xf]
      %v361 = vld [vmem:[%s2 + $0xc] sm:$0xf]
      %v362 = vld [vmem:[%s2 + $0x10] sm:$0xf]
      %v363 = vld [vmem:[%s2 + $0x14] sm:$0xf]
      %v364 = vld [vmem:[%s2 + $0x18] sm:$0xf]
      %v365 = vld [vmem:[%s2 + $0x1c] sm:$0xf]
      %v366 = vld [vmem:[%s2 + $0x20] sm:$0xf]
      %v367 = vld [vmem:[%s2 + $0x24] sm:$0xf]
      %v368 = vld [vmem:[%s2 + $0x28] sm:$0xf]
      %v369 = vld [vmem:[%s2 + $0x2c] sm:$0xf]
      %v370 = vld [vmem:[%s2 + $0x30] sm:$0xf]
      %v371 = vld [vmem:[%s2 + $0x34] sm:$0xf]
      %v372 = vld [vmem:[%s2 + $0x38] sm:$0xf]
      %v373 = vld [vmem:[%s2 + $0x3c] sm:$0xf]
      %v378 = vunpack.c.l.b16 %v354
      %v379 = vunpack.c.l.b16 %v355
      %v380 = vunpack.c.l.b16 %v356
      %v381 = vunpack.c.l.b16 %v357
      %v382 = vpack.c.b16 %v379, %v378
      %v383 = vpack.c.b16 %v381, %v380
      %v402 = vunpack.c.l.b16 %v358
      %v403 = vunpack.c.l.b16 %v359
      %v404 = vunpack.c.l.b16 %v360
      %v405 = vunpack.c.l.b16 %v361
      %v406 = vunpack.c.l.b16 %v362
      %v407 = vunpack.c.l.b16 %v363
      %v408 = vunpack.c.l.b16 %v364
      %v409 = vunpack.c.l.b16 %v365
      %v410 = vunpack.c.l.b16 %v366
      %v411 = vunpack.c.l.b16 %v367
      %v412 = vunpack.c.l.b16 %v368
      %v413 = vunpack.c.l.b16 %v369
      %v414 = vunpack.c.l.b16 %v370
      %v415 = vunpack.c.l.b16 %v371
      %v416 = vunpack.c.l.b16 %v372
      %v417 = vunpack.c.l.b16 %v373
      %v418 = vpack.c.b16 %v403, %v402
      %v419 = vpack.c.b16 %v405, %v404
      %v420 = vpack.c.b16 %v407, %v406
      %v421 = vpack.c.b16 %v409, %v408
      %v422 = vpack.c.b16 %v411, %v410
      %v423 = vpack.c.b16 %v413, %v412
      %v424 = vpack.c.b16 %v415, %v414
      %v425 = vpack.c.b16 %v417, %v416
      %434 = vmatpush.bf16.msra.mxu0 %v425
      %435 = vmatpush.bf16.msra.mxu0 %v424
      %436 = vmatpush.bf16.msra.mxu0 %v423
      %437 = vmatpush.bf16.msra.mxu0 %v422
      %438 = vmatpush.bf16.msra.mxu0 %v421
      %439 = vmatpush.bf16.msra.mxu0 %v420
      %440 = vmatpush.bf16.msra.mxu0 %v419
      %441 = vmatpush.bf16.msra.mxu0 %v418
      %442 = vmatmul.bf16.gmra.mxu0 %v382
      %v443 = vpop.f32.mrf.mxu0
      %v444 = vadd.f32 0.0, %v443
      %v445 = vpop.f32.mrf.mxu0
      %v446 = vadd.f32 0.0, %v445
      %447 = vmatmul.bf16.gmra.mxu0 %v383
      %v448 = vpop.f32.mrf.mxu0
      %v449 = vadd.f32 0.0, %v448
      %v450 = vpop.f32.mrf.mxu0
      %v451 = vadd.f32 0.0, %v450
      %452 = vdwg.mxu0
      %453 = vst [vmem:[#allocation2] sm:$0xff] %v444
      %454 = vst [vmem:[#allocation2 + $0x8] sm:$0xff] %v446
      %455 = vst [vmem:[#allocation2 + $0x10] sm:$0xff] %v449
      %456 = vst [vmem:[#allocation2 + $0x18] sm:$0xff] %v451
      %s457 = scalar_lea.vmem %s333, 36
      %s458 = smul.addr %s350, 4
      %s459 = scalar_lea.vmem %s457, %s458
      %v460 = vld [vmem:[%s459] sm:$0xf]
      %v461 = vld [vmem:[%s459 + $0x4] sm:$0xf]
      %v462 = vld [vmem:[%s459 + $0x8] sm:$0xf]
      %v463 = vld [vmem:[%s459 + $0xc] sm:$0xf]
      %s464 = scalar_lea.vmem %s2, 64
      %v465 = vld [vmem:[%s464] sm:$0xf]
      %v466 = vld [vmem:[%s464 + $0x4] sm:$0xf]
      %v467 = vld [vmem:[%s464 + $0x8] sm:$0xf]
      %v468 = vld [vmem:[%s464 + $0xc] sm:$0xf]
      %v469 = vld [vmem:[%s464 + $0x10] sm:$0xf]
      %v470 = vld [vmem:[%s464 + $0x14] sm:$0xf]
      %v471 = vld [vmem:[%s464 + $0x18] sm:$0xf]
      %v472 = vld [vmem:[%s464 + $0x1c] sm:$0xf]
      %v473 = vld [vmem:[%s464 + $0x20] sm:$0xf]
      %v474 = vld [vmem:[%s464 + $0x24] sm:$0xf]
      %v475 = vld [vmem:[%s464 + $0x28] sm:$0xf]
      %v476 = vld [vmem:[%s464 + $0x2c] sm:$0xf]
      %v477 = vld [vmem:[%s464 + $0x30] sm:$0xf]
      %v478 = vld [vmem:[%s464 + $0x34] sm:$0xf]
      %v479 = vld [vmem:[%s464 + $0x38] sm:$0xf]
      %v480 = vld [vmem:[%s464 + $0x3c] sm:$0xf]
      %v485 = vunpack.c.l.b16 %v460
      %v486 = vunpack.c.l.b16 %v461
      %v487 = vunpack.c.l.b16 %v462
      %v488 = vunpack.c.l.b16 %v463
      %v489 = vpack.c.b16 %v486, %v485
      %v490 = vpack.c.b16 %v488, %v487
      %v509 = vunpack.c.l.b16 %v465
      %v510 = vunpack.c.l.b16 %v466
      %v511 = vunpack.c.l.b16 %v467
      %v512 = vunpack.c.l.b16 %v468
      %v513 = vunpack.c.l.b16 %v469
      %v514 = vunpack.c.l.b16 %v470
      %v515 = vunpack.c.l.b16 %v471
      %v516 = vunpack.c.l.b16 %v472
      %v517 = vunpack.c.l.b16 %v473
      %v518 = vunpack.c.l.b16 %v474
      %v519 = vunpack.c.l.b16 %v475
      %v520 = vunpack.c.l.b16 %v476
      %v521 = vunpack.c.l.b16 %v477
      %v522 = vunpack.c.l.b16 %v478
      %v523 = vunpack.c.l.b16 %v479
      %v524 = vunpack.c.l.b16 %v480
      %v525 = vpack.c.b16 %v510, %v509
      %v526 = vpack.c.b16 %v512, %v511
      %v527 = vpack.c.b16 %v514, %v513
      %v528 = vpack.c.b16 %v516, %v515
      %v529 = vpack.c.b16 %v518, %v517
      %v530 = vpack.c.b16 %v520, %v519
      %v531 = vpack.c.b16 %v522, %v521
      %v532 = vpack.c.b16 %v524, %v523
      %541 = vmatpush.bf16.msra.mxu0 %v532
      %542 = vmatpush.bf16.msra.mxu0 %v531
      %543 = vmatpush.bf16.msra.mxu0 %v530
      %544 = vmatpush.bf16.msra.mxu0 %v529
      %545 = vmatpush.bf16.msra.mxu0 %v528
      %546 = vmatpush.bf16.msra.mxu0 %v527
      %547 = vmatpush.bf16.msra.mxu0 %v526
      %548 = vmatpush.bf16.msra.mxu0 %v525
      %549 = vmatmul.bf16.gmra.mxu0 %v489
      %v550 = vpop.f32.mrf.mxu0
      %v551 = vadd.f32 0.0, %v550
      %v552 = vpop.f32.mrf.mxu0
      %v553 = vadd.f32 0.0, %v552
      %554 = vmatmul.bf16.gmra.mxu0 %v490
      %v555 = vpop.f32.mrf.mxu0
      %v556 = vadd.f32 0.0, %v555
      %v557 = vpop.f32.mrf.mxu0
      %v558 = vadd.f32 0.0, %v557
      %559 = vdwg.mxu0
      %v560 = vld [vmem:[#allocation2] sm:$0xff]
      %v561 = vld [vmem:[#allocation2 + $0x8] sm:$0xff]
      %v562 = vld [vmem:[#allocation2 + $0x10] sm:$0xff]
      %v563 = vld [vmem:[#allocation2 + $0x18] sm:$0xff]
      %v564 = vadd.f32 %v560, %v551
      %v565 = vadd.f32 %v561, %v553
      %v566 = vadd.f32 %v562, %v556
      %v567 = vadd.f32 %v563, %v558
      %568 = vst [vmem:[#allocation2] sm:$0xff] %v564
      %569 = vst [vmem:[#allocation2 + $0x8] sm:$0xff] %v565
      %570 = vst [vmem:[#allocation2 + $0x10] sm:$0xff] %v566
      %571 = vst [vmem:[#allocation2 + $0x18] sm:$0xff] %v567
      %s572 = scalar_lea.vmem %s333, 72
      %s573 = smul.addr %s350, 4
      %s574 = scalar_lea.vmem %s572, %s573
      %v575 = vld [vmem:[%s574] sm:$0xf]
      %v576 = vld [vmem:[%s574 + $0x4] sm:$0xf]
      %v577 = vld [vmem:[%s574 + $0x8] sm:$0xf]
      %v578 = vld [vmem:[%s574 + $0xc] sm:$0xf]
      %s579 = scalar_lea.vmem %s2, 128
      %v580 = vld [vmem:[%s579] sm:$0xf]
      %v581 = vld [vmem:[%s579 + $0x4] sm:$0xf]
      %v582 = vld [vmem:[%s579 + $0x8] sm:$0xf]
      %v583 = vld [vmem:[%s579 + $0xc] sm:$0xf]
      %v584 = vld [vmem:[%s579 + $0x10] sm:$0xf]
      %v585 = vld [vmem:[%s579 + $0x14] sm:$0xf]
      %v586 = vld [vmem:[%s579 + $0x18] sm:$0xf]
      %v587 = vld [vmem:[%s579 + $0x1c] sm:$0xf]
      %v588 = vld [vmem:[%s579 + $0x20] sm:$0xf]
      %v589 = vld [vmem:[%s579 + $0x24] sm:$0xf]
      %v590 = vld [vmem:[%s579 + $0x28] sm:$0xf]
      %v591 = vld [vmem:[%s579 + $0x2c] sm:$0xf]
      %v592 = vld [vmem:[%s579 + $0x30] sm:$0xf]
      %v593 = vld [vmem:[%s579 + $0x34] sm:$0xf]
      %v594 = vld [vmem:[%s579 + $0x38] sm:$0xf]
      %v595 = vld [vmem:[%s579 + $0x3c] sm:$0xf]
      %v600 = vunpack.c.l.b16 %v575
      %v601 = vunpack.c.l.b16 %v576
      %v602 = vunpack.c.l.b16 %v577
      %v603 = vunpack.c.l.b16 %v578
      %v604 = vpack.c.b16 %v601, %v600
      %v605 = vpack.c.b16 %v603, %v602
      %v624 = vunpack.c.l.b16 %v580
      %v625 = vunpack.c.l.b16 %v581
      %v626 = vunpack.c.l.b16 %v582
      %v627 = vunpack.c.l.b16 %v583
      %v628 = vunpack.c.l.b16 %v584
      %v629 = vunpack.c.l.b16 %v585
      %v630 = vunpack.c.l.b16 %v586
      %v631 = vunpack.c.l.b16 %v587
      %v632 = vunpack.c.l.b16 %v588
      %v633 = vunpack.c.l.b16 %v589
      %v634 = vunpack.c.l.b16 %v590
      %v635 = vunpack.c.l.b16 %v591
      %v636 = vunpack.c.l.b16 %v592
      %v637 = vunpack.c.l.b16 %v593
      %v638 = vunpack.c.l.b16 %v594
      %v639 = vunpack.c.l.b16 %v595
      %v640 = vpack.c.b16 %v625, %v624
      %v641 = vpack.c.b16 %v627, %v626
      %v642 = vpack.c.b16 %v629, %v628
      %v643 = vpack.c.b16 %v631, %v630
      %v644 = vpack.c.b16 %v633, %v632
      %v645 = vpack.c.b16 %v635, %v634
      %v646 = vpack.c.b16 %v637, %v636
      %v647 = vpack.c.b16 %v639, %v638
      %656 = vmatpush.bf16.msra.mxu0 %v647
      %657 = vmatpush.bf16.msra.mxu0 %v646
      %658 = vmatpush.bf16.msra.mxu0 %v645
      %659 = vmatpush.bf16.msra.mxu0 %v644
      %660 = vmatpush.bf16.msra.mxu0 %v643
      %661 = vmatpush.bf16.msra.mxu0 %v642
      %662 = vmatpush.bf16.msra.mxu0 %v641
      %663 = vmatpush.bf16.msra.mxu0 %v640
      %664 = vmatmul.bf16.gmra.mxu0 %v604
      %v665 = vpop.f32.mrf.mxu0
      %v666 = vadd.f32 0.0, %v665
      %v667 = vpop.f32.mrf.mxu0
      %v668 = vadd.f32 0.0, %v667
      %669 = vmatmul.bf16.gmra.mxu0 %v605
      %v670 = vpop.f32.mrf.mxu0
      %v671 = vadd.f32 0.0, %v670
      %v672 = vpop.f32.mrf.mxu0
      %v673 = vadd.f32 0.0, %v672
      %674 = vdwg.mxu0
      %v675 = vld [vmem:[#allocation2] sm:$0xff]
      %v676 = vld [vmem:[#allocation2 + $0x8] sm:$0xff]
      %v677 = vld [vmem:[#allocation2 + $0x10] sm:$0xff]
      %v678 = vld [vmem:[#allocation2 + $0x18] sm:$0xff]
      %v679 = vadd.f32 %v675, %v666
      %v680 = vadd.f32 %v676, %v668
      %v681 = vadd.f32 %v677, %v671
      %v682 = vadd.f32 %v678, %v673
      %683 = vst [vmem:[#allocation2] sm:$0xff] %v679
      %684 = vst [vmem:[#allocation2 + $0x8] sm:$0xff] %v680
      %685 = vst [vmem:[#allocation2 + $0x10] sm:$0xff] %v681
      %686 = vst [vmem:[#allocation2 + $0x18] sm:$0xff] %v682
      %s687 = scalar_lea.vmem %s333, 108
      %s688 = smul.addr %s350, 4
      %s689 = scalar_lea.vmem %s687, %s688
      %v690 = vld [vmem:[%s689] sm:$0xf]
      %v691 = vld [vmem:[%s689 + $0x4] sm:$0xf]
      %v692 = vld [vmem:[%s689 + $0x8] sm:$0xf]
      %v693 = vld [vmem:[%s689 + $0xc] sm:$0xf]
      %s694 = scalar_lea.vmem %s2, 192
      %v695 = vld [vmem:[%s694] sm:$0xf]
      %v696 = vld [vmem:[%s694 + $0x4] sm:$0xf]
      %v697 = vld [vmem:[%s694 + $0x8] sm:$0xf]
      %v698 = vld [vmem:[%s694 + $0xc] sm:$0xf]
      %v699 = vld [vmem:[%s694 + $0x10] sm:$0xf]
      %v700 = vld [vmem:[%s694 + $0x14] sm:$0xf]
      %v701 = vld [vmem:[%s694 + $0x18] sm:$0xf]
      %v702 = vld [vmem:[%s694 + $0x1c] sm:$0xf]
      %v703 = vld [vmem:[%s694 + $0x20] sm:$0xf]
      %v704 = vld [vmem:[%s694 + $0x24] sm:$0xf]
      %v705 = vld [vmem:[%s694 + $0x28] sm:$0xf]
      %v706 = vld [vmem:[%s694 + $0x2c] sm:$0xf]
      %v707 = vld [vmem:[%s694 + $0x30] sm:$0xf]
      %v708 = vld [vmem:[%s694 + $0x34] sm:$0xf]
      %v709 = vld [vmem:[%s694 + $0x38] sm:$0xf]
      %v710 = vld [vmem:[%s694 + $0x3c] sm:$0xf]
      %v715 = vunpack.c.l.b16 %v690
      %v716 = vunpack.c.l.b16 %v691
      %v717 = vunpack.c.l.b16 %v692
      %v718 = vunpack.c.l.b16 %v693
      %v719 = vpack.c.b16 %v716, %v715
      %v720 = vpack.c.b16 %v718, %v717
      %v739 = vunpack.c.l.b16 %v695
      %v740 = vunpack.c.l.b16 %v696
      %v741 = vunpack.c.l.b16 %v697
      %v742 = vunpack.c.l.b16 %v698
      %v743 = vunpack.c.l.b16 %v699
      %v744 = vunpack.c.l.b16 %v700
      %v745 = vunpack.c.l.b16 %v701
      %v746 = vunpack.c.l.b16 %v702
      %v747 = vunpack.c.l.b16 %v703
      %v748 = vunpack.c.l.b16 %v704
      %v749 = vunpack.c.l.b16 %v705
      %v750 = vunpack.c.l.b16 %v706
      %v751 = vunpack.c.l.b16 %v707
      %v752 = vunpack.c.l.b16 %v708
      %v753 = vunpack.c.l.b16 %v709
      %v754 = vunpack.c.l.b16 %v710
      %v755 = vpack.c.b16 %v740, %v739
      %v756 = vpack.c.b16 %v742, %v741
      %v757 = vpack.c.b16 %v744, %v743
      %v758 = vpack.c.b16 %v746, %v745
      %v759 = vpack.c.b16 %v748, %v747
      %v760 = vpack.c.b16 %v750, %v749
      %v761 = vpack.c.b16 %v752, %v751
      %v762 = vpack.c.b16 %v754, %v753
      %771 = vmatpush.bf16.msra.mxu0 %v762
      %772 = vmatpush.bf16.msra.mxu0 %v761
      %773 = vmatpush.bf16.msra.mxu0 %v760
      %774 = vmatpush.bf16.msra.mxu0 %v759
      %775 = vmatpush.bf16.msra.mxu0 %v758
      %776 = vmatpush.bf16.msra.mxu0 %v757
      %777 = vmatpush.bf16.msra.mxu0 %v756
      %778 = vmatpush.bf16.msra.mxu0 %v755
      %779 = vmatmul.bf16.gmra.mxu0 %v719
      %v780 = vpop.f32.mrf.mxu0
      %v781 = vadd.f32 0.0, %v780
      %v782 = vpop.f32.mrf.mxu0
      %v783 = vadd.f32 0.0, %v782
      %784 = vmatmul.bf16.gmra.mxu0 %v720
      %v785 = vpop.f32.mrf.mxu0
      %v786 = vadd.f32 0.0, %v785
      %v787 = vpop.f32.mrf.mxu0
      %v788 = vadd.f32 0.0, %v787
      %789 = vdwg.mxu0
      %v790 = vld [vmem:[#allocation2] sm:$0xff]
      %v791 = vld [vmem:[#allocation2 + $0x8] sm:$0xff]
      %v792 = vld [vmem:[#allocation2 + $0x10] sm:$0xff]
      %v793 = vld [vmem:[#allocation2 + $0x18] sm:$0xff]
      %v794 = vadd.f32 %v790, %v781
      %v795 = vadd.f32 %v791, %v783
      %v796 = vadd.f32 %v792, %v786
      %v797 = vadd.f32 %v793, %v788
      %798 = vst [vmem:[#allocation2] sm:$0xff] %v794
      %799 = vst [vmem:[#allocation2 + $0x8] sm:$0xff] %v795
      %800 = vst [vmem:[#allocation2 + $0x10] sm:$0xff] %v796
      %801 = vst [vmem:[#allocation2 + $0x18] sm:$0xff] %v797
      %s802 = scalar_lea.vmem %s333, 144
      %s803 = smul.addr %s350, 4
      %s804 = scalar_lea.vmem %s802, %s803
      %v805 = vld [vmem:[%s804] sm:$0xf]
      %v806 = vld [vmem:[%s804 + $0x4] sm:$0xf]
      %v807 = vld [vmem:[%s804 + $0x8] sm:$0xf]
      %v808 = vld [vmem:[%s804 + $0xc] sm:$0xf]
      %s809 = scalar_lea.vmem %s2, 256
      %v810 = vld [vmem:[%s809] sm:$0xf]
      %v811 = vld [vmem:[%s809 + $0x4] sm:$0xf]
      %v812 = vld [vmem:[%s809 + $0x8] sm:$0xf]
      %v813 = vld [vmem:[%s809 + $0xc] sm:$0xf]
      %v814 = vld [vmem:[%s809 + $0x10] sm:$0xf]
      %v815 = vld [vmem:[%s809 + $0x14] sm:$0xf]
      %v816 = vld [vmem:[%s809 + $0x18] sm:$0xf]
      %v817 = vld [vmem:[%s809 + $0x1c] sm:$0xf]
      %v818 = vld [vmem:[%s809 + $0x20] sm:$0xf]
      %v819 = vld [vmem:[%s809 + $0x24] sm:$0xf]
      %v820 = vld [vmem:[%s809 + $0x28] sm:$0xf]
      %v821 = vld [vmem:[%s809 + $0x2c] sm:$0xf]
      %v822 = vld [vmem:[%s809 + $0x30] sm:$0xf]
      %v823 = vld [vmem:[%s809 + $0x34] sm:$0xf]
      %v824 = vld [vmem:[%s809 + $0x38] sm:$0xf]
      %v825 = vld [vmem:[%s809 + $0x3c] sm:$0xf]
      %v830 = vunpack.c.l.b16 %v805
      %v831 = vunpack.c.l.b16 %v806
      %v832 = vunpack.c.l.b16 %v807
      %v833 = vunpack.c.l.b16 %v808
      %v834 = vpack.c.b16 %v831, %v830
      %v835 = vpack.c.b16 %v833, %v832
      %v854 = vunpack.c.l.b16 %v810
      %v855 = vunpack.c.l.b16 %v811
      %v856 = vunpack.c.l.b16 %v812
      %v857 = vunpack.c.l.b16 %v813
      %v858 = vunpack.c.l.b16 %v814
      %v859 = vunpack.c.l.b16 %v815
      %v860 = vunpack.c.l.b16 %v816
      %v861 = vunpack.c.l.b16 %v817
      %v862 = vunpack.c.l.b16 %v818
      %v863 = vunpack.c.l.b16 %v819
      %v864 = vunpack.c.l.b16 %v820
      %v865 = vunpack.c.l.b16 %v821
      %v866 = vunpack.c.l.b16 %v822
      %v867 = vunpack.c.l.b16 %v823
      %v868 = vunpack.c.l.b16 %v824
      %v869 = vunpack.c.l.b16 %v825
      %v870 = vpack.c.b16 %v855, %v854
      %v871 = vpack.c.b16 %v857, %v856
      %v872 = vpack.c.b16 %v859, %v858
      %v873 = vpack.c.b16 %v861, %v860
      %v874 = vpack.c.b16 %v863, %v862
      %v875 = vpack.c.b16 %v865, %v864
      %v876 = vpack.c.b16 %v867, %v866
      %v877 = vpack.c.b16 %v869, %v868
      %886 = vmatpush.bf16.msra.mxu0 %v877
      %887 = vmatpush.bf16.msra.mxu0 %v876
      %888 = vmatpush.bf16.msra.mxu0 %v875
      %889 = vmatpush.bf16.msra.mxu0 %v874
      %890 = vmatpush.bf16.msra.mxu0 %v873
      %891 = vmatpush.bf16.msra.mxu0 %v872
      %892 = vmatpush.bf16.msra.mxu0 %v871
      %893 = vmatpush.bf16.msra.mxu0 %v870
      %894 = vmatmul.bf16.gmra.mxu0 %v834
      %v895 = vpop.f32.mrf.mxu0
      %v896 = vadd.f32 0.0, %v895
      %v897 = vpop.f32.mrf.mxu0
      %v898 = vadd.f32 0.0, %v897
      %899 = vmatmul.bf16.gmra.mxu0 %v835
      %v900 = vpop.f32.mrf.mxu0
      %v901 = vadd.f32 0.0, %v900
      %v902 = vpop.f32.mrf.mxu0
      %v903 = vadd.f32 0.0, %v902
      %904 = vdwg.mxu0
      %v905 = vld [vmem:[#allocation2] sm:$0xff]
      %v906 = vld [vmem:[#allocation2 + $0x8] sm:$0xff]
      %v907 = vld [vmem:[#allocation2 + $0x10] sm:$0xff]
      %v908 = vld [vmem:[#allocation2 + $0x18] sm:$0xff]
      %v909 = vadd.f32 %v905, %v896
      %v910 = vadd.f32 %v906, %v898
      %v911 = vadd.f32 %v907, %v901
      %v912 = vadd.f32 %v908, %v903
      %913 = vst [vmem:[#allocation2] sm:$0xff] %v909
      %914 = vst [vmem:[#allocation2 + $0x8] sm:$0xff] %v910
      %915 = vst [vmem:[#allocation2 + $0x10] sm:$0xff] %v911
      %916 = vst [vmem:[#allocation2 + $0x18] sm:$0xff] %v912
      %s917 = scalar_lea.vmem %s333, 180
      %s918 = smul.addr %s350, 4
      %s919 = scalar_lea.vmem %s917, %s918
      %v920 = vld [vmem:[%s919] sm:$0xf]
      %v921 = vld [vmem:[%s919 + $0x4] sm:$0xf]
      %v922 = vld [vmem:[%s919 + $0x8] sm:$0xf]
      %v923 = vld [vmem:[%s919 + $0xc] sm:$0xf]
      %s924 = scalar_lea.vmem %s2, 320
      %v925 = vld [vmem:[%s924] sm:$0xf]
      %v926 = vld [vmem:[%s924 + $0x4] sm:$0xf]
      %v927 = vld [vmem:[%s924 + $0x8] sm:$0xf]
      %v928 = vld [vmem:[%s924 + $0xc] sm:$0xf]
      %v929 = vld [vmem:[%s924 + $0x10] sm:$0xf]
      %v930 = vld [vmem:[%s924 + $0x14] sm:$0xf]
      %v931 = vld [vmem:[%s924 + $0x18] sm:$0xf]
      %v932 = vld [vmem:[%s924 + $0x1c] sm:$0xf]
      %v933 = vld [vmem:[%s924 + $0x20] sm:$0xf]
      %v934 = vld [vmem:[%s924 + $0x24] sm:$0xf]
      %v935 = vld [vmem:[%s924 + $0x28] sm:$0xf]
      %v936 = vld [vmem:[%s924 + $0x2c] sm:$0xf]
      %v937 = vld [vmem:[%s924 + $0x30] sm:$0xf]
      %v938 = vld [vmem:[%s924 + $0x34] sm:$0xf]
      %v939 = vld [vmem:[%s924 + $0x38] sm:$0xf]
      %v940 = vld [vmem:[%s924 + $0x3c] sm:$0xf]
      %v945 = vunpack.c.l.b16 %v920
      %v946 = vunpack.c.l.b16 %v921
      %v947 = vunpack.c.l.b16 %v922
      %v948 = vunpack.c.l.b16 %v923
      %v949 = vpack.c.b16 %v946, %v945
      %v950 = vpack.c.b16 %v948, %v947
      %v969 = vunpack.c.l.b16 %v925
      %v970 = vunpack.c.l.b16 %v926
      %v971 = vunpack.c.l.b16 %v927
      %v972 = vunpack.c.l.b16 %v928
      %v973 = vunpack.c.l.b16 %v929
      %v974 = vunpack.c.l.b16 %v930
      %v975 = vunpack.c.l.b16 %v931
      %v976 = vunpack.c.l.b16 %v932
      %v977 = vunpack.c.l.b16 %v933
      %v978 = vunpack.c.l.b16 %v934
      %v979 = vunpack.c.l.b16 %v935
      %v980 = vunpack.c.l.b16 %v936
      %v981 = vunpack.c.l.b16 %v937
      %v982 = vunpack.c.l.b16 %v938
      %v983 = vunpack.c.l.b16 %v939
      %v984 = vunpack.c.l.b16 %v940
      %v985 = vpack.c.b16 %v970, %v969
      %v986 = vpack.c.b16 %v972, %v971
      %v987 = vpack.c.b16 %v974, %v973
      %v988 = vpack.c.b16 %v976, %v975
      %v989 = vpack.c.b16 %v978, %v977
      %v990 = vpack.c.b16 %v980, %v979
      %v991 = vpack.c.b16 %v982, %v981
      %v992 = vpack.c.b16 %v984, %v983
      %1001 = vmatpush.bf16.msra.mxu0 %v992
      %1002 = vmatpush.bf16.msra.mxu0 %v991
      %1003 = vmatpush.bf16.msra.mxu0 %v990
      %1004 = vmatpush.bf16.msra.mxu0 %v989
      %1005 = vmatpush.bf16.msra.mxu0 %v988
      %1006 = vmatpush.bf16.msra.mxu0 %v987
      %1007 = vmatpush.bf16.msra.mxu0 %v986
      %1008 = vmatpush.bf16.msra.mxu0 %v985
      %1009 = vmatmul.bf16.gmra.mxu0 %v949
      %v1010 = vpop.f32.mrf.mxu0
      %v1011 = vadd.f32 0.0, %v1010
      %v1012 = vpop.f32.mrf.mxu0
      %v1013 = vadd.f32 0.0, %v1012
      %1014 = vmatmul.bf16.gmra.mxu0 %v950
      %v1015 = vpop.f32.mrf.mxu0
      %v1016 = vadd.f32 0.0, %v1015
      %v1017 = vpop.f32.mrf.mxu0
      %v1018 = vadd.f32 0.0, %v1017
      %1019 = vdwg.mxu0
      %v1020 = vld [vmem:[#allocation2] sm:$0xff]
      %v1021 = vld [vmem:[#allocation2 + $0x8] sm:$0xff]
      %v1022 = vld [vmem:[#allocation2 + $0x10] sm:$0xff]
      %v1023 = vld [vmem:[#allocation2 + $0x18] sm:$0xff]
      %v1024 = vadd.f32 %v1020, %v1011
      %v1025 = vadd.f32 %v1021, %v1013
      %v1026 = vadd.f32 %v1022, %v1016
      %v1027 = vadd.f32 %v1023, %v1018
      %1028 = vst [vmem:[#allocation2] sm:$0xff] %v1024
      %1029 = vst [vmem:[#allocation2 + $0x8] sm:$0xff] %v1025
      %1030 = vst [vmem:[#allocation2 + $0x10] sm:$0xff] %v1026
      %1031 = vst [vmem:[#allocation2 + $0x18] sm:$0xff] %v1027
      %s1032 = sadd.s32 %s349, 8
      %s1033 = sshra.s32 %s1032, 3
      %s1034 = sand.u32 %s1032, 7
      %s1035 = smul.addr %s1033, 4
      %s1036 = scalar_lea.vmem %s333, %s1035
      %v1037 = vld [vmem:[%s1036] sm:$0xf]
      %v1038 = vld [vmem:[%s1036 + $0x4] sm:$0xf]
      %v1039 = vld [vmem:[%s1036 + $0x8] sm:$0xf]
      %v1040 = vld [vmem:[%s1036 + $0xc] sm:$0xf]
      %s1041 = scalar_lea.vmem %s2, 384
      %v1042 = vld [vmem:[%s1041] sm:$0xf]
      %v1043 = vld [vmem:[%s1041 + $0x4] sm:$0xf]
      %v1044 = vld [vmem:[%s1041 + $0x8] sm:$0xf]
      %v1045 = vld [vmem:[%s1041 + $0xc] sm:$0xf]
      %v1046 = vld [vmem:[%s1041 + $0x10] sm:$0xf]
      %v1047 = vld [vmem:[%s1041 + $0x14] sm:$0xf]
      %v1048 = vld [vmem:[%s1041 + $0x18] sm:$0xf]
      %v1049 = vld [vmem:[%s1041 + $0x1c] sm:$0xf]
      %v1050 = vld [vmem:[%s1041 + $0x20] sm:$0xf]
      %v1051 = vld [vmem:[%s1041 + $0x24] sm:$0xf]
      %v1052 = vld [vmem:[%s1041 + $0x28] sm:$0xf]
      %v1053 = vld [vmem:[%s1041 + $0x2c] sm:$0xf]
      %v1054 = vld [vmem:[%s1041 + $0x30] sm:$0xf]
      %v1055 = vld [vmem:[%s1041 + $0x34] sm:$0xf]
      %v1056 = vld [vmem:[%s1041 + $0x38] sm:$0xf]
      %v1057 = vld [vmem:[%s1041 + $0x3c] sm:$0xf]
      %v1062 = vunpack.c.l.b16 %v1037
      %v1063 = vunpack.c.l.b16 %v1038
      %v1064 = vunpack.c.l.b16 %v1039
      %v1065 = vunpack.c.l.b16 %v1040
      %v1066 = vpack.c.b16 %v1063, %v1062
      %v1067 = vpack.c.b16 %v1065, %v1064
      %v1086 = vunpack.c.l.b16 %v1042
      %v1087 = vunpack.c.l.b16 %v1043
      %v1088 = vunpack.c.l.b16 %v1044
      %v1089 = vunpack.c.l.b16 %v1045
      %v1090 = vunpack.c.l.b16 %v1046
      %v1091 = vunpack.c.l.b16 %v1047
      %v1092 = vunpack.c.l.b16 %v1048
      %v1093 = vunpack.c.l.b16 %v1049
      %v1094 = vunpack.c.l.b16 %v1050
      %v1095 = vunpack.c.l.b16 %v1051
      %v1096 = vunpack.c.l.b16 %v1052
      %v1097 = vunpack.c.l.b16 %v1053
      %v1098 = vunpack.c.l.b16 %v1054
      %v1099 = vunpack.c.l.b16 %v1055
      %v1100 = vunpack.c.l.b16 %v1056
      %v1101 = vunpack.c.l.b16 %v1057
      %v1102 = vpack.c.b16 %v1087, %v1086
      %v1103 = vpack.c.b16 %v1089, %v1088
      %v1104 = vpack.c.b16 %v1091, %v1090
      %v1105 = vpack.c.b16 %v1093, %v1092
      %v1106 = vpack.c.b16 %v1095, %v1094
      %v1107 = vpack.c.b16 %v1097, %v1096
      %v1108 = vpack.c.b16 %v1099, %v1098
      %v1109 = vpack.c.b16 %v1101, %v1100
      %1118 = vmatpush.bf16.msra.mxu0 %v1109
      %1119 = vmatpush.bf16.msra.mxu0 %v1108
      %1120 = vmatpush.bf16.msra.mxu0 %v1107
      %1121 = vmatpush.bf16.msra.mxu0 %v1106
      %1122 = vmatpush.bf16.msra.mxu0 %v1105
      %1123 = vmatpush.bf16.msra.mxu0 %v1104
      %1124 = vmatpush.bf16.msra.mxu0 %v1103
      %1125 = vmatpush.bf16.msra.mxu0 %v1102
      %1126 = vmatmul.bf16.gmra.mxu0 %v1066
      %v1127 = vpop.f32.mrf.mxu0
      %v1128 = vadd.f32 0.0, %v1127
      %v1129 = vpop.f32.mrf.mxu0
      %v1130 = vadd.f32 0.0, %v1129
      %1131 = vmatmul.bf16.gmra.mxu0 %v1067
      %v1132 = vpop.f32.mrf.mxu0
      %v1133 = vadd.f32 0.0, %v1132
      %v1134 = vpop.f32.mrf.mxu0
      %v1135 = vadd.f32 0.0, %v1134
      %1136 = vdwg.mxu0
      %v1137 = vld [vmem:[#allocation2] sm:$0xff]
      %v1138 = vld [vmem:[#allocation2 + $0x8] sm:$0xff]
      %v1139 = vld [vmem:[#allocation2 + $0x10] sm:$0xff]
      %v1140 = vld [vmem:[#allocation2 + $0x18] sm:$0xff]
      %v1141 = vadd.f32 %v1137, %v1128
      %v1142 = vadd.f32 %v1138, %v1130
      %v1143 = vadd.f32 %v1139, %v1133
      %v1144 = vadd.f32 %v1140, %v1135
      %1145 = vst [vmem:[#allocation2] sm:$0xff] %v1141
      %1146 = vst [vmem:[#allocation2 + $0x8] sm:$0xff] %v1142
      %1147 = vst [vmem:[#allocation2 + $0x10] sm:$0xff] %v1143
      %1148 = vst [vmem:[#allocation2 + $0x18] sm:$0xff] %v1144
      %s1149 = smul.addr %s1033, 4
      %s1150 = scalar_lea.vmem %s457, %s1149
      %v1151 = vld [vmem:[%s1150] sm:$0xf]
      %v1152 = vld [vmem:[%s1150 + $0x4] sm:$0xf]
      %v1153 = vld [vmem:[%s1150 + $0x8] sm:$0xf]
      %v1154 = vld [vmem:[%s1150 + $0xc] sm:$0xf]
      %s1155 = scalar_lea.vmem %s2, 448
      %v1156 = vld [vmem:[%s1155] sm:$0xf]
      %v1157 = vld [vmem:[%s1155 + $0x4] sm:$0xf]
      %v1158 = vld [vmem:[%s1155 + $0x8] sm:$0xf]
      %v1159 = vld [vmem:[%s1155 + $0xc] sm:$0xf]
      %v1160 = vld [vmem:[%s1155 + $0x10] sm:$0xf]
      %v1161 = vld [vmem:[%s1155 + $0x14] sm:$0xf]
      %v1162 = vld [vmem:[%s1155 + $0x18] sm:$0xf]
      %v1163 = vld [vmem:[%s1155 + $0x1c] sm:$0xf]
      %v1164 = vld [vmem:[%s1155 + $0x20] sm:$0xf]
      %v1165 = vld [vmem:[%s1155 + $0x24] sm:$0xf]
      %v1166 = vld [vmem:[%s1155 + $0x28] sm:$0xf]
      %v1167 = vld [vmem:[%s1155 + $0x2c] sm:$0xf]
      %v1168 = vld [vmem:[%s1155 + $0x30] sm:$0xf]
      %v1169 = vld [vmem:[%s1155 + $0x34] sm:$0xf]
      %v1170 = vld [vmem:[%s1155 + $0x38] sm:$0xf]
      %v1171 = vld [vmem:[%s1155 + $0x3c] sm:$0xf]
      %v1176 = vunpack.c.l.b16 %v1151
      %v1177 = vunpack.c.l.b16 %v1152
      %v1178 = vunpack.c.l.b16 %v1153
      %v1179 = vunpack.c.l.b16 %v1154
      %v1180 = vpack.c.b16 %v1177, %v1176
      %v1181 = vpack.c.b16 %v1179, %v1178
      %v1200 = vunpack.c.l.b16 %v1156
      %v1201 = vunpack.c.l.b16 %v1157
      %v1202 = vunpack.c.l.b16 %v1158
      %v1203 = vunpack.c.l.b16 %v1159
      %v1204 = vunpack.c.l.b16 %v1160
      %v1205 = vunpack.c.l.b16 %v1161
      %v1206 = vunpack.c.l.b16 %v1162
      %v1207 = vunpack.c.l.b16 %v1163
      %v1208 = vunpack.c.l.b16 %v1164
      %v1209 = vunpack.c.l.b16 %v1165
      %v1210 = vunpack.c.l.b16 %v1166
      %v1211 = vunpack.c.l.b16 %v1167
      %v1212 = vunpack.c.l.b16 %v1168
      %v1213 = vunpack.c.l.b16 %v1169
      %v1214 = vunpack.c.l.b16 %v1170
      %v1215 = vunpack.c.l.b16 %v1171
      %v1216 = vpack.c.b16 %v1201, %v1200
      %v1217 = vpack.c.b16 %v1203, %v1202
      %v1218 = vpack.c.b16 %v1205, %v1204
      %v1219 = vpack.c.b16 %v1207, %v1206
      %v1220 = vpack.c.b16 %v1209, %v1208
      %v1221 = vpack.c.b16 %v1211, %v1210
      %v1222 = vpack.c.b16 %v1213, %v1212
      %v1223 = vpack.c.b16 %v1215, %v1214
      %1232 = vmatpush.bf16.msra.mxu0 %v1223
      %1233 = vmatpush.bf16.msra.mxu0 %v1222
      %1234 = vmatpush.bf16.msra.mxu0 %v1221
      %1235 = vmatpush.bf16.msra.mxu0 %v1220
      %1236 = vmatpush.bf16.msra.mxu0 %v1219
      %1237 = vmatpush.bf16.msra.mxu0 %v1218
      %1238 = vmatpush.bf16.msra.mxu0 %v1217
      %1239 = vmatpush.bf16.msra.mxu0 %v1216
      %1240 = vmatmul.bf16.gmra.mxu0 %v1180
      %v1241 = vpop.f32.mrf.mxu0
      %v1242 = vadd.f32 0.0, %v1241
      %v1243 = vpop.f32.mrf.mxu0
      %v1244 = vadd.f32 0.0, %v1243
      %1245 = vmatmul.bf16.gmra.mxu0 %v1181
      %v1246 = vpop.f32.mrf.mxu0
      %v1247 = vadd.f32 0.0, %v1246
      %v1248 = vpop.f32.mrf.mxu0
      %v1249 = vadd.f32 0.0, %v1248
      %1250 = vdwg.mxu0
      %v1251 = vld [vmem:[#allocation2] sm:$0xff]
      %v1252 = vld [vmem:[#allocation2 + $0x8] sm:$0xff]
      %v1253 = vld [vmem:[#allocation2 + $0x10] sm:$0xff]
      %v1254 = vld [vmem:[#allocation2 + $0x18] sm:$0xff]
      %v1255 = vadd.f32 %v1251, %v1242
      %v1256 = vadd.f32 %v1252, %v1244
      %v1257 = vadd.f32 %v1253, %v1247
      %v1258 = vadd.f32 %v1254, %v1249
      %1259 = vst [vmem:[#allocation2] sm:$0xff] %v1255
      %1260 = vst [vmem:[#allocation2 + $0x8] sm:$0xff] %v1256
      %1261 = vst [vmem:[#allocation2 + $0x10] sm:$0xff] %v1257
      %1262 = vst [vmem:[#allocation2 + $0x18] sm:$0xff] %v1258
      %s1263 = smul.addr %s1033, 4
      %s1264 = scalar_lea.vmem %s572, %s1263
      %v1265 = vld [vmem:[%s1264] sm:$0xf]
      %v1266 = vld [vmem:[%s1264 + $0x4] sm:$0xf]
      %v1267 = vld [vmem:[%s1264 + $0x8] sm:$0xf]
      %v1268 = vld [vmem:[%s1264 + $0xc] sm:$0xf]
      %s1269 = scalar_lea.vmem %s2, 512
      %v1270 = vld [vmem:[%s1269] sm:$0xf]
      %v1271 = vld [vmem:[%s1269 + $0x4] sm:$0xf]
      %v1272 = vld [vmem:[%s1269 + $0x8] sm:$0xf]
      %v1273 = vld [vmem:[%s1269 + $0xc] sm:$0xf]
      %v1274 = vld [vmem:[%s1269 + $0x10] sm:$0xf]
      %v1275 = vld [vmem:[%s1269 + $0x14] sm:$0xf]
      %v1276 = vld [vmem:[%s1269 + $0x18] sm:$0xf]
      %v1277 = vld [vmem:[%s1269 + $0x1c] sm:$0xf]
      %v1278 = vld [vmem:[%s1269 + $0x20] sm:$0xf]
      %v1279 = vld [vmem:[%s1269 + $0x24] sm:$0xf]
      %v1280 = vld [vmem:[%s1269 + $0x28] sm:$0xf]
      %v1281 = vld [vmem:[%s1269 + $0x2c] sm:$0xf]
      %v1282 = vld [vmem:[%s1269 + $0x30] sm:$0xf]
      %v1283 = vld [vmem:[%s1269 + $0x34] sm:$0xf]
      %v1284 = vld [vmem:[%s1269 + $0x38] sm:$0xf]
      %v1285 = vld [vmem:[%s1269 + $0x3c] sm:$0xf]
      %v1290 = vunpack.c.l.b16 %v1265
      %v1291 = vunpack.c.l.b16 %v1266
      %v1292 = vunpack.c.l.b16 %v1267
      %v1293 = vunpack.c.l.b16 %v1268
      %v1294 = vpack.c.b16 %v1291, %v1290
      %v1295 = vpack.c.b16 %v1293, %v1292
      %v1314 = vunpack.c.l.b16 %v1270
      %v1315 = vunpack.c.l.b16 %v1271
      %v1316 = vunpack.c.l.b16 %v1272
      %v1317 = vunpack.c.l.b16 %v1273
      %v1318 = vunpack.c.l.b16 %v1274
      %v1319 = vunpack.c.l.b16 %v1275
      %v1320 = vunpack.c.l.b16 %v1276
      %v1321 = vunpack.c.l.b16 %v1277
      %v1322 = vunpack.c.l.b16 %v1278
      %v1323 = vunpack.c.l.b16 %v1279
      %v1324 = vunpack.c.l.b16 %v1280
      %v1325 = vunpack.c.l.b16 %v1281
      %v1326 = vunpack.c.l.b16 %v1282
      %v1327 = vunpack.c.l.b16 %v1283
      %v1328 = vunpack.c.l.b16 %v1284
      %v1329 = vunpack.c.l.b16 %v1285
      %v1330 = vpack.c.b16 %v1315, %v1314
      %v1331 = vpack.c.b16 %v1317, %v1316
      %v1332 = vpack.c.b16 %v1319, %v1318
      %v1333 = vpack.c.b16 %v1321, %v1320
      %v1334 = vpack.c.b16 %v1323, %v1322
      %v1335 = vpack.c.b16 %v1325, %v1324
      %v1336 = vpack.c.b16 %v1327, %v1326
      %v1337 = vpack.c.b16 %v1329, %v1328
      %1346 = vmatpush.bf16.msra.mxu0 %v1337
      %1347 = vmatpush.bf16.msra.mxu0 %v1336
      %1348 = vmatpush.bf16.msra.mxu0 %v1335
      %1349 = vmatpush.bf16.msra.mxu0 %v1334
      %1350 = vmatpush.bf16.msra.mxu0 %v1333
      %1351 = vmatpush.bf16.msra.mxu0 %v1332
      %1352 = vmatpush.bf16.msra.mxu0 %v1331
      %1353 = vmatpush.bf16.msra.mxu0 %v1330
      %1354 = vmatmul.bf16.gmra.mxu0 %v1294
      %v1355 = vpop.f32.mrf.mxu0
      %v1356 = vadd.f32 0.0, %v1355
      %v1357 = vpop.f32.mrf.mxu0
      %v1358 = vadd.f32 0.0, %v1357
      %1359 = vmatmul.bf16.gmra.mxu0 %v1295
      %v1360 = vpop.f32.mrf.mxu0
      %v1361 = vadd.f32 0.0, %v1360
      %v1362 = vpop.f32.mrf.mxu0
      %v1363 = vadd.f32 0.0, %v1362
      %1364 = vdwg.mxu0
      %v1365 = vld [vmem:[#allocation2] sm:$0xff]
      %v1366 = vld [vmem:[#allocation2 + $0x8] sm:$0xff]
      %v1367 = vld [vmem:[#allocation2 + $0x10] sm:$0xff]
      %v1368 = vld [vmem:[#allocation2 + $0x18] sm:$0xff]
      %v1369 = vadd.f32 %v1365, %v1356
      %v1370 = vadd.f32 %v1366, %v1358
      %v1371 = vadd.f32 %v1367, %v1361
      %v1372 = vadd.f32 %v1368, %v1363
      %1373 = vst [vmem:[#allocation2] sm:$0xff] %v1369
      %1374 = vst [vmem:[#allocation2 + $0x8] sm:$0xff] %v1370
      %1375 = vst [vmem:[#allocation2 + $0x10] sm:$0xff] %v1371
      %1376 = vst [vmem:[#allocation2 + $0x18] sm:$0xff] %v1372
      %v1377 = vld [vmem:[#allocation2] sm:$0xff]
      %v1378 = vld [vmem:[#allocation2 + $0x8] sm:$0xff]
      %v1379 = vld [vmem:[#allocation2 + $0x10] sm:$0xff]
      %v1380 = vld [vmem:[#allocation2 + $0x18] sm:$0xff]
      %v1381 = vld [vmem:[%s3] sm:$0x1]
      %v1383 = vperm.slane %v1381, 0
      %v1385 = vadd.f32 %v1377, %v1383
      %v1386 = vadd.f32 %v1378, %v1383
      %v1387 = vadd.f32 %v1379, %v1383
      %v1388 = vadd.f32 %v1380, %v1383
      %v1389 = vmax.f32 %v1385, 0.0
      %v1390 = vmax.f32 %v1386, 0.0
      %v1391 = vmax.f32 %v1387, 0.0
      %v1392 = vmax.f32 %v1388, 0.0
      %v1393 = vpack.c.bf16 %v1390, %v1389
      %v1394 = vpack.c.bf16 %v1392, %v1391
      %v1395 = vld [vmem:[%s4] sm:$0xf]
      %v1396 = vld [vmem:[%s4 + $0x4] sm:$0xf]
      %v1397 = vld [vmem:[%s4 + $0x8] sm:$0xf]
      %v1398 = vld [vmem:[%s4 + $0xc] sm:$0xf]
      %v1399 = vld [vmem:[%s4 + $0x10] sm:$0xf]
      %v1400 = vld [vmem:[%s4 + $0x14] sm:$0xf]
      %v1401 = vld [vmem:[%s4 + $0x18] sm:$0xf]
      %v1402 = vld [vmem:[%s4 + $0x1c] sm:$0xf]
      %v1403 = vld [vmem:[%s4 + $0x20] sm:$0xf]
      %v1404 = vld [vmem:[%s4 + $0x24] sm:$0xf]
      %v1405 = vld [vmem:[%s4 + $0x28] sm:$0xf]
      %v1406 = vld [vmem:[%s4 + $0x2c] sm:$0xf]
      %v1407 = vld [vmem:[%s4 + $0x30] sm:$0xf]
      %v1408 = vld [vmem:[%s4 + $0x34] sm:$0xf]
      %v1409 = vld [vmem:[%s4 + $0x38] sm:$0xf]
      %v1410 = vld [vmem:[%s4 + $0x3c] sm:$0xf]
      %v1411 = vld [vmem:[%s5] sm:$0x1]
      %v1413 = vperm.slane %v1411, 0
      %v1431 = vunpack.c.l.b16 %v1395
      %v1432 = vunpack.c.l.b16 %v1396
      %v1433 = vunpack.c.l.b16 %v1397
      %v1434 = vunpack.c.l.b16 %v1398
      %v1435 = vunpack.c.l.b16 %v1399
      %v1436 = vunpack.c.l.b16 %v1400
      %v1437 = vunpack.c.l.b16 %v1401
      %v1438 = vunpack.c.l.b16 %v1402
      %v1439 = vunpack.c.l.b16 %v1403
      %v1440 = vunpack.c.l.b16 %v1404
      %v1441 = vunpack.c.l.b16 %v1405
      %v1442 = vunpack.c.l.b16 %v1406
      %v1443 = vunpack.c.l.b16 %v1407
      %v1444 = vunpack.c.l.b16 %v1408
      %v1445 = vunpack.c.l.b16 %v1409
      %v1446 = vunpack.c.l.b16 %v1410
      %v1447 = vpack.c.b16 %v1432, %v1431
      %v1448 = vpack.c.b16 %v1434, %v1433
      %v1449 = vpack.c.b16 %v1436, %v1435
      %v1450 = vpack.c.b16 %v1438, %v1437
      %v1451 = vpack.c.b16 %v1440, %v1439
      %v1452 = vpack.c.b16 %v1442, %v1441
      %v1453 = vpack.c.b16 %v1444, %v1443
      %v1454 = vpack.c.b16 %v1446, %v1445
      %1463 = vmatpush.bf16.msra.mxu0 %v1454
      %1464 = vmatpush.bf16.msra.mxu0 %v1453
      %1465 = vmatpush.bf16.msra.mxu0 %v1452
      %1466 = vmatpush.bf16.msra.mxu0 %v1451
      %1467 = vmatpush.bf16.msra.mxu0 %v1450
      %1468 = vmatpush.bf16.msra.mxu0 %v1449
      %1469 = vmatpush.bf16.msra.mxu0 %v1448
      %1470 = vmatpush.bf16.msra.mxu0 %v1447
      %1471 = vmatmul.bf16.gmra.mxu0 %v1393
      %v1472 = vpop.f32.mrf.mxu0
      %v1473 = vadd.f32 %v1413, %v1472
      %v1474 = vpop.f32.mrf.mxu0
      %v1475 = vadd.f32 %v1413, %v1474
      %1476 = vmatmul.bf16.gmra.mxu0 %v1394
      %v1477 = vpop.f32.mrf.mxu0
      %v1478 = vadd.f32 %v1413, %v1477
      %v1479 = vpop.f32.mrf.mxu0
      %v1480 = vadd.f32 %v1413, %v1479
      %1481 = vdwg.mxu0
      %v1482 = vld [vmem:[%s7] sm:$0x1]
      %v1484 = vperm.slane %v1482, 0
      %v1486 = vadd.f32 %v1473, %v1484
      %v1487 = vadd.f32 %v1475, %v1484
      %v1488 = vadd.f32 %v1478, %v1484
      %v1489 = vadd.f32 %v1480, %v1484
      %1490 = vst [vmem:[#allocation3] sm:$0xff] %v1486
      %1491 = vst [vmem:[#allocation3 + $0x8] sm:$0xff] %v1487
      %1492 = vst [vmem:[#allocation3 + $0x10] sm:$0xff] %v1488
      %1493 = vst [vmem:[#allocation3 + $0x18] sm:$0xff] %v1489
      %s1494 = smul.addr %s350, 4
      %s1495 = scalar_lea.vmem %s338, %s1494
      %v1496 = vld [vmem:[%s1495] sm:$0xf]
      %v1497 = vld [vmem:[%s1495 + $0x4] sm:$0xf]
      %v1498 = vld [vmem:[%s1495 + $0x8] sm:$0xf]
      %v1499 = vld [vmem:[%s1495 + $0xc] sm:$0xf]
      %v1500 = vld [vmem:[#allocation3] sm:$0xff]
      %v1501 = vld [vmem:[#allocation3 + $0x8] sm:$0xff]
      %v1502 = vld [vmem:[#allocation3 + $0x10] sm:$0xff]
      %v1503 = vld [vmem:[#allocation3 + $0x18] sm:$0xff]
      %v1504 = vld [vmem:[%s6] sm:$0xf]
      %v1505 = vld [vmem:[%s6 + $0x4] sm:$0xf]
      %v1506 = vld [vmem:[%s6 + $0x8] sm:$0xf]
      %v1507 = vld [vmem:[%s6 + $0xc] sm:$0xf]
      %v1508 = vld [vmem:[%s6 + $0x10] sm:$0xf]
      %v1509 = vld [vmem:[%s6 + $0x14] sm:$0xf]
      %v1510 = vld [vmem:[%s6 + $0x18] sm:$0xf]
      %v1511 = vld [vmem:[%s6 + $0x1c] sm:$0xf]
      %v1512 = vld [vmem:[%s6 + $0x20] sm:$0xf]
      %v1513 = vld [vmem:[%s6 + $0x24] sm:$0xf]
      %v1514 = vld [vmem:[%s6 + $0x28] sm:$0xf]
      %v1515 = vld [vmem:[%s6 + $0x2c] sm:$0xf]
      %v1516 = vld [vmem:[%s6 + $0x30] sm:$0xf]
      %v1517 = vld [vmem:[%s6 + $0x34] sm:$0xf]
      %v1518 = vld [vmem:[%s6 + $0x38] sm:$0xf]
      %v1519 = vld [vmem:[%s6 + $0x3c] sm:$0xf]
      %v1524 = vunpack.c.l.b16 %v1496
      %v1525 = vunpack.c.l.b16 %v1497
      %v1526 = vunpack.c.l.b16 %v1498
      %v1527 = vunpack.c.l.b16 %v1499
      %v1528 = vpack.c.b16 %v1525, %v1524
      %v1529 = vpack.c.b16 %v1527, %v1526
      %v1548 = vunpack.c.l.b16 %v1504
      %v1549 = vunpack.c.l.b16 %v1505
      %v1550 = vunpack.c.l.b16 %v1506
      %v1551 = vunpack.c.l.b16 %v1507
      %v1552 = vunpack.c.l.b16 %v1508
      %v1553 = vunpack.c.l.b16 %v1509
      %v1554 = vunpack.c.l.b16 %v1510
      %v1555 = vunpack.c.l.b16 %v1511
      %v1556 = vunpack.c.l.b16 %v1512
      %v1557 = vunpack.c.l.b16 %v1513
      %v1558 = vunpack.c.l.b16 %v1514
      %v1559 = vunpack.c.l.b16 %v1515
      %v1560 = vunpack.c.l.b16 %v1516
      %v1561 = vunpack.c.l.b16 %v1517
      %v1562 = vunpack.c.l.b16 %v1518
      %v1563 = vunpack.c.l.b16 %v1519
      %v1564 = vpack.c.b16 %v1549, %v1548
      %v1565 = vpack.c.b16 %v1551, %v1550
      %v1566 = vpack.c.b16 %v1553, %v1552
      %v1567 = vpack.c.b16 %v1555, %v1554
      %v1568 = vpack.c.b16 %v1557, %v1556
      %v1569 = vpack.c.b16 %v1559, %v1558
      %v1570 = vpack.c.b16 %v1561, %v1560
      %v1571 = vpack.c.b16 %v1563, %v1562
      %1580 = vmatpush.bf16.msra.mxu0 %v1571
      %1581 = vmatpush.bf16.msra.mxu0 %v1570
      %1582 = vmatpush.bf16.msra.mxu0 %v1569
      %1583 = vmatpush.bf16.msra.mxu0 %v1568
      %1584 = vmatpush.bf16.msra.mxu0 %v1567
      %1585 = vmatpush.bf16.msra.mxu0 %v1566
      %1586 = vmatpush.bf16.msra.mxu0 %v1565
      %1587 = vmatpush.bf16.msra.mxu0 %v1564
      %1588 = vmatmul.bf16.gmra.mxu0 %v1528
      %v1589 = vpop.f32.mrf.mxu0
      %v1590 = vadd.f32 0.0, %v1589
      %v1591 = vpop.f32.mrf.mxu0
      %v1592 = vadd.f32 0.0, %v1591
      %1593 = vmatmul.bf16.gmra.mxu0 %v1529
      %v1594 = vpop.f32.mrf.mxu0
      %v1595 = vadd.f32 0.0, %v1594
      %v1596 = vpop.f32.mrf.mxu0
      %v1597 = vadd.f32 0.0, %v1596
      %1598 = vdwg.mxu0
      %v1599 = vadd.f32 %v1500, %v1590
      %v1600 = vadd.f32 %v1501, %v1592
      %v1601 = vadd.f32 %v1502, %v1595
      %v1602 = vadd.f32 %v1503, %v1597
      %1603 = vst [vmem:[#allocation3] sm:$0xff] %v1599
      %1604 = vst [vmem:[#allocation3 + $0x8] sm:$0xff] %v1600
      %1605 = vst [vmem:[#allocation3 + $0x10] sm:$0xff] %v1601
      %1606 = vst [vmem:[#allocation3 + $0x18] sm:$0xff] %v1602
      %s1607 = scalar_lea.vmem %s338, 36
      %s1608 = smul.addr %s350, 4
      %s1609 = scalar_lea.vmem %s1607, %s1608
      %v1610 = vld [vmem:[%s1609] sm:$0xf]
      %v1611 = vld [vmem:[%s1609 + $0x4] sm:$0xf]
      %v1612 = vld [vmem:[%s1609 + $0x8] sm:$0xf]
      %v1613 = vld [vmem:[%s1609 + $0xc] sm:$0xf]
      %v1614 = vld [vmem:[#allocation3] sm:$0xff]
      %v1615 = vld [vmem:[#allocation3 + $0x8] sm:$0xff]
      %v1616 = vld [vmem:[#allocation3 + $0x10] sm:$0xff]
      %v1617 = vld [vmem:[#allocation3 + $0x18] sm:$0xff]
      %s1618 = scalar_lea.vmem %s6, 64
      %v1619 = vld [vmem:[%s1618] sm:$0xf]
      %v1620 = vld [vmem:[%s1618 + $0x4] sm:$0xf]
      %v1621 = vld [vmem:[%s1618 + $0x8] sm:$0xf]
      %v1622 = vld [vmem:[%s1618 + $0xc] sm:$0xf]
      %v1623 = vld [vmem:[%s1618 + $0x10] sm:$0xf]
      %v1624 = vld [vmem:[%s1618 + $0x14] sm:$0xf]
      %v1625 = vld [vmem:[%s1618 + $0x18] sm:$0xf]
      %v1626 = vld [vmem:[%s1618 + $0x1c] sm:$0xf]
      %v1627 = vld [vmem:[%s1618 + $0x20] sm:$0xf]
      %v1628 = vld [vmem:[%s1618 + $0x24] sm:$0xf]
      %v1629 = vld [vmem:[%s1618 + $0x28] sm:$0xf]
      %v1630 = vld [vmem:[%s1618 + $0x2c] sm:$0xf]
      %v1631 = vld [vmem:[%s1618 + $0x30] sm:$0xf]
      %v1632 = vld [vmem:[%s1618 + $0x34] sm:$0xf]
      %v1633 = vld [vmem:[%s1618 + $0x38] sm:$0xf]
      %v1634 = vld [vmem:[%s1618 + $0x3c] sm:$0xf]
      %v1639 = vunpack.c.l.b16 %v1610
      %v1640 = vunpack.c.l.b16 %v1611
      %v1641 = vunpack.c.l.b16 %v1612
      %v1642 = vunpack.c.l.b16 %v1613
      %v1643 = vpack.c.b16 %v1640, %v1639
      %v1644 = vpack.c.b16 %v1642, %v1641
      %v1663 = vunpack.c.l.b16 %v1619
      %v1664 = vunpack.c.l.b16 %v1620
      %v1665 = vunpack.c.l.b16 %v1621
      %v1666 = vunpack.c.l.b16 %v1622
      %v1667 = vunpack.c.l.b16 %v1623
      %v1668 = vunpack.c.l.b16 %v1624
      %v1669 = vunpack.c.l.b16 %v1625
      %v1670 = vunpack.c.l.b16 %v1626
      %v1671 = vunpack.c.l.b16 %v1627
      %v1672 = vunpack.c.l.b16 %v1628
      %v1673 = vunpack.c.l.b16 %v1629
      %v1674 = vunpack.c.l.b16 %v1630
      %v1675 = vunpack.c.l.b16 %v1631
      %v1676 = vunpack.c.l.b16 %v1632
      %v1677 = vunpack.c.l.b16 %v1633
      %v1678 = vunpack.c.l.b16 %v1634
      %v1679 = vpack.c.b16 %v1664, %v1663
      %v1680 = vpack.c.b16 %v1666, %v1665
      %v1681 = vpack.c.b16 %v1668, %v1667
      %v1682 = vpack.c.b16 %v1670, %v1669
      %v1683 = vpack.c.b16 %v1672, %v1671
      %v1684 = vpack.c.b16 %v1674, %v1673
      %v1685 = vpack.c.b16 %v1676, %v1675
      %v1686 = vpack.c.b16 %v1678, %v1677
      %1695 = vmatpush.bf16.msra.mxu0 %v1686
      %1696 = vmatpush.bf16.msra.mxu0 %v1685
      %1697 = vmatpush.bf16.msra.mxu0 %v1684
      %1698 = vmatpush.bf16.msra.mxu0 %v1683
      %1699 = vmatpush.bf16.msra.mxu0 %v1682
      %1700 = vmatpush.bf16.msra.mxu0 %v1681
      %1701 = vmatpush.bf16.msra.mxu0 %v1680
      %1702 = vmatpush.bf16.msra.mxu0 %v1679
      %1703 = vmatmul.bf16.gmra.mxu0 %v1643
      %v1704 = vpop.f32.mrf.mxu0
      %v1705 = vadd.f32 0.0, %v1704
      %v1706 = vpop.f32.mrf.mxu0
      %v1707 = vadd.f32 0.0, %v1706
      %1708 = vmatmul.bf16.gmra.mxu0 %v1644
      %v1709 = vpop.f32.mrf.mxu0
      %v1710 = vadd.f32 0.0, %v1709
      %v1711 = vpop.f32.mrf.mxu0
      %v1712 = vadd.f32 0.0, %v1711
      %1713 = vdwg.mxu0
      %v1714 = vadd.f32 %v1614, %v1705
      %v1715 = vadd.f32 %v1615, %v1707
      %v1716 = vadd.f32 %v1616, %v1710
      %v1717 = vadd.f32 %v1617, %v1712
      %1718 = vst [vmem:[#allocation3] sm:$0xff] %v1714
      %1719 = vst [vmem:[#allocation3 + $0x8] sm:$0xff] %v1715
      %1720 = vst [vmem:[#allocation3 + $0x10] sm:$0xff] %v1716
      %1721 = vst [vmem:[#allocation3 + $0x18] sm:$0xff] %v1717
      %s1722 = scalar_lea.vmem %s338, 72
      %s1723 = smul.addr %s350, 4
      %s1724 = scalar_lea.vmem %s1722, %s1723
      %v1725 = vld [vmem:[%s1724] sm:$0xf]
      %v1726 = vld [vmem:[%s1724 + $0x4] sm:$0xf]
      %v1727 = vld [vmem:[%s1724 + $0x8] sm:$0xf]
      %v1728 = vld [vmem:[%s1724 + $0xc] sm:$0xf]
      %v1729 = vld [vmem:[#allocation3] sm:$0xff]
      %v1730 = vld [vmem:[#allocation3 + $0x8] sm:$0xff]
      %v1731 = vld [vmem:[#allocation3 + $0x10] sm:$0xff]
      %v1732 = vld [vmem:[#allocation3 + $0x18] sm:$0xff]
      %s1733 = scalar_lea.vmem %s6, 128
      %v1734 = vld [vmem:[%s1733] sm:$0xf]
      %v1735 = vld [vmem:[%s1733 + $0x4] sm:$0xf]
      %v1736 = vld [vmem:[%s1733 + $0x8] sm:$0xf]
      %v1737 = vld [vmem:[%s1733 + $0xc] sm:$0xf]
      %v1738 = vld [vmem:[%s1733 + $0x10] sm:$0xf]
      %v1739 = vld [vmem:[%s1733 + $0x14] sm:$0xf]
      %v1740 = vld [vmem:[%s1733 + $0x18] sm:$0xf]
      %v1741 = vld [vmem:[%s1733 + $0x1c] sm:$0xf]
      %v1742 = vld [vmem:[%s1733 + $0x20] sm:$0xf]
      %v1743 = vld [vmem:[%s1733 + $0x24] sm:$0xf]
      %v1744 = vld [vmem:[%s1733 + $0x28] sm:$0xf]
      %v1745 = vld [vmem:[%s1733 + $0x2c] sm:$0xf]
      %v1746 = vld [vmem:[%s1733 + $0x30] sm:$0xf]
      %v1747 = vld [vmem:[%s1733 + $0x34] sm:$0xf]
      %v1748 = vld [vmem:[%s1733 + $0x38] sm:$0xf]
      %v1749 = vld [vmem:[%s1733 + $0x3c] sm:$0xf]
      %v1754 = vunpack.c.l.b16 %v1725
      %v1755 = vunpack.c.l.b16 %v1726
      %v1756 = vunpack.c.l.b16 %v1727
      %v1757 = vunpack.c.l.b16 %v1728
      %v1758 = vpack.c.b16 %v1755, %v1754
      %v1759 = vpack.c.b16 %v1757, %v1756
      %v1778 = vunpack.c.l.b16 %v1734
      %v1779 = vunpack.c.l.b16 %v1735
      %v1780 = vunpack.c.l.b16 %v1736
      %v1781 = vunpack.c.l.b16 %v1737
      %v1782 = vunpack.c.l.b16 %v1738
      %v1783 = vunpack.c.l.b16 %v1739
      %v1784 = vunpack.c.l.b16 %v1740
      %v1785 = vunpack.c.l.b16 %v1741
      %v1786 = vunpack.c.l.b16 %v1742
      %v1787 = vunpack.c.l.b16 %v1743
      %v1788 = vunpack.c.l.b16 %v1744
      %v1789 = vunpack.c.l.b16 %v1745
      %v1790 = vunpack.c.l.b16 %v1746
      %v1791 = vunpack.c.l.b16 %v1747
      %v1792 = vunpack.c.l.b16 %v1748
      %v1793 = vunpack.c.l.b16 %v1749
      %v1794 = vpack.c.b16 %v1779, %v1778
      %v1795 = vpack.c.b16 %v1781, %v1780
      %v1796 = vpack.c.b16 %v1783, %v1782
      %v1797 = vpack.c.b16 %v1785, %v1784
      %v1798 = vpack.c.b16 %v1787, %v1786
      %v1799 = vpack.c.b16 %v1789, %v1788
      %v1800 = vpack.c.b16 %v1791, %v1790
      %v1801 = vpack.c.b16 %v1793, %v1792
      %1810 = vmatpush.bf16.msra.mxu0 %v1801
      %1811 = vmatpush.bf16.msra.mxu0 %v1800
      %1812 = vmatpush.bf16.msra.mxu0 %v1799
      %1813 = vmatpush.bf16.msra.mxu0 %v1798
      %1814 = vmatpush.bf16.msra.mxu0 %v1797
      %1815 = vmatpush.bf16.msra.mxu0 %v1796
      %1816 = vmatpush.bf16.msra.mxu0 %v1795
      %1817 = vmatpush.bf16.msra.mxu0 %v1794
      %1818 = vmatmul.bf16.gmra.mxu0 %v1758
      %v1819 = vpop.f32.mrf.mxu0
      %v1820 = vadd.f32 0.0, %v1819
      %v1821 = vpop.f32.mrf.mxu0
      %v1822 = vadd.f32 0.0, %v1821
      %1823 = vmatmul.bf16.gmra.mxu0 %v1759
      %v1824 = vpop.f32.mrf.mxu0
      %v1825 = vadd.f32 0.0, %v1824
      %v1826 = vpop.f32.mrf.mxu0
      %v1827 = vadd.f32 0.0, %v1826
      %1828 = vdwg.mxu0
      %v1829 = vadd.f32 %v1729, %v1820
      %v1830 = vadd.f32 %v1730, %v1822
      %v1831 = vadd.f32 %v1731, %v1825
      %v1832 = vadd.f32 %v1732, %v1827
      %1833 = vst [vmem:[#allocation3] sm:$0xff] %v1829
      %1834 = vst [vmem:[#allocation3 + $0x8] sm:$0xff] %v1830
      %1835 = vst [vmem:[#allocation3 + $0x10] sm:$0xff] %v1831
      %1836 = vst [vmem:[#allocation3 + $0x18] sm:$0xff] %v1832
      %s1837 = scalar_lea.vmem %s338, 108
      %s1838 = smul.addr %s350, 4
      %s1839 = scalar_lea.vmem %s1837, %s1838
      %v1840 = vld [vmem:[%s1839] sm:$0xf]
      %v1841 = vld [vmem:[%s1839 + $0x4] sm:$0xf]
      %v1842 = vld [vmem:[%s1839 + $0x8] sm:$0xf]
      %v1843 = vld [vmem:[%s1839 + $0xc] sm:$0xf]
      %v1844 = vld [vmem:[#allocation3] sm:$0xff]
      %v1845 = vld [vmem:[#allocation3 + $0x8] sm:$0xff]
      %v1846 = vld [vmem:[#allocation3 + $0x10] sm:$0xff]
      %v1847 = vld [vmem:[#allocation3 + $0x18] sm:$0xff]
      %s1848 = scalar_lea.vmem %s6, 192
      %v1849 = vld [vmem:[%s1848] sm:$0xf]
      %v1850 = vld [vmem:[%s1848 + $0x4] sm:$0xf]
      %v1851 = vld [vmem:[%s1848 + $0x8] sm:$0xf]
      %v1852 = vld [vmem:[%s1848 + $0xc] sm:$0xf]
      %v1853 = vld [vmem:[%s1848 + $0x10] sm:$0xf]
      %v1854 = vld [vmem:[%s1848 + $0x14] sm:$0xf]
      %v1855 = vld [vmem:[%s1848 + $0x18] sm:$0xf]
      %v1856 = vld [vmem:[%s1848 + $0x1c] sm:$0xf]
      %v1857 = vld [vmem:[%s1848 + $0x20] sm:$0xf]
      %v1858 = vld [vmem:[%s1848 + $0x24] sm:$0xf]
      %v1859 = vld [vmem:[%s1848 + $0x28] sm:$0xf]
      %v1860 = vld [vmem:[%s1848 + $0x2c] sm:$0xf]
      %v1861 = vld [vmem:[%s1848 + $0x30] sm:$0xf]
      %v1862 = vld [vmem:[%s1848 + $0x34] sm:$0xf]
      %v1863 = vld [vmem:[%s1848 + $0x38] sm:$0xf]
      %v1864 = vld [vmem:[%s1848 + $0x3c] sm:$0xf]
      %v1869 = vunpack.c.l.b16 %v1840
      %v1870 = vunpack.c.l.b16 %v1841
      %v1871 = vunpack.c.l.b16 %v1842
      %v1872 = vunpack.c.l.b16 %v1843
      %v1873 = vpack.c.b16 %v1870, %v1869
      %v1874 = vpack.c.b16 %v1872, %v1871
      %v1893 = vunpack.c.l.b16 %v1849
      %v1894 = vunpack.c.l.b16 %v1850
      %v1895 = vunpack.c.l.b16 %v1851
      %v1896 = vunpack.c.l.b16 %v1852
      %v1897 = vunpack.c.l.b16 %v1853
      %v1898 = vunpack.c.l.b16 %v1854
      %v1899 = vunpack.c.l.b16 %v1855
      %v1900 = vunpack.c.l.b16 %v1856
      %v1901 = vunpack.c.l.b16 %v1857
      %v1902 = vunpack.c.l.b16 %v1858
      %v1903 = vunpack.c.l.b16 %v1859
      %v1904 = vunpack.c.l.b16 %v1860
      %v1905 = vunpack.c.l.b16 %v1861
      %v1906 = vunpack.c.l.b16 %v1862
      %v1907 = vunpack.c.l.b16 %v1863
      %v1908 = vunpack.c.l.b16 %v1864
      %v1909 = vpack.c.b16 %v1894, %v1893
      %v1910 = vpack.c.b16 %v1896, %v1895
      %v1911 = vpack.c.b16 %v1898, %v1897
      %v1912 = vpack.c.b16 %v1900, %v1899
      %v1913 = vpack.c.b16 %v1902, %v1901
      %v1914 = vpack.c.b16 %v1904, %v1903
      %v1915 = vpack.c.b16 %v1906, %v1905
      %v1916 = vpack.c.b16 %v1908, %v1907
      %1925 = vmatpush.bf16.msra.mxu0 %v1916
      %1926 = vmatpush.bf16.msra.mxu0 %v1915
      %1927 = vmatpush.bf16.msra.mxu0 %v1914
      %1928 = vmatpush.bf16.msra.mxu0 %v1913
      %1929 = vmatpush.bf16.msra.mxu0 %v1912
      %1930 = vmatpush.bf16.msra.mxu0 %v1911
      %1931 = vmatpush.bf16.msra.mxu0 %v1910
      %1932 = vmatpush.bf16.msra.mxu0 %v1909
      %1933 = vmatmul.bf16.gmra.mxu0 %v1873
      %v1934 = vpop.f32.mrf.mxu0
      %v1935 = vadd.f32 0.0, %v1934
      %v1936 = vpop.f32.mrf.mxu0
      %v1937 = vadd.f32 0.0, %v1936
      %1938 = vmatmul.bf16.gmra.mxu0 %v1874
      %v1939 = vpop.f32.mrf.mxu0
      %v1940 = vadd.f32 0.0, %v1939
      %v1941 = vpop.f32.mrf.mxu0
      %v1942 = vadd.f32 0.0, %v1941
      %1943 = vdwg.mxu0
      %v1944 = vadd.f32 %v1844, %v1935
      %v1945 = vadd.f32 %v1845, %v1937
      %v1946 = vadd.f32 %v1846, %v1940
      %v1947 = vadd.f32 %v1847, %v1942
      %1948 = vst [vmem:[#allocation3] sm:$0xff] %v1944
      %1949 = vst [vmem:[#allocation3 + $0x8] sm:$0xff] %v1945
      %1950 = vst [vmem:[#allocation3 + $0x10] sm:$0xff] %v1946
      %1951 = vst [vmem:[#allocation3 + $0x18] sm:$0xff] %v1947
      %s1952 = scalar_lea.vmem %s338, 144
      %s1953 = smul.addr %s350, 4
      %s1954 = scalar_lea.vmem %s1952, %s1953
      %v1955 = vld [vmem:[%s1954] sm:$0xf]
      %v1956 = vld [vmem:[%s1954 + $0x4] sm:$0xf]
      %v1957 = vld [vmem:[%s1954 + $0x8] sm:$0xf]
      %v1958 = vld [vmem:[%s1954 + $0xc] sm:$0xf]
      %v1959 = vld [vmem:[#allocation3] sm:$0xff]
      %v1960 = vld [vmem:[#allocation3 + $0x8] sm:$0xff]
      %v1961 = vld [vmem:[#allocation3 + $0x10] sm:$0xff]
      %v1962 = vld [vmem:[#allocation3 + $0x18] sm:$0xff]
      %s1963 = scalar_lea.vmem %s6, 256
      %v1964 = vld [vmem:[%s1963] sm:$0xf]
      %v1965 = vld [vmem:[%s1963 + $0x4] sm:$0xf]
      %v1966 = vld [vmem:[%s1963 + $0x8] sm:$0xf]
      %v1967 = vld [vmem:[%s1963 + $0xc] sm:$0xf]
      %v1968 = vld [vmem:[%s1963 + $0x10] sm:$0xf]
      %v1969 = vld [vmem:[%s1963 + $0x14] sm:$0xf]
      %v1970 = vld [vmem:[%s1963 + $0x18] sm:$0xf]
      %v1971 = vld [vmem:[%s1963 + $0x1c] sm:$0xf]
      %v1972 = vld [vmem:[%s1963 + $0x20] sm:$0xf]
      %v1973 = vld [vmem:[%s1963 + $0x24] sm:$0xf]
      %v1974 = vld [vmem:[%s1963 + $0x28] sm:$0xf]
      %v1975 = vld [vmem:[%s1963 + $0x2c] sm:$0xf]
      %v1976 = vld [vmem:[%s1963 + $0x30] sm:$0xf]
      %v1977 = vld [vmem:[%s1963 + $0x34] sm:$0xf]
      %v1978 = vld [vmem:[%s1963 + $0x38] sm:$0xf]
      %v1979 = vld [vmem:[%s1963 + $0x3c] sm:$0xf]
      %v1984 = vunpack.c.l.b16 %v1955
      %v1985 = vunpack.c.l.b16 %v1956
      %v1986 = vunpack.c.l.b16 %v1957
      %v1987 = vunpack.c.l.b16 %v1958
      %v1988 = vpack.c.b16 %v1985, %v1984
      %v1989 = vpack.c.b16 %v1987, %v1986
      %v2008 = vunpack.c.l.b16 %v1964
      %v2009 = vunpack.c.l.b16 %v1965
      %v2010 = vunpack.c.l.b16 %v1966
      %v2011 = vunpack.c.l.b16 %v1967
      %v2012 = vunpack.c.l.b16 %v1968
      %v2013 = vunpack.c.l.b16 %v1969
      %v2014 = vunpack.c.l.b16 %v1970
      %v2015 = vunpack.c.l.b16 %v1971
      %v2016 = vunpack.c.l.b16 %v1972
      %v2017 = vunpack.c.l.b16 %v1973
      %v2018 = vunpack.c.l.b16 %v1974
      %v2019 = vunpack.c.l.b16 %v1975
      %v2020 = vunpack.c.l.b16 %v1976
      %v2021 = vunpack.c.l.b16 %v1977
      %v2022 = vunpack.c.l.b16 %v1978
      %v2023 = vunpack.c.l.b16 %v1979
      %v2024 = vpack.c.b16 %v2009, %v2008
      %v2025 = vpack.c.b16 %v2011, %v2010
      %v2026 = vpack.c.b16 %v2013, %v2012
      %v2027 = vpack.c.b16 %v2015, %v2014
      %v2028 = vpack.c.b16 %v2017, %v2016
      %v2029 = vpack.c.b16 %v2019, %v2018
      %v2030 = vpack.c.b16 %v2021, %v2020
      %v2031 = vpack.c.b16 %v2023, %v2022
      %2040 = vmatpush.bf16.msra.mxu0 %v2031
      %2041 = vmatpush.bf16.msra.mxu0 %v2030
      %2042 = vmatpush.bf16.msra.mxu0 %v2029
      %2043 = vmatpush.bf16.msra.mxu0 %v2028
      %2044 = vmatpush.bf16.msra.mxu0 %v2027
      %2045 = vmatpush.bf16.msra.mxu0 %v2026
      %2046 = vmatpush.bf16.msra.mxu0 %v2025
      %2047 = vmatpush.bf16.msra.mxu0 %v2024
      %2048 = vmatmul.bf16.gmra.mxu0 %v1988
      %v2049 = vpop.f32.mrf.mxu0
      %v2050 = vadd.f32 0.0, %v2049
      %v2051 = vpop.f32.mrf.mxu0
      %v2052 = vadd.f32 0.0, %v2051
      %2053 = vmatmul.bf16.gmra.mxu0 %v1989
      %v2054 = vpop.f32.mrf.mxu0
      %v2055 = vadd.f32 0.0, %v2054
      %v2056 = vpop.f32.mrf.mxu0
      %v2057 = vadd.f32 0.0, %v2056
      %2058 = vdwg.mxu0
      %v2059 = vadd.f32 %v1959, %v2050
      %v2060 = vadd.f32 %v1960, %v2052
      %v2061 = vadd.f32 %v1961, %v2055
      %v2062 = vadd.f32 %v1962, %v2057
      %2063 = vst [vmem:[#allocation3] sm:$0xff] %v2059
      %2064 = vst [vmem:[#allocation3 + $0x8] sm:$0xff] %v2060
      %2065 = vst [vmem:[#allocation3 + $0x10] sm:$0xff] %v2061
      %2066 = vst [vmem:[#allocation3 + $0x18] sm:$0xff] %v2062
      %s2067 = scalar_lea.vmem %s338, 180
      %s2068 = smul.addr %s350, 4
      %s2069 = scalar_lea.vmem %s2067, %s2068
      %v2070 = vld [vmem:[%s2069] sm:$0xf]
      %v2071 = vld [vmem:[%s2069 + $0x4] sm:$0xf]
      %v2072 = vld [vmem:[%s2069 + $0x8] sm:$0xf]
      %v2073 = vld [vmem:[%s2069 + $0xc] sm:$0xf]
      %v2074 = vld [vmem:[#allocation3] sm:$0xff]
      %v2075 = vld [vmem:[#allocation3 + $0x8] sm:$0xff]
      %v2076 = vld [vmem:[#allocation3 + $0x10] sm:$0xff]
      %v2077 = vld [vmem:[#allocation3 + $0x18] sm:$0xff]
      %s2078 = scalar_lea.vmem %s6, 320
      %v2079 = vld [vmem:[%s2078] sm:$0xf]
      %v2080 = vld [vmem:[%s2078 + $0x4] sm:$0xf]
      %v2081 = vld [vmem:[%s2078 + $0x8] sm:$0xf]
      %v2082 = vld [vmem:[%s2078 + $0xc] sm:$0xf]
      %v2083 = vld [vmem:[%s2078 + $0x10] sm:$0xf]
      %v2084 = vld [vmem:[%s2078 + $0x14] sm:$0xf]
      %v2085 = vld [vmem:[%s2078 + $0x18] sm:$0xf]
      %v2086 = vld [vmem:[%s2078 + $0x1c] sm:$0xf]
      %v2087 = vld [vmem:[%s2078 + $0x20] sm:$0xf]
      %v2088 = vld [vmem:[%s2078 + $0x24] sm:$0xf]
      %v2089 = vld [vmem:[%s2078 + $0x28] sm:$0xf]
      %v2090 = vld [vmem:[%s2078 + $0x2c] sm:$0xf]
      %v2091 = vld [vmem:[%s2078 + $0x30] sm:$0xf]
      %v2092 = vld [vmem:[%s2078 + $0x34] sm:$0xf]
      %v2093 = vld [vmem:[%s2078 + $0x38] sm:$0xf]
      %v2094 = vld [vmem:[%s2078 + $0x3c] sm:$0xf]
      %v2099 = vunpack.c.l.b16 %v2070
      %v2100 = vunpack.c.l.b16 %v2071
      %v2101 = vunpack.c.l.b16 %v2072
      %v2102 = vunpack.c.l.b16 %v2073
      %v2103 = vpack.c.b16 %v2100, %v2099
      %v2104 = vpack.c.b16 %v2102, %v2101
      %v2123 = vunpack.c.l.b16 %v2079
      %v2124 = vunpack.c.l.b16 %v2080
      %v2125 = vunpack.c.l.b16 %v2081
      %v2126 = vunpack.c.l.b16 %v2082
      %v2127 = vunpack.c.l.b16 %v2083
      %v2128 = vunpack.c.l.b16 %v2084
      %v2129 = vunpack.c.l.b16 %v2085
      %v2130 = vunpack.c.l.b16 %v2086
      %v2131 = vunpack.c.l.b16 %v2087
      %v2132 = vunpack.c.l.b16 %v2088
      %v2133 = vunpack.c.l.b16 %v2089
      %v2134 = vunpack.c.l.b16 %v2090
      %v2135 = vunpack.c.l.b16 %v2091
      %v2136 = vunpack.c.l.b16 %v2092
      %v2137 = vunpack.c.l.b16 %v2093
      %v2138 = vunpack.c.l.b16 %v2094
      %v2139 = vpack.c.b16 %v2124, %v2123
      %v2140 = vpack.c.b16 %v2126, %v2125
      %v2141 = vpack.c.b16 %v2128, %v2127
      %v2142 = vpack.c.b16 %v2130, %v2129
      %v2143 = vpack.c.b16 %v2132, %v2131
      %v2144 = vpack.c.b16 %v2134, %v2133
      %v2145 = vpack.c.b16 %v2136, %v2135
      %v2146 = vpack.c.b16 %v2138, %v2137
      %2155 = vmatpush.bf16.msra.mxu0 %v2146
      %2156 = vmatpush.bf16.msra.mxu0 %v2145
      %2157 = vmatpush.bf16.msra.mxu0 %v2144
      %2158 = vmatpush.bf16.msra.mxu0 %v2143
      %2159 = vmatpush.bf16.msra.mxu0 %v2142
      %2160 = vmatpush.bf16.msra.mxu0 %v2141
      %2161 = vmatpush.bf16.msra.mxu0 %v2140
      %2162 = vmatpush.bf16.msra.mxu0 %v2139
      %2163 = vmatmul.bf16.gmra.mxu0 %v2103
      %v2164 = vpop.f32.mrf.mxu0
      %v2165 = vadd.f32 0.0, %v2164
      %v2166 = vpop.f32.mrf.mxu0
      %v2167 = vadd.f32 0.0, %v2166
      %2168 = vmatmul.bf16.gmra.mxu0 %v2104
      %v2169 = vpop.f32.mrf.mxu0
      %v2170 = vadd.f32 0.0, %v2169
      %v2171 = vpop.f32.mrf.mxu0
      %v2172 = vadd.f32 0.0, %v2171
      %2173 = vdwg.mxu0
      %v2174 = vadd.f32 %v2074, %v2165
      %v2175 = vadd.f32 %v2075, %v2167
      %v2176 = vadd.f32 %v2076, %v2170
      %v2177 = vadd.f32 %v2077, %v2172
      %2178 = vst [vmem:[#allocation3] sm:$0xff] %v2174
      %2179 = vst [vmem:[#allocation3 + $0x8] sm:$0xff] %v2175
      %2180 = vst [vmem:[#allocation3 + $0x10] sm:$0xff] %v2176
      %2181 = vst [vmem:[#allocation3 + $0x18] sm:$0xff] %v2177
      %s2182 = smul.addr %s1033, 4
      %s2183 = scalar_lea.vmem %s338, %s2182
      %v2184 = vld [vmem:[%s2183] sm:$0xf]
      %v2185 = vld [vmem:[%s2183 + $0x4] sm:$0xf]
      %v2186 = vld [vmem:[%s2183 + $0x8] sm:$0xf]
      %v2187 = vld [vmem:[%s2183 + $0xc] sm:$0xf]
      %v2188 = vld [vmem:[#allocation3] sm:$0xff]
      %v2189 = vld [vmem:[#allocation3 + $0x8] sm:$0xff]
      %v2190 = vld [vmem:[#allocation3 + $0x10] sm:$0xff]
      %v2191 = vld [vmem:[#allocation3 + $0x18] sm:$0xff]
      %s2192 = scalar_lea.vmem %s6, 384
      %v2193 = vld [vmem:[%s2192] sm:$0xf]
      %v2194 = vld [vmem:[%s2192 + $0x4] sm:$0xf]
      %v2195 = vld [vmem:[%s2192 + $0x8] sm:$0xf]
      %v2196 = vld [vmem:[%s2192 + $0xc] sm:$0xf]
      %v2197 = vld [vmem:[%s2192 + $0x10] sm:$0xf]
      %v2198 = vld [vmem:[%s2192 + $0x14] sm:$0xf]
      %v2199 = vld [vmem:[%s2192 + $0x18] sm:$0xf]
      %v2200 = vld [vmem:[%s2192 + $0x1c] sm:$0xf]
      %v2201 = vld [vmem:[%s2192 + $0x20] sm:$0xf]
      %v2202 = vld [vmem:[%s2192 + $0x24] sm:$0xf]
      %v2203 = vld [vmem:[%s2192 + $0x28] sm:$0xf]
      %v2204 = vld [vmem:[%s2192 + $0x2c] sm:$0xf]
      %v2205 = vld [vmem:[%s2192 + $0x30] sm:$0xf]
      %v2206 = vld [vmem:[%s2192 + $0x34] sm:$0xf]
      %v2207 = vld [vmem:[%s2192 + $0x38] sm:$0xf]
      %v2208 = vld [vmem:[%s2192 + $0x3c] sm:$0xf]
      %v2213 = vunpack.c.l.b16 %v2184
      %v2214 = vunpack.c.l.b16 %v2185
      %v2215 = vunpack.c.l.b16 %v2186
      %v2216 = vunpack.c.l.b16 %v2187
      %v2217 = vpack.c.b16 %v2214, %v2213
      %v2218 = vpack.c.b16 %v2216, %v2215
      %v2237 = vunpack.c.l.b16 %v2193
      %v2238 = vunpack.c.l.b16 %v2194
      %v2239 = vunpack.c.l.b16 %v2195
      %v2240 = vunpack.c.l.b16 %v2196
      %v2241 = vunpack.c.l.b16 %v2197
      %v2242 = vunpack.c.l.b16 %v2198
      %v2243 = vunpack.c.l.b16 %v2199
      %v2244 = vunpack.c.l.b16 %v2200
      %v2245 = vunpack.c.l.b16 %v2201
      %v2246 = vunpack.c.l.b16 %v2202
      %v2247 = vunpack.c.l.b16 %v2203
      %v2248 = vunpack.c.l.b16 %v2204
      %v2249 = vunpack.c.l.b16 %v2205
      %v2250 = vunpack.c.l.b16 %v2206
      %v2251 = vunpack.c.l.b16 %v2207
      %v2252 = vunpack.c.l.b16 %v2208
      %v2253 = vpack.c.b16 %v2238, %v2237
      %v2254 = vpack.c.b16 %v2240, %v2239
      %v2255 = vpack.c.b16 %v2242, %v2241
      %v2256 = vpack.c.b16 %v2244, %v2243
      %v2257 = vpack.c.b16 %v2246, %v2245
      %v2258 = vpack.c.b16 %v2248, %v2247
      %v2259 = vpack.c.b16 %v2250, %v2249
      %v2260 = vpack.c.b16 %v2252, %v2251
      %2269 = vmatpush.bf16.msra.mxu0 %v2260
      %2270 = vmatpush.bf16.msra.mxu0 %v2259
      %2271 = vmatpush.bf16.msra.mxu0 %v2258
      %2272 = vmatpush.bf16.msra.mxu0 %v2257
      %2273 = vmatpush.bf16.msra.mxu0 %v2256
      %2274 = vmatpush.bf16.msra.mxu0 %v2255
      %2275 = vmatpush.bf16.msra.mxu0 %v2254
      %2276 = vmatpush.bf16.msra.mxu0 %v2253
      %2277 = vmatmul.bf16.gmra.mxu0 %v2217
      %v2278 = vpop.f32.mrf.mxu0
      %v2279 = vadd.f32 0.0, %v2278
      %v2280 = vpop.f32.mrf.mxu0
      %v2281 = vadd.f32 0.0, %v2280
      %2282 = vmatmul.bf16.gmra.mxu0 %v2218
      %v2283 = vpop.f32.mrf.mxu0
      %v2284 = vadd.f32 0.0, %v2283
      %v2285 = vpop.f32.mrf.mxu0
      %v2286 = vadd.f32 0.0, %v2285
      %2287 = vdwg.mxu0
      %v2288 = vadd.f32 %v2188, %v2279
      %v2289 = vadd.f32 %v2189, %v2281
      %v2290 = vadd.f32 %v2190, %v2284
      %v2291 = vadd.f32 %v2191, %v2286
      %2292 = vst [vmem:[#allocation3] sm:$0xff] %v2288
      %2293 = vst [vmem:[#allocation3 + $0x8] sm:$0xff] %v2289
      %2294 = vst [vmem:[#allocation3 + $0x10] sm:$0xff] %v2290
      %2295 = vst [vmem:[#allocation3 + $0x18] sm:$0xff] %v2291
      %s2296 = smul.addr %s1033, 4
      %s2297 = scalar_lea.vmem %s1607, %s2296
      %v2298 = vld [vmem:[%s2297] sm:$0xf]
      %v2299 = vld [vmem:[%s2297 + $0x4] sm:$0xf]
      %v2300 = vld [vmem:[%s2297 + $0x8] sm:$0xf]
      %v2301 = vld [vmem:[%s2297 + $0xc] sm:$0xf]
      %v2302 = vld [vmem:[#allocation3] sm:$0xff]
      %v2303 = vld [vmem:[#allocation3 + $0x8] sm:$0xff]
      %v2304 = vld [vmem:[#allocation3 + $0x10] sm:$0xff]
      %v2305 = vld [vmem:[#allocation3 + $0x18] sm:$0xff]
      %s2306 = scalar_lea.vmem %s6, 448
      %v2307 = vld [vmem:[%s2306] sm:$0xf]
      %v2308 = vld [vmem:[%s2306 + $0x4] sm:$0xf]
      %v2309 = vld [vmem:[%s2306 + $0x8] sm:$0xf]
      %v2310 = vld [vmem:[%s2306 + $0xc] sm:$0xf]
      %v2311 = vld [vmem:[%s2306 + $0x10] sm:$0xf]
      %v2312 = vld [vmem:[%s2306 + $0x14] sm:$0xf]
      %v2313 = vld [vmem:[%s2306 + $0x18] sm:$0xf]
      %v2314 = vld [vmem:[%s2306 + $0x1c] sm:$0xf]
      %v2315 = vld [vmem:[%s2306 + $0x20] sm:$0xf]
      %v2316 = vld [vmem:[%s2306 + $0x24] sm:$0xf]
      %v2317 = vld [vmem:[%s2306 + $0x28] sm:$0xf]
      %v2318 = vld [vmem:[%s2306 + $0x2c] sm:$0xf]
      %v2319 = vld [vmem:[%s2306 + $0x30] sm:$0xf]
      %v2320 = vld [vmem:[%s2306 + $0x34] sm:$0xf]
      %v2321 = vld [vmem:[%s2306 + $0x38] sm:$0xf]
      %v2322 = vld [vmem:[%s2306 + $0x3c] sm:$0xf]
      %v2327 = vunpack.c.l.b16 %v2298
      %v2328 = vunpack.c.l.b16 %v2299
      %v2329 = vunpack.c.l.b16 %v2300
      %v2330 = vunpack.c.l.b16 %v2301
      %v2331 = vpack.c.b16 %v2328, %v2327
      %v2332 = vpack.c.b16 %v2330, %v2329
      %v2351 = vunpack.c.l.b16 %v2307
      %v2352 = vunpack.c.l.b16 %v2308
      %v2353 = vunpack.c.l.b16 %v2309
      %v2354 = vunpack.c.l.b16 %v2310
      %v2355 = vunpack.c.l.b16 %v2311
      %v2356 = vunpack.c.l.b16 %v2312
      %v2357 = vunpack.c.l.b16 %v2313
      %v2358 = vunpack.c.l.b16 %v2314
      %v2359 = vunpack.c.l.b16 %v2315
      %v2360 = vunpack.c.l.b16 %v2316
      %v2361 = vunpack.c.l.b16 %v2317
      %v2362 = vunpack.c.l.b16 %v2318
      %v2363 = vunpack.c.l.b16 %v2319
      %v2364 = vunpack.c.l.b16 %v2320
      %v2365 = vunpack.c.l.b16 %v2321
      %v2366 = vunpack.c.l.b16 %v2322
      %v2367 = vpack.c.b16 %v2352, %v2351
      %v2368 = vpack.c.b16 %v2354, %v2353
      %v2369 = vpack.c.b16 %v2356, %v2355
      %v2370 = vpack.c.b16 %v2358, %v2357
      %v2371 = vpack.c.b16 %v2360, %v2359
      %v2372 = vpack.c.b16 %v2362, %v2361
      %v2373 = vpack.c.b16 %v2364, %v2363
      %v2374 = vpack.c.b16 %v2366, %v2365
      %2383 = vmatpush.bf16.msra.mxu0 %v2374
      %2384 = vmatpush.bf16.msra.mxu0 %v2373
      %2385 = vmatpush.bf16.msra.mxu0 %v2372
      %2386 = vmatpush.bf16.msra.mxu0 %v2371
      %2387 = vmatpush.bf16.msra.mxu0 %v2370
      %2388 = vmatpush.bf16.msra.mxu0 %v2369
      %2389 = vmatpush.bf16.msra.mxu0 %v2368
      %2390 = vmatpush.bf16.msra.mxu0 %v2367
      %2391 = vmatmul.bf16.gmra.mxu0 %v2331
      %v2392 = vpop.f32.mrf.mxu0
      %v2393 = vadd.f32 0.0, %v2392
      %v2394 = vpop.f32.mrf.mxu0
      %v2395 = vadd.f32 0.0, %v2394
      %2396 = vmatmul.bf16.gmra.mxu0 %v2332
      %v2397 = vpop.f32.mrf.mxu0
      %v2398 = vadd.f32 0.0, %v2397
      %v2399 = vpop.f32.mrf.mxu0
      %v2400 = vadd.f32 0.0, %v2399
      %2401 = vdwg.mxu0
      %v2402 = vadd.f32 %v2302, %v2393
      %v2403 = vadd.f32 %v2303, %v2395
      %v2404 = vadd.f32 %v2304, %v2398
      %v2405 = vadd.f32 %v2305, %v2400
      %2406 = vst [vmem:[#allocation3] sm:$0xff] %v2402
      %2407 = vst [vmem:[#allocation3 + $0x8] sm:$0xff] %v2403
      %2408 = vst [vmem:[#allocation3 + $0x10] sm:$0xff] %v2404
      %2409 = vst [vmem:[#allocation3 + $0x18] sm:$0xff] %v2405
      %s2410 = smul.addr %s1033, 4
      %s2411 = scalar_lea.vmem %s1722, %s2410
      %v2412 = vld [vmem:[%s2411] sm:$0xf]
      %v2413 = vld [vmem:[%s2411 + $0x4] sm:$0xf]
      %v2414 = vld [vmem:[%s2411 + $0x8] sm:$0xf]
      %v2415 = vld [vmem:[%s2411 + $0xc] sm:$0xf]
      %v2416 = vld [vmem:[#allocation3] sm:$0xff]
      %v2417 = vld [vmem:[#allocation3 + $0x8] sm:$0xff]
      %v2418 = vld [vmem:[#allocation3 + $0x10] sm:$0xff]
      %v2419 = vld [vmem:[#allocation3 + $0x18] sm:$0xff]
      %s2420 = scalar_lea.vmem %s6, 512
      %v2421 = vld [vmem:[%s2420] sm:$0xf]
      %v2422 = vld [vmem:[%s2420 + $0x4] sm:$0xf]
      %v2423 = vld [vmem:[%s2420 + $0x8] sm:$0xf]
      %v2424 = vld [vmem:[%s2420 + $0xc] sm:$0xf]
      %v2425 = vld [vmem:[%s2420 + $0x10] sm:$0xf]
      %v2426 = vld [vmem:[%s2420 + $0x14] sm:$0xf]
      %v2427 = vld [vmem:[%s2420 + $0x18] sm:$0xf]
      %v2428 = vld [vmem:[%s2420 + $0x1c] sm:$0xf]
      %v2429 = vld [vmem:[%s2420 + $0x20] sm:$0xf]
      %v2430 = vld [vmem:[%s2420 + $0x24] sm:$0xf]
      %v2431 = vld [vmem:[%s2420 + $0x28] sm:$0xf]
      %v2432 = vld [vmem:[%s2420 + $0x2c] sm:$0xf]
      %v2433 = vld [vmem:[%s2420 + $0x30] sm:$0xf]
      %v2434 = vld [vmem:[%s2420 + $0x34] sm:$0xf]
      %v2435 = vld [vmem:[%s2420 + $0x38] sm:$0xf]
      %v2436 = vld [vmem:[%s2420 + $0x3c] sm:$0xf]
      %v2441 = vunpack.c.l.b16 %v2412
      %v2442 = vunpack.c.l.b16 %v2413
      %v2443 = vunpack.c.l.b16 %v2414
      %v2444 = vunpack.c.l.b16 %v2415
      %v2445 = vpack.c.b16 %v2442, %v2441
      %v2446 = vpack.c.b16 %v2444, %v2443
      %v2465 = vunpack.c.l.b16 %v2421
      %v2466 = vunpack.c.l.b16 %v2422
      %v2467 = vunpack.c.l.b16 %v2423
      %v2468 = vunpack.c.l.b16 %v2424
      %v2469 = vunpack.c.l.b16 %v2425
      %v2470 = vunpack.c.l.b16 %v2426
      %v2471 = vunpack.c.l.b16 %v2427
      %v2472 = vunpack.c.l.b16 %v2428
      %v2473 = vunpack.c.l.b16 %v2429
      %v2474 = vunpack.c.l.b16 %v2430
      %v2475 = vunpack.c.l.b16 %v2431
      %v2476 = vunpack.c.l.b16 %v2432
      %v2477 = vunpack.c.l.b16 %v2433
      %v2478 = vunpack.c.l.b16 %v2434
      %v2479 = vunpack.c.l.b16 %v2435
      %v2480 = vunpack.c.l.b16 %v2436
      %v2481 = vpack.c.b16 %v2466, %v2465
      %v2482 = vpack.c.b16 %v2468, %v2467
      %v2483 = vpack.c.b16 %v2470, %v2469
      %v2484 = vpack.c.b16 %v2472, %v2471
      %v2485 = vpack.c.b16 %v2474, %v2473
      %v2486 = vpack.c.b16 %v2476, %v2475
      %v2487 = vpack.c.b16 %v2478, %v2477
      %v2488 = vpack.c.b16 %v2480, %v2479
      %2497 = vmatpush.bf16.msra.mxu0 %v2488
      %2498 = vmatpush.bf16.msra.mxu0 %v2487
      %2499 = vmatpush.bf16.msra.mxu0 %v2486
      %2500 = vmatpush.bf16.msra.mxu0 %v2485
      %2501 = vmatpush.bf16.msra.mxu0 %v2484
      %2502 = vmatpush.bf16.msra.mxu0 %v2483
      %2503 = vmatpush.bf16.msra.mxu0 %v2482
      %2504 = vmatpush.bf16.msra.mxu0 %v2481
      %2505 = vmatmul.bf16.gmra.mxu0 %v2445
      %v2506 = vpop.f32.mrf.mxu0
      %v2507 = vadd.f32 0.0, %v2506
      %v2508 = vpop.f32.mrf.mxu0
      %v2509 = vadd.f32 0.0, %v2508
      %2510 = vmatmul.bf16.gmra.mxu0 %v2446
      %v2511 = vpop.f32.mrf.mxu0
      %v2512 = vadd.f32 0.0, %v2511
      %v2513 = vpop.f32.mrf.mxu0
      %v2514 = vadd.f32 0.0, %v2513
      %2515 = vdwg.mxu0
      %v2516 = vadd.f32 %v2416, %v2507
      %v2517 = vadd.f32 %v2417, %v2509
      %v2518 = vadd.f32 %v2418, %v2512
      %v2519 = vadd.f32 %v2419, %v2514
      %2520 = vst [vmem:[#allocation3] sm:$0xff] %v2516
      %2521 = vst [vmem:[#allocation3 + $0x8] sm:$0xff] %v2517
      %2522 = vst [vmem:[#allocation3 + $0x10] sm:$0xff] %v2518
      %2523 = vst [vmem:[#allocation3 + $0x18] sm:$0xff] %v2519
      %v2524 = vld [vmem:[#allocation3] sm:$0xff]
      %v2525 = vld [vmem:[#allocation3 + $0x8] sm:$0xff]
      %v2526 = vld [vmem:[#allocation3 + $0x10] sm:$0xff]
      %v2527 = vld [vmem:[#allocation3 + $0x18] sm:$0xff]
      %v2528 = vmax.f32 %v2524, 0.0
      %v2529 = vmax.f32 %v2525, 0.0
      %v2530 = vmax.f32 %v2526, 0.0
      %v2531 = vmax.f32 %v2527, 0.0
      %v2532 = vpack.c.bf16 %v2528, %v2528
      %v2533 = vpack.c.bf16 %v2529, %v2529
      %v2534 = vpack.c.bf16 %v2530, %v2530
      %v2535 = vpack.c.bf16 %v2531, %v2531
      %2536 = vst [vmem:[%s347] sm:$0xf] %v2532
      %2537 = vst [vmem:[%s347 + $0x4] sm:$0xf] %v2533
      %2538 = vst [vmem:[%s347 + $0x8] sm:$0xf] %v2534
      %2539 = vst [vmem:[%s347 + $0xc] sm:$0xf] %v2535
      %s2540 = smul.u32 4, %s24
      %p2541 = scmp.lt.s32.totalorder %s23, 1
      %s2542 = scalar_select %p2541, %s23, 1
      %p2543 = scmp.lt.s32.totalorder %s2540, 7
      %s2544 = scalar_select %p2543, %s2540, 7
      %s2545 = smul.addr %s2542, 8
      %s2546 = sadd.s32 %s2544, %s2545
      %s2547 = smul.addr %s2546, 4
      %s2548 = scalar_lea.vmem %s8, %s2547
      // Predicated region
      $region53: #{_lambda_.3} parent=51 // pred_check
        %p2549 = pneg %p229
      $region54: #{_lambda_.3} parent=51 // pred_check_branch
        %2551 = sbr.rel (%p2549) target = $region56
      $region55: #{_lambda_.3} parent=51 // pred_region
        %s2552 = smul.u32 4, %s24
      $region56: #{_lambda_.3} parent=51 // pred_fallthru
        _
    $region52: #{_lambda_.3} parent=5 // pred_fallthru
      _
    %p2553 = scmp.le.s32.totalorder 2, %s14
    // Predicated region
    $region57: #{_lambda_.3} parent=5 // pred_check
      %p2554 = pneg %p2553
    $region58: #{_lambda_.3} parent=5 // pred_check_branch
      %2556 = sbr.rel (%p2554) target = $region60
    $region59: #{_lambda_.3} parent=5 // pred_region
      %s2557 = ssub.s32 %s14, 2
      // Predicated region
      $region61: #{_lambda_.3} parent=59 // pred_check
        %p2558 = pneg %p235
      $region62: #{_lambda_.3} parent=59 // pred_check_branch
        %2560 = sbr.rel (%p2558) target = $region64
      $region63: #{_lambda_.3} parent=59 // pred_region
        %s2561 = smul.u32 4, %s26
        %p2562 = scmp.lt.s32.totalorder %s25, 1
        %s2563 = scalar_select %p2562, %s25, 1
        %p2564 = scmp.lt.s32.totalorder %s2561, 7
        %s2565 = scalar_select %p2564, %s2561, 7
        %s2566 = smul.addr %s2563, 8
        %s2567 = sadd.s32 %s2565, %s2566
        %s2568 = smul.addr %s2567, 4
        %s2569 = scalar_lea.vmem %s8, %s2568
      $region64: #{_lambda_.3} parent=59 // pred_fallthru
        _
    $region60: #{_lambda_.3} parent=5 // pred_fallthru
      _
  $region6: #{_lambda_.3} parent=0 // loop_footer
    %s18 = sadd.s32 1, %s14
  $region7: #{_lambda_.3} parent=0 // loop_footer_branch
    %13 = sbr.rel target = $region3
  $region8: #{_lambda_.3} parent=0 // loop_exit
    _

</llo_original>
